<compile_context>
chip_gen: v6e
topology: v6e:2x2x1
jax: 0.10.0
libtpu: 0.0.40
codegen_flags: <defaults>
</compile_context>

<pallas_src>
import functools

import jax
import jax.numpy as jnp
from jax.experimental import pallas as pl
from jax.experimental.pallas import tpu as pltpu

VMEM_LIMIT = 32 * 1024 * 1024  # bytes; fits every generation's scoped VMEM


def _round_up(x, m):
    return ((x + m - 1) // m) * m


def _cdiv(a, b):
    return (a + b - 1) // b


# ---------------------------------------------------------------------------
# Pallas kernels
# ---------------------------------------------------------------------------
def _matmul_bias_act_kernel(x_ref, w_ref, b_ref, o_ref, *, apply_relu):
    # bf16 x bf16 -> f32 accumulation on the MXU; bias + ReLU on the f32 acc.
    acc = jnp.dot(x_ref[...], w_ref[...], preferred_element_type=jnp.float32)
    acc = acc + b_ref[...]
    if apply_relu:
        acc = jnp.maximum(acc, 0.0)
    o_ref[...] = acc.astype(o_ref.dtype)


def _max_reduce_kernel(x_ref, o_ref):
    # x_ref: [9, TR, L] (9 pooling taps) -> elementwise max over taps (VPU).
    o_ref[...] = jnp.max(x_ref[...], axis=0)


def _avgpool_kernel(x_ref, o_ref, *, inv_count):
    # Partial spatial sums accumulated in the resident f32 output block.
    j = pl.program_id(1)

    @pl.when(j == 0)
    def _():
        o_ref[...] = jnp.zeros_like(o_ref)

    o_ref[...] += jnp.sum(x_ref[...].astype(jnp.float32), axis=1)

    @pl.when(j == pl.num_programs(1) - 1)
    def _():
        o_ref[...] = o_ref[...] * inv_count


# ---------------------------------------------------------------------------
# Wrappers around pallas_call
# ---------------------------------------------------------------------------
def matmul_bias_act(x, w, b, *, relu, out_dtype=jnp.bfloat16):
    """x: [R, K], w: [K, Cout], b: [Cout] -> [R, Cout] with optional ReLU.

    Operands are cast to bf16 and zero-padded: rows to a multiple of the row
    tile, K and Cout to multiples of 128 (lane-dense loads/stores, exact math
    since the padding is zeros and is sliced off afterwards).
    """
    R, K = x.shape
    Kw, Cout = w.shape
    assert K == Kw
    Kp = _round_up(K, 128)
    Cp = _round_up(Cout, 128)
    TM = 512 if R >= 512 else _round_up(max(R, 16), 16)
    Rp = _round_up(R, TM)

    xb = jnp.pad(x.astype(jnp.bfloat16), ((0, Rp - R), (0, Kp - K)))
    wb = jnp.pad(w.astype(jnp.bfloat16), ((0, Kp - K), (0, Cp - Cout)))
    bb = jnp.pad(b.astype(jnp.float32), (0, Cp - Cout)).reshape(1, Cp)

    out = pl.pallas_call(
        functools.partial(_matmul_bias_act_kernel, apply_relu=relu),
        out_shape=jax.ShapeDtypeStruct((Rp, Cp), out_dtype),
        grid=(Rp // TM,),
        in_specs=[
            pl.BlockSpec((TM, Kp), lambda i: (i, 0)),
            pl.BlockSpec((Kp, Cp), lambda i: (0, 0)),
            pl.BlockSpec((1, Cp), lambda i: (0, 0)),
        ],
        out_specs=pl.BlockSpec((TM, Cp), lambda i: (i, 0)),
        compiler_params=pltpu.CompilerParams(
            dimension_semantics=("parallel",),
            vmem_limit_bytes=VMEM_LIMIT,
        ),
    )(xb, wb, bb)
    return out[:R, :Cout]


def conv2d(x, w, b, *, stride, pad, relu):
    """x: [N,H,W,Cin] NHWC (bf16), w: [KH,KW,Cin,Cout]. Matches torch Conv2d."""
    N, H, W, Cin = x.shape
    KH, KW, _, Cout = w.shape
    Ho = (H + 2 * pad - KH) // stride + 1
    Wo = (W + 2 * pad - KW) // stride + 1
    xp = jnp.pad(x, ((0, 0), (pad, pad), (pad, pad), (0, 0)))
    taps = []
    for kh in range(KH):
        for kw in range(KW):
            taps.append(
                xp[:, kh:kh + stride * (Ho - 1) + 1:stride,
                      kw:kw + stride * (Wo - 1) + 1:stride, :])
    patches = jnp.stack(taps, axis=3)                  # [N, Ho, Wo, KH*KW, Cin]
    patches = patches.reshape(N * Ho * Wo, KH * KW * Cin)
    out = matmul_bias_act(patches, w.reshape(KH * KW * Cin, Cout), b,
                          relu=relu, out_dtype=jnp.bfloat16)
    return out.reshape(N, Ho, Wo, Cout)


def maxpool2d_3x3_s2_p1(x):
    """torch.nn.MaxPool2d(kernel_size=3, stride=2, padding=1) on NHWC."""
    N, H, W, C = x.shape
    Ho = (H + 2 - 3) // 2 + 1
    Wo = (W + 2 - 3) // 2 + 1
    xp = jnp.pad(x, ((0, 0), (1, 1), (1, 1), (0, 0)), constant_values=-jnp.inf)
    taps = []
    for kh in range(3):
        for kw in range(3):
            taps.append(xp[:, kh:kh + 2 * (Ho - 1) + 1:2,
                              kw:kw + 2 * (Wo - 1) + 1:2, :])
    rows = N * Ho
    lanes = Wo * C                       # lane-dense last dim (Wo*C >> C)
    stacked = jnp.stack(taps, axis=0).reshape(9, rows, lanes)

    TR = min(256, _round_up(max(_cdiv(rows, 2), 16), 16))
    rows_p = _round_up(rows, TR)
    stacked = jnp.pad(stacked, ((0, 0), (0, rows_p - rows), (0, 0)))

    out = pl.pallas_call(
        _max_reduce_kernel,
        out_shape=jax.ShapeDtypeStruct((rows_p, lanes), x.dtype),
        grid=(rows_p // TR,),
        in_specs=[pl.BlockSpec((9, TR, lanes), lambda i: (0, i, 0))],
        out_specs=pl.BlockSpec((TR, lanes), lambda i: (i, 0)),
        compiler_params=pltpu.CompilerParams(
            dimension_semantics=("parallel",),
            vmem_limit_bytes=VMEM_LIMIT,
        ),
    )(stacked)
    return out[:rows].reshape(N, Ho, Wo, C)


def global_avg_pool(x):
    """x.mean(dim=[2,3]) in torch (NCHW) == mean over H,W here (NHWC) -> f32."""
    N, H, W, C = x.shape
    HW = H * W
    xf = x.reshape(N, HW, C)

    TN = 8
    Np = _round_up(N, TN)
    THW = min(512, _round_up(HW, 16))
    HWp = _round_up(HW, THW)
    xf = jnp.pad(xf, ((0, Np - N), (0, HWp - HW), (0, 0)))

    out = pl.pallas_call(
        functools.partial(_avgpool_kernel, inv_count=1.0 / HW),
        out_shape=jax.ShapeDtypeStruct((Np, C), jnp.float32),
        grid=(Np // TN, HWp // THW),
        in_specs=[pl.BlockSpec((TN, THW, C), lambda i, j: (i, j, 0))],
        out_specs=pl.BlockSpec((TN, C), lambda i, j: (i, 0)),
        compiler_params=pltpu.CompilerParams(
            dimension_semantics=("parallel", "arbitrary"),
            vmem_limit_bytes=VMEM_LIMIT,
        ),
    )(xf)
    return out[:N]


# ---------------------------------------------------------------------------
# Model: deterministic parameter init + forward
# ---------------------------------------------------------------------------
def init_params(key, layers=(32, 64, 128), n_input_channels=3, n_classes=6):
    def conv_init(k, kh, kw, cin, cout):
        k1, k2 = jax.random.split(k)
        fan_in = kh * kw * cin
        w = jax.random.normal(k1, (kh, kw, cin, cout), jnp.float32) * (2.0 / fan_in) ** 0.5
        b = jax.random.normal(k2, (cout,), jnp.float32) * 0.01
        return w, b

    keys = jax.random.split(key, 2 * len(layers) + 2)
    params = {}
    c = layers[0]
    params["stem"] = conv_init(keys[0], 7, 7, n_input_channels, c)
    blocks = []
    for i, l in enumerate(layers):
        wa = conv_init(keys[1 + 2 * i], 3, 3, c, l)
        wb = conv_init(keys[2 + 2 * i], 3, 3, l, l)
        blocks.append((wa, wb))
        c = l
    params["blocks"] = blocks
    kf1, kf2 = jax.random.split(keys[-1])
    params["fc_w"] = jax.random.normal(kf1, (c, n_classes), jnp.float32) * (1.0 / c) ** 0.5
    params["fc_b"] = jax.random.normal(kf2, (n_classes,), jnp.float32) * 0.01
    return params


def cnn_classifier_forward(x_nchw, params):
    # NCHW (torch) -> NHWC (kernel layout); activations carried in bf16.
    x = jnp.transpose(x_nchw, (0, 2, 3, 1)).astype(jnp.bfloat16)
    w, b = params["stem"]
    x = conv2d(x, w, b, stride=1, pad=3, relu=True)      # Conv2d(3,c,7,p=3) + ReLU
    x = maxpool2d_3x3_s2_p1(x)                           # MaxPool2d(3,2,1)
    for (wa, ba), (wb, bb) in params["blocks"]:          # Block(c_in, c_out, stride=2)
        x = conv2d(x, wa, ba, stride=2, pad=1, relu=True)
        x = conv2d(x, wb, bb, stride=1, pad=1, relu=True)
    feat = global_avg_pool(x)                            # mean over H, W -> [N, C] f32
    logits = matmul_bias_act(feat, params["fc_w"], params["fc_b"],
                             relu=False, out_dtype=jnp.float32)
    return logits                                        # [N, 6]


# ---------------------------------------------------------------------------
# Pure-JAX f32 reference for a sanity check
# ---------------------------------------------------------------------------
def reference_forward(x_nchw, params):
    def conv(x, w, b, stride, pad):
        y = jax.lax.conv_general_dilated(
            x, w, window_strides=(stride, stride),
            padding=((pad, pad), (pad, pad)),
            dimension_numbers=("NHWC", "HWIO", "NHWC"))
        return y + b

    x = jnp.transpose(x_nchw, (0, 2, 3, 1))
    w, b = params["stem"]
    x = jax.nn.relu(conv(x, w, b, 1, 3))
    x = jax.lax.reduce_window(x, -jnp.inf, jax.lax.max,
                              (1, 3, 3, 1), (1, 2, 2, 1),
                              ((0, 0), (1, 1), (1, 1), (0, 0)))
    for (wa, ba), (wb, bb) in params["blocks"]:
        x = jax.nn.relu(conv(x, wa, ba, 2, 1))
        x = jax.nn.relu(conv(x, wb, bb, 1, 1))
    feat = jnp.mean(x, axis=(1, 2))
    return feat @ params["fc_w"] + params["fc_b"]


if __name__ == "__main__":
    key = jax.random.PRNGKey(0)
    k_x, k_p = jax.random.split(key)
    # PyTorch-style NCHW input: batch=2, channels=3, spatial=32
    x = jax.random.normal(k_x, (2, 3, 32, 32), jnp.float32)
    params = init_params(k_p)

    fwd = jax.jit(cnn_classifier_forward)
    logits = jax.block_until_ready(fwd(x, params))
    assert logits.shape == (2, 6), logits.shape
    assert bool(jnp.all(jnp.isfinite(logits)))

    ref = reference_forward(x, params)
    rel_err = float(jnp.linalg.norm(logits - ref) / (jnp.linalg.norm(ref) + 1e-6))
    assert rel_err < 5e-2, (rel_err, logits, ref)

    print("KERNEL_OK")
</pallas_src>

<mosaic_0001>
module attributes {stable_mosaic.version = 11 : i64} {
  func.func @_matmul_bias_act_kernel(%arg0: i32, %arg1: memref<512x256xbf16, #tpu.memory_space<vmem>>, %arg2: memref<256x128xbf16, #tpu.memory_space<vmem>>, %arg3: memref<1x128xf32, #tpu.memory_space<vmem>>, %arg4: memref<512x128xbf16, #tpu.memory_space<vmem>>) attributes {dimension_semantics = [#tpu.dimension_semantics<parallel>], iteration_bounds = array<i64: 4>, scalar_prefetch = 0 : i64, scratch_operands = 0 : i64, tpu.core_type = #tpu.core_type<tc>, window_params = [{transform_indices = @transform_0, window_bounds = array<i64: 512, 256>}, {pipeline_mode = #tpu.pipeline_mode<synchronous>, transform_indices = @transform_1, window_bounds = array<i64: 256, 128>}, {pipeline_mode = #tpu.pipeline_mode<synchronous>, transform_indices = @transform_2, window_bounds = array<i64: 1, 128>}, {transform_indices = @transform_3, window_bounds = array<i64: 512, 128>}]} {
    %c0 = arith.constant 0 : index
    %c0_0 = arith.constant 0 : index
    %0 = vector.load %arg1[%c0, %c0_0] : memref<512x256xbf16, #tpu.memory_space<vmem>>, vector<512x256xbf16>
    %c0_1 = arith.constant 0 : index
    %c0_2 = arith.constant 0 : index
    %1 = vector.load %arg2[%c0_1, %c0_2] : memref<256x128xbf16, #tpu.memory_space<vmem>>, vector<256x128xbf16>
    %cst = arith.constant dense<0.000000e+00> : vector<512x128xf32>
    %2 = tpu.matmul %0, %1, %cst {dimension_numbers = #tpu.dot_dimension_numbers<[1], [0], [0], [1], [0, 0, 1, 1], [], []>} : vector<512x256xbf16>, vector<256x128xbf16>, vector<512x128xf32> -> vector<512x128xf32>
    %c0_3 = arith.constant 0 : index
    %c0_4 = arith.constant 0 : index
    %3 = vector.load %arg3[%c0_3, %c0_4] : memref<1x128xf32, #tpu.memory_space<vmem>>, vector<1x128xf32>
    %4 = vector.broadcast %3 : vector<1x128xf32> to vector<512x128xf32>
    %5 = arith.addf %2, %4 : vector<512x128xf32>
    %cst_5 = arith.constant 0.000000e+00 : f32
    %6 = vector.broadcast %cst_5 : f32 to vector<512x128xf32>
    %7 = arith.maximumf %5, %6 : vector<512x128xf32>
    %8 = arith.truncf %7 : vector<512x128xf32> to vector<512x128xbf16>
    %c0_6 = arith.constant 0 : index
    %c0_7 = arith.constant 0 : index
    %9 = vector.load %arg4[%c0_6, %c0_7] : memref<512x128xbf16, #tpu.memory_space<vmem>>, vector<512x128xbf16>
    tpu.vector_store %arg4[%c0_6, %c0_7], %8 {strides = array<i32>} : memref<512x128xbf16, #tpu.memory_space<vmem>>, vector<512x128xbf16>,
    return
  }
  func.func @transform_0(%arg0: i32) -> (i32, i32) {
    %c0_i32 = arith.constant 0 : i32
    %c0_i32_0 = arith.constant 0 : i32
    return %arg0, %c0_i32 : i32, i32
  }
  func.func @transform_1(%arg0: i32) -> (i32, i32) {
    %c0_i32 = arith.constant 0 : i32
    %c0_i32_0 = arith.constant 0 : i32
    %c0_i32_1 = arith.constant 0 : i32
    return %c0_i32, %c0_i32_0 : i32, i32
  }
  func.func @transform_2(%arg0: i32) -> (i32, i32) {
    %c0_i32 = arith.constant 0 : i32
    %c0_i32_0 = arith.constant 0 : i32
    %c0_i32_1 = arith.constant 0 : i32
    return %c0_i32, %c0_i32_0 : i32, i32
  }
  func.func @transform_3(%arg0: i32) -> (i32, i32) {
    %c0_i32 = arith.constant 0 : i32
    %c0_i32_0 = arith.constant 0 : i32
    return %arg0, %c0_i32 : i32, i32
  }
}

module attributes {stable_mosaic.version = 11 : i64} {
  func.func @_max_reduce_kernel(%arg0: i32, %arg1: memref<9x16x512xbf16, #tpu.memory_space<vmem>>, %arg2: memref<16x512xbf16, #tpu.memory_space<vmem>>) attributes {dimension_semantics = [#tpu.dimension_semantics<parallel>], iteration_bounds = array<i64: 2>, scalar_prefetch = 0 : i64, scratch_operands = 0 : i64, tpu.core_type = #tpu.core_type<tc>, window_params = [{transform_indices = @transform_0, window_bounds = array<i64: 9, 16, 512>}, {transform_indices = @transform_1, window_bounds = array<i64: 16, 512>}]} {
    %c0 = arith.constant 0 : index
    %c0_0 = arith.constant 0 : index
    %c0_1 = arith.constant 0 : index
    %0 = vector.load %arg1[%c0, %c0_0, %c0_1] : memref<9x16x512xbf16, #tpu.memory_space<vmem>>, vector<9x16x512xbf16>
    %cst = arith.constant dense<0xFF80> : vector<16x512xbf16>
    %1 = vector.multi_reduction <maximumf>, %0, %cst [0] : vector<9x16x512xbf16> to vector<16x512xbf16>
    %c0_2 = arith.constant 0 : index
    %c0_3 = arith.constant 0 : index
    %2 = vector.load %arg2[%c0_2, %c0_3] : memref<16x512xbf16, #tpu.memory_space<vmem>>, vector<16x512xbf16>
    tpu.vector_store %arg2[%c0_2, %c0_3], %1 {strides = array<i32>} : memref<16x512xbf16, #tpu.memory_space<vmem>>, vector<16x512xbf16>,
    return
  }
  func.func @transform_0(%arg0: i32) -> (i32, i32, i32) {
    %c0_i32 = arith.constant 0 : i32
    %c0_i32_0 = arith.constant 0 : i32
    %c0_i32_1 = arith.constant 0 : i32
    return %c0_i32, %arg0, %c0_i32_0 : i32, i32, i32
  }
  func.func @transform_1(%arg0: i32) -> (i32, i32) {
    %c0_i32 = arith.constant 0 : i32
    %c0_i32_0 = arith.constant 0 : i32
    return %arg0, %c0_i32 : i32, i32
  }
}

module attributes {stable_mosaic.version = 11 : i64} {
  func.func @_matmul_bias_act_kernel(%arg0: i32, %arg1: memref<128x384xbf16, #tpu.memory_space<vmem>>, %arg2: memref<384x128xbf16, #tpu.memory_space<vmem>>, %arg3: memref<1x128xf32, #tpu.memory_space<vmem>>, %arg4: memref<128x128xbf16, #tpu.memory_space<vmem>>) attributes {dimension_semantics = [#tpu.dimension_semantics<parallel>], iteration_bounds = array<i64: 1>, scalar_prefetch = 0 : i64, scratch_operands = 0 : i64, tpu.core_type = #tpu.core_type<tc>, window_params = [{transform_indices = @transform_0, window_bounds = array<i64: 128, 384>}, {pipeline_mode = #tpu.pipeline_mode<synchronous>, transform_indices = @transform_1, window_bounds = array<i64: 384, 128>}, {pipeline_mode = #tpu.pipeline_mode<synchronous>, transform_indices = @transform_2, window_bounds = array<i64: 1, 128>}, {transform_indices = @transform_3, window_bounds = array<i64: 128, 128>}]} {
    %c0 = arith.constant 0 : index
    %c0_0 = arith.constant 0 : index
    %0 = vector.load %arg1[%c0, %c0_0] : memref<128x384xbf16, #tpu.memory_space<vmem>>, vector<128x384xbf16>
    %c0_1 = arith.constant 0 : index
    %c0_2 = arith.constant 0 : index
    %1 = vector.load %arg2[%c0_1, %c0_2] : memref<384x128xbf16, #tpu.memory_space<vmem>>, vector<384x128xbf16>
    %cst = arith.constant dense<0.000000e+00> : vector<128x128xf32>
    %2 = tpu.matmul %0, %1, %cst {dimension_numbers = #tpu.dot_dimension_numbers<[1], [0], [0], [1], [0, 0, 1, 1], [], []>} : vector<128x384xbf16>, vector<384x128xbf16>, vector<128x128xf32> -> vector<128x128xf32>
    %c0_3 = arith.constant 0 : index
    %c0_4 = arith.constant 0 : index
    %3 = vector.load %arg3[%c0_3, %c0_4] : memref<1x128xf32, #tpu.memory_space<vmem>>, vector<1x128xf32>
    %4 = vector.broadcast %3 : vector<1x128xf32> to vector<128x128xf32>
    %5 = arith.addf %2, %4 : vector<128x128xf32>
    %cst_5 = arith.constant 0.000000e+00 : f32
    %6 = vector.broadcast %cst_5 : f32 to vector<128x128xf32>
    %7 = arith.maximumf %5, %6 : vector<128x128xf32>
    %8 = arith.truncf %7 : vector<128x128xf32> to vector<128x128xbf16>
    %c0_6 = arith.constant 0 : index
    %c0_7 = arith.constant 0 : index
    %9 = vector.load %arg4[%c0_6, %c0_7] : memref<128x128xbf16, #tpu.memory_space<vmem>>, vector<128x128xbf16>
    tpu.vector_store %arg4[%c0_6, %c0_7], %8 {strides = array<i32>} : memref<128x128xbf16, #tpu.memory_space<vmem>>, vector<128x128xbf16>,
    return
  }
  func.func @transform_0(%arg0: i32) -> (i32, i32) {
    %c0_i32 = arith.constant 0 : i32
    %c0_i32_0 = arith.constant 0 : i32
    return %arg0, %c0_i32 : i32, i32
  }
  func.func @transform_1(%arg0: i32) -> (i32, i32) {
    %c0_i32 = arith.constant 0 : i32
    %c0_i32_0 = arith.constant 0 : i32
    %c0_i32_1 = arith.constant 0 : i32
    return %c0_i32, %c0_i32_0 : i32, i32
  }
  func.func @transform_2(%arg0: i32) -> (i32, i32) {
    %c0_i32 = arith.constant 0 : i32
    %c0_i32_0 = arith.constant 0 : i32
    %c0_i32_1 = arith.constant 0 : i32
    return %c0_i32, %c0_i32_0 : i32, i32
  }
  func.func @transform_3(%arg0: i32) -> (i32, i32) {
    %c0_i32 = arith.constant 0 : i32
    %c0_i32_0 = arith.constant 0 : i32
    return %arg0, %c0_i32 : i32, i32
  }
}

module attributes {stable_mosaic.version = 11 : i64} {
  func.func @_matmul_bias_act_kernel(%arg0: i32, %arg1: memref<32x384xbf16, #tpu.memory_space<vmem>>, %arg2: memref<384x128xbf16, #tpu.memory_space<vmem>>, %arg3: memref<1x128xf32, #tpu.memory_space<vmem>>, %arg4: memref<32x128xbf16, #tpu.memory_space<vmem>>) attributes {dimension_semantics = [#tpu.dimension_semantics<parallel>], iteration_bounds = array<i64: 1>, scalar_prefetch = 0 : i64, scratch_operands = 0 : i64, tpu.core_type = #tpu.core_type<tc>, window_params = [{transform_indices = @transform_0, window_bounds = array<i64: 32, 384>}, {pipeline_mode = #tpu.pipeline_mode<synchronous>, transform_indices = @transform_1, window_bounds = array<i64: 384, 128>}, {pipeline_mode = #tpu.pipeline_mode<synchronous>, transform_indices = @transform_2, window_bounds = array<i64: 1, 128>}, {transform_indices = @transform_3, window_bounds = array<i64: 32, 128>}]} {
    %c0 = arith.constant 0 : index
    %c0_0 = arith.constant 0 : index
    %0 = vector.load %arg1[%c0, %c0_0] : memref<32x384xbf16, #tpu.memory_space<vmem>>, vector<32x384xbf16>
    %c0_1 = arith.constant 0 : index
    %c0_2 = arith.constant 0 : index
    %1 = vector.load %arg2[%c0_1, %c0_2] : memref<384x128xbf16, #tpu.memory_space<vmem>>, vector<384x128xbf16>
    %cst = arith.constant dense<0.000000e+00> : vector<32x128xf32>
    %2 = tpu.matmul %0, %1, %cst {dimension_numbers = #tpu.dot_dimension_numbers<[1], [0], [0], [1], [0, 0, 1, 1], [], []>} : vector<32x384xbf16>, vector<384x128xbf16>, vector<32x128xf32> -> vector<32x128xf32>
    %c0_3 = arith.constant 0 : index
    %c0_4 = arith.constant 0 : index
    %3 = vector.load %arg3[%c0_3, %c0_4] : memref<1x128xf32, #tpu.memory_space<vmem>>, vector<1x128xf32>
    %4 = vector.broadcast %3 : vector<1x128xf32> to vector<32x128xf32>
    %5 = arith.addf %2, %4 : vector<32x128xf32>
    %cst_5 = arith.constant 0.000000e+00 : f32
    %6 = vector.broadcast %cst_5 : f32 to vector<32x128xf32>
    %7 = arith.maximumf %5, %6 : vector<32x128xf32>
    %8 = arith.truncf %7 : vector<32x128xf32> to vector<32x128xbf16>
    %c0_6 = arith.constant 0 : index
    %c0_7 = arith.constant 0 : index
    %9 = vector.load %arg4[%c0_6, %c0_7] : memref<32x128xbf16, #tpu.memory_space<vmem>>, vector<32x128xbf16>
    tpu.vector_store %arg4[%c0_6, %c0_7], %8 {strides = array<i32>} : memref<32x128xbf16, #tpu.memory_space<vmem>>, vector<32x128xbf16>,
    return
  }
  func.func @transform_0(%arg0: i32) -> (i32, i32) {
    %c0_i32 = arith.constant 0 : i32
    %c0_i32_0 = arith.constant 0 : i32
    return %arg0, %c0_i32 : i32, i32
  }
  func.func @transform_1(%arg0: i32) -> (i32, i32) {
    %c0_i32 = arith.constant 0 : i32
    %c0_i32_0 = arith.constant 0 : i32
    %c0_i32_1 = arith.constant 0 : i32
    return %c0_i32, %c0_i32_0 : i32, i32
  }
  func.func @transform_2(%arg0: i32) -> (i32, i32) {
    %c0_i32 = arith.constant 0 : i32
    %c0_i32_0 = arith.constant 0 : i32
    %c0_i32_1 = arith.constant 0 : i32
    return %c0_i32, %c0_i32_0 : i32, i32
  }
  func.func @transform_3(%arg0: i32) -> (i32, i32) {
    %c0_i32 = arith.constant 0 : i32
    %c0_i32_0 = arith.constant 0 : i32
    return %arg0, %c0_i32 : i32, i32
  }
}

module attributes {stable_mosaic.version = 11 : i64} {
  func.func @_matmul_bias_act_kernel(%arg0: i32, %arg1: memref<32x640xbf16, #tpu.memory_space<vmem>>, %arg2: memref<640x128xbf16, #tpu.memory_space<vmem>>, %arg3: memref<1x128xf32, #tpu.memory_space<vmem>>, %arg4: memref<32x128xbf16, #tpu.memory_space<vmem>>) attributes {dimension_semantics = [#tpu.dimension_semantics<parallel>], iteration_bounds = array<i64: 1>, scalar_prefetch = 0 : i64, scratch_operands = 0 : i64, tpu.core_type = #tpu.core_type<tc>, window_params = [{transform_indices = @transform_0, window_bounds = array<i64: 32, 640>}, {pipeline_mode = #tpu.pipeline_mode<synchronous>, transform_indices = @transform_1, window_bounds = array<i64: 640, 128>}, {pipeline_mode = #tpu.pipeline_mode<synchronous>, transform_indices = @transform_2, window_bounds = array<i64: 1, 128>}, {transform_indices = @transform_3, window_bounds = array<i64: 32, 128>}]} {
    %c0 = arith.constant 0 : index
    %c0_0 = arith.constant 0 : index
    %0 = vector.load %arg1[%c0, %c0_0] : memref<32x640xbf16, #tpu.memory_space<vmem>>, vector<32x640xbf16>
    %c0_1 = arith.constant 0 : index
    %c0_2 = arith.constant 0 : index
    %1 = vector.load %arg2[%c0_1, %c0_2] : memref<640x128xbf16, #tpu.memory_space<vmem>>, vector<640x128xbf16>
    %cst = arith.constant dense<0.000000e+00> : vector<32x128xf32>
    %2 = tpu.matmul %0, %1, %cst {dimension_numbers = #tpu.dot_dimension_numbers<[1], [0], [0], [1], [0, 0, 1, 1], [], []>} : vector<32x640xbf16>, vector<640x128xbf16>, vector<32x128xf32> -> vector<32x128xf32>
    %c0_3 = arith.constant 0 : index
    %c0_4 = arith.constant 0 : index
    %3 = vector.load %arg3[%c0_3, %c0_4] : memref<1x128xf32, #tpu.memory_space<vmem>>, vector<1x128xf32>
    %4 = vector.broadcast %3 : vector<1x128xf32> to vector<32x128xf32>
    %5 = arith.addf %2, %4 : vector<32x128xf32>
    %cst_5 = arith.constant 0.000000e+00 : f32
    %6 = vector.broadcast %cst_5 : f32 to vector<32x128xf32>
    %7 = arith.maximumf %5, %6 : vector<32x128xf32>
    %8 = arith.truncf %7 : vector<32x128xf32> to vector<32x128xbf16>
    %c0_6 = arith.constant 0 : index
    %c0_7 = arith.constant 0 : index
    %9 = vector.load %arg4[%c0_6, %c0_7] : memref<32x128xbf16, #tpu.memory_space<vmem>>, vector<32x128xbf16>
    tpu.vector_store %arg4[%c0_6, %c0_7], %8 {strides = array<i32>} : memref<32x128xbf16, #tpu.memory_space<vmem>>, vector<32x128xbf16>,
    return
  }
  func.func @transform_0(%arg0: i32) -> (i32, i32) {
    %c0_i32 = arith.constant 0 : i32
    %c0_i32_0 = arith.constant 0 : i32
    return %arg0, %c0_i32 : i32, i32
  }
  func.func @transform_1(%arg0: i32) -> (i32, i32) {
    %c0_i32 = arith.constant 0 : i32
    %c0_i32_0 = arith.constant 0 : i32
    %c0_i32_1 = arith.constant 0 : i32
    return %c0_i32, %c0_i32_0 : i32, i32
  }
  func.func @transform_2(%arg0: i32) -> (i32, i32) {
    %c0_i32 = arith.constant 0 : i32
    %c0_i32_0 = arith.constant 0 : i32
    %c0_i32_1 = arith.constant 0 : i32
    return %c0_i32, %c0_i32_0 : i32, i32
  }
  func.func @transform_3(%arg0: i32) -> (i32, i32) {
    %c0_i32 = arith.constant 0 : i32
    %c0_i32_0 = arith.constant 0 : i32
    return %arg0, %c0_i32 : i32, i32
  }
}

module attributes {stable_mosaic.version = 11 : i64} {
  func.func @_matmul_bias_act_kernel(%arg0: i32, %arg1: memref<16x640xbf16, #tpu.memory_space<vmem>>, %arg2: memref<640x128xbf16, #tpu.memory_space<vmem>>, %arg3: memref<1x128xf32, #tpu.memory_space<vmem>>, %arg4: memref<16x128xbf16, #tpu.memory_space<vmem>>) attributes {dimension_semantics = [#tpu.dimension_semantics<parallel>], iteration_bounds = array<i64: 1>, scalar_prefetch = 0 : i64, scratch_operands = 0 : i64, tpu.core_type = #tpu.core_type<tc>, window_params = [{transform_indices = @transform_0, window_bounds = array<i64: 16, 640>}, {pipeline_mode = #tpu.pipeline_mode<synchronous>, transform_indices = @transform_1, window_bounds = array<i64: 640, 128>}, {pipeline_mode = #tpu.pipeline_mode<synchronous>, transform_indices = @transform_2, window_bounds = array<i64: 1, 128>}, {transform_indices = @transform_3, window_bounds = array<i64: 16, 128>}]} {
    %c0 = arith.constant 0 : index
    %c0_0 = arith.constant 0 : index
    %0 = vector.load %arg1[%c0, %c0_0] : memref<16x640xbf16, #tpu.memory_space<vmem>>, vector<16x640xbf16>
    %c0_1 = arith.constant 0 : index
    %c0_2 = arith.constant 0 : index
    %1 = vector.load %arg2[%c0_1, %c0_2] : memref<640x128xbf16, #tpu.memory_space<vmem>>, vector<640x128xbf16>
    %cst = arith.constant dense<0.000000e+00> : vector<16x128xf32>
    %2 = tpu.matmul %0, %1, %cst {dimension_numbers = #tpu.dot_dimension_numbers<[1], [0], [0], [1], [0, 0, 1, 1], [], []>} : vector<16x640xbf16>, vector<640x128xbf16>, vector<16x128xf32> -> vector<16x128xf32>
    %c0_3 = arith.constant 0 : index
    %c0_4 = arith.constant 0 : index
    %3 = vector.load %arg3[%c0_3, %c0_4] : memref<1x128xf32, #tpu.memory_space<vmem>>, vector<1x128xf32>
    %4 = vector.broadcast %3 : vector<1x128xf32> to vector<16x128xf32>
    %5 = arith.addf %2, %4 : vector<16x128xf32>
    %cst_5 = arith.constant 0.000000e+00 : f32
    %6 = vector.broadcast %cst_5 : f32 to vector<16x128xf32>
    %7 = arith.maximumf %5, %6 : vector<16x128xf32>
    %8 = arith.truncf %7 : vector<16x128xf32> to vector<16x128xbf16>
    %c0_6 = arith.constant 0 : index
    %c0_7 = arith.constant 0 : index
    %9 = vector.load %arg4[%c0_6, %c0_7] : memref<16x128xbf16, #tpu.memory_space<vmem>>, vector<16x128xbf16>
    tpu.vector_store %arg4[%c0_6, %c0_7], %8 {strides = array<i32>} : memref<16x128xbf16, #tpu.memory_space<vmem>>, vector<16x128xbf16>,
    return
  }
  func.func @transform_0(%arg0: i32) -> (i32, i32) {
    %c0_i32 = arith.constant 0 : i32
    %c0_i32_0 = arith.constant 0 : i32
    return %arg0, %c0_i32 : i32, i32
  }
  func.func @transform_1(%arg0: i32) -> (i32, i32) {
    %c0_i32 = arith.constant 0 : i32
    %c0_i32_0 = arith.constant 0 : i32
    %c0_i32_1 = arith.constant 0 : i32
    return %c0_i32, %c0_i32_0 : i32, i32
  }
  func.func @transform_2(%arg0: i32) -> (i32, i32) {
    %c0_i32 = arith.constant 0 : i32
    %c0_i32_0 = arith.constant 0 : i32
    %c0_i32_1 = arith.constant 0 : i32
    return %c0_i32, %c0_i32_0 : i32, i32
  }
  func.func @transform_3(%arg0: i32) -> (i32, i32) {
    %c0_i32 = arith.constant 0 : i32
    %c0_i32_0 = arith.constant 0 : i32
    return %arg0, %c0_i32 : i32, i32
  }
}

module attributes {stable_mosaic.version = 11 : i64} {
  func.func @_matmul_bias_act_kernel(%arg0: i32, %arg1: memref<16x1152xbf16, #tpu.memory_space<vmem>>, %arg2: memref<1152x128xbf16, #tpu.memory_space<vmem>>, %arg3: memref<1x128xf32, #tpu.memory_space<vmem>>, %arg4: memref<16x128xbf16, #tpu.memory_space<vmem>>) attributes {dimension_semantics = [#tpu.dimension_semantics<parallel>], iteration_bounds = array<i64: 1>, scalar_prefetch = 0 : i64, scratch_operands = 0 : i64, tpu.core_type = #tpu.core_type<tc>, window_params = [{transform_indices = @transform_0, window_bounds = array<i64: 16, 1152>}, {pipeline_mode = #tpu.pipeline_mode<synchronous>, transform_indices = @transform_1, window_bounds = array<i64: 1152, 128>}, {pipeline_mode = #tpu.pipeline_mode<synchronous>, transform_indices = @transform_2, window_bounds = array<i64: 1, 128>}, {transform_indices = @transform_3, window_bounds = array<i64: 16, 128>}]} {
    %c0 = arith.constant 0 : index
    %c0_0 = arith.constant 0 : index
    %0 = vector.load %arg1[%c0, %c0_0] : memref<16x1152xbf16, #tpu.memory_space<vmem>>, vector<16x1152xbf16>
    %c0_1 = arith.constant 0 : index
    %c0_2 = arith.constant 0 : index
    %1 = vector.load %arg2[%c0_1, %c0_2] : memref<1152x128xbf16, #tpu.memory_space<vmem>>, vector<1152x128xbf16>
    %cst = arith.constant dense<0.000000e+00> : vector<16x128xf32>
    %2 = tpu.matmul %0, %1, %cst {dimension_numbers = #tpu.dot_dimension_numbers<[1], [0], [0], [1], [0, 0, 1, 1], [], []>} : vector<16x1152xbf16>, vector<1152x128xbf16>, vector<16x128xf32> -> vector<16x128xf32>
    %c0_3 = arith.constant 0 : index
    %c0_4 = arith.constant 0 : index
    %3 = vector.load %arg3[%c0_3, %c0_4] : memref<1x128xf32, #tpu.memory_space<vmem>>, vector<1x128xf32>
    %4 = vector.broadcast %3 : vector<1x128xf32> to vector<16x128xf32>
    %5 = arith.addf %2, %4 : vector<16x128xf32>
    %cst_5 = arith.constant 0.000000e+00 : f32
    %6 = vector.broadcast %cst_5 : f32 to vector<16x128xf32>
    %7 = arith.maximumf %5, %6 : vector<16x128xf32>
    %8 = arith.truncf %7 : vector<16x128xf32> to vector<16x128xbf16>
    %c0_6 = arith.constant 0 : index
    %c0_7 = arith.constant 0 : index
    %9 = vector.load %arg4[%c0_6, %c0_7] : memref<16x128xbf16, #tpu.memory_space<vmem>>, vector<16x128xbf16>
    tpu.vector_store %arg4[%c0_6, %c0_7], %8 {strides = array<i32>} : memref<16x128xbf16, #tpu.memory_space<vmem>>, vector<16x128xbf16>,
    return
  }
  func.func @transform_0(%arg0: i32) -> (i32, i32) {
    %c0_i32 = arith.constant 0 : i32
    %c0_i32_0 = arith.constant 0 : i32
    return %arg0, %c0_i32 : i32, i32
  }
  func.func @transform_1(%arg0: i32) -> (i32, i32) {
    %c0_i32 = arith.constant 0 : i32
    %c0_i32_0 = arith.constant 0 : i32
    %c0_i32_1 = arith.constant 0 : i32
    return %c0_i32, %c0_i32_0 : i32, i32
  }
  func.func @transform_2(%arg0: i32) -> (i32, i32) {
    %c0_i32 = arith.constant 0 : i32
    %c0_i32_0 = arith.constant 0 : i32
    %c0_i32_1 = arith.constant 0 : i32
    return %c0_i32, %c0_i32_0 : i32, i32
  }
  func.func @transform_3(%arg0: i32) -> (i32, i32) {
    %c0_i32 = arith.constant 0 : i32
    %c0_i32_0 = arith.constant 0 : i32
    return %arg0, %c0_i32 : i32, i32
  }
}

module attributes {stable_mosaic.version = 11 : i64} {
  func.func @_avgpool_kernel(%arg0: i32, %arg1: i32, %arg2: memref<8x16x128xbf16, #tpu.memory_space<vmem>>, %arg3: memref<8x128xf32, #tpu.memory_space<vmem>>) attributes {dimension_semantics = [#tpu.dimension_semantics<parallel>, #tpu.dimension_semantics<arbitrary>], iteration_bounds = array<i64: 1, 1>, scalar_prefetch = 0 : i64, scratch_operands = 0 : i64, tpu.core_type = #tpu.core_type<tc>, window_params = [{transform_indices = @transform_0, window_bounds = array<i64: 8, 16, 128>}, {transform_indices = @transform_1, window_bounds = array<i64: 8, 128>}]} {
    %c0_i32 = arith.constant 0 : i32
    %0 = arith.cmpi eq, %arg1, %c0_i32 : i32
    %1 = arith.extui %0 : i1 to i32
    %c0_i32_0 = arith.constant 0 : i32
    %2 = arith.cmpi ne, %1, %c0_i32_0 : i32
    scf.if %2 {
      %cst_9 = arith.constant 0.000000e+00 : f32
      %12 = vector.broadcast %cst_9 : f32 to vector<8x128xf32>
      %c0_10 = arith.constant 0 : index
      %c0_11 = arith.constant 0 : index
      %13 = vector.load %arg3[%c0_10, %c0_11] : memref<8x128xf32, #tpu.memory_space<vmem>>, vector<8x128xf32>
      tpu.vector_store %arg3[%c0_10, %c0_11], %12 {strides = array<i32>} : memref<8x128xf32, #tpu.memory_space<vmem>>, vector<8x128xf32>,
    } else {
    }
    %c0 = arith.constant 0 : index
    %c0_1 = arith.constant 0 : index
    %3 = vector.load %arg3[%c0, %c0_1] : memref<8x128xf32, #tpu.memory_space<vmem>>, vector<8x128xf32>
    %c0_2 = arith.constant 0 : index
    %c0_3 = arith.constant 0 : index
    %c0_4 = arith.constant 0 : index
    %4 = vector.load %arg2[%c0_2, %c0_3, %c0_4] : memref<8x16x128xbf16, #tpu.memory_space<vmem>>, vector<8x16x128xbf16>
    %5 = arith.extf %4 : vector<8x16x128xbf16> to vector<8x16x128xf32>
    %cst = arith.constant dense<0.000000e+00> : vector<8x128xf32>
    %6 = vector.multi_reduction <add>, %5, %cst [1] : vector<8x16x128xf32> to vector<8x128xf32>
    %7 = arith.addf %3, %6 : vector<8x128xf32>
    %c0_5 = arith.constant 0 : index
    %c0_6 = arith.constant 0 : index
    %8 = vector.load %arg3[%c0_5, %c0_6] : memref<8x128xf32, #tpu.memory_space<vmem>>, vector<8x128xf32>
    tpu.vector_store %arg3[%c0_5, %c0_6], %7 {strides = array<i32>} : memref<8x128xf32, #tpu.memory_space<vmem>>, vector<8x128xf32>,
    %c0_i32_7 = arith.constant 0 : i32
    %9 = arith.cmpi eq, %arg1, %c0_i32_7 : i32
    %10 = arith.extui %9 : i1 to i32
    %c0_i32_8 = arith.constant 0 : i32
    %11 = arith.cmpi ne, %10, %c0_i32_8 : i32
    scf.if %11 {
      %c0_9 = arith.constant 0 : index
      %c0_10 = arith.constant 0 : index
      %12 = vector.load %arg3[%c0_9, %c0_10] : memref<8x128xf32, #tpu.memory_space<vmem>>, vector<8x128xf32>
      %cst_11 = arith.constant 2.500000e-01 : f32
      %13 = vector.broadcast %cst_11 : f32 to vector<8x128xf32>
      %14 = arith.mulf %12, %13 : vector<8x128xf32>
      %c0_12 = arith.constant 0 : index
      %c0_13 = arith.constant 0 : index
      %15 = vector.load %arg3[%c0_12, %c0_13] : memref<8x128xf32, #tpu.memory_space<vmem>>, vector<8x128xf32>
      tpu.vector_store %arg3[%c0_12, %c0_13], %14 {strides = array<i32>} : memref<8x128xf32, #tpu.memory_space<vmem>>, vector<8x128xf32>,
    } else {
    }
    return
  }
  func.func @transform_0(%arg0: i32, %arg1: i32) -> (i32, i32, i32) {
    %c0_i32 = arith.constant 0 : i32
    %c0_i32_0 = arith.constant 0 : i32
    return %arg0, %arg1, %c0_i32 : i32, i32, i32
  }
  func.func @transform_1(%arg0: i32, %arg1: i32) -> (i32, i32) {
    %c0_i32 = arith.constant 0 : i32
    %c0_i32_0 = arith.constant 0 : i32
    return %arg0, %c0_i32 : i32, i32
  }
}

module attributes {stable_mosaic.version = 11 : i64} {
  func.func @_matmul_bias_act_kernel(%arg0: i32, %arg1: memref<16x128xbf16, #tpu.memory_space<vmem>>, %arg2: memref<128x128xbf16, #tpu.memory_space<vmem>>, %arg3: memref<1x128xf32, #tpu.memory_space<vmem>>, %arg4: memref<16x128xf32, #tpu.memory_space<vmem>>) attributes {dimension_semantics = [#tpu.dimension_semantics<parallel>], iteration_bounds = array<i64: 1>, scalar_prefetch = 0 : i64, scratch_operands = 0 : i64, tpu.core_type = #tpu.core_type<tc>, window_params = [{transform_indices = @transform_0, window_bounds = array<i64: 16, 128>}, {pipeline_mode = #tpu.pipeline_mode<synchronous>, transform_indices = @transform_1, window_bounds = array<i64: 128, 128>}, {pipeline_mode = #tpu.pipeline_mode<synchronous>, transform_indices = @transform_2, window_bounds = array<i64: 1, 128>}, {transform_indices = @transform_3, window_bounds = array<i64: 16, 128>}]} {
    %c0 = arith.constant 0 : index
    %c0_0 = arith.constant 0 : index
    %0 = vector.load %arg1[%c0, %c0_0] : memref<16x128xbf16, #tpu.memory_space<vmem>>, vector<16x128xbf16>
    %c0_1 = arith.constant 0 : index
    %c0_2 = arith.constant 0 : index
    %1 = vector.load %arg2[%c0_1, %c0_2] : memref<128x128xbf16, #tpu.memory_space<vmem>>, vector<128x128xbf16>
    %cst = arith.constant dense<0.000000e+00> : vector<16x128xf32>
    %2 = tpu.matmul %0, %1, %cst {dimension_numbers = #tpu.dot_dimension_numbers<[1], [0], [0], [1], [0, 0, 1, 1], [], []>} : vector<16x128xbf16>, vector<128x128xbf16>, vector<16x128xf32> -> vector<16x128xf32>
    %c0_3 = arith.constant 0 : index
    %c0_4 = arith.constant 0 : index
    %3 = vector.load %arg3[%c0_3, %c0_4] : memref<1x128xf32, #tpu.memory_space<vmem>>, vector<1x128xf32>
    %4 = vector.broadcast %3 : vector<1x128xf32> to vector<16x128xf32>
    %5 = arith.addf %2, %4 : vector<16x128xf32>
    %c0_5 = arith.constant 0 : index
    %c0_6 = arith.constant 0 : index
    %6 = vector.load %arg4[%c0_5, %c0_6] : memref<16x128xf32, #tpu.memory_space<vmem>>, vector<16x128xf32>
    tpu.vector_store %arg4[%c0_5, %c0_6], %5 {strides = array<i32>} : memref<16x128xf32, #tpu.memory_space<vmem>>, vector<16x128xf32>,
    return
  }
  func.func @transform_0(%arg0: i32) -> (i32, i32) {
    %c0_i32 = arith.constant 0 : i32
    %c0_i32_0 = arith.constant 0 : i32
    return %arg0, %c0_i32 : i32, i32
  }
  func.func @transform_1(%arg0: i32) -> (i32, i32) {
    %c0_i32 = arith.constant 0 : i32
    %c0_i32_0 = arith.constant 0 : i32
    %c0_i32_1 = arith.constant 0 : i32
    return %c0_i32, %c0_i32_0 : i32, i32
  }
  func.func @transform_2(%arg0: i32) -> (i32, i32) {
    %c0_i32 = arith.constant 0 : i32
    %c0_i32_0 = arith.constant 0 : i32
    %c0_i32_1 = arith.constant 0 : i32
    return %c0_i32, %c0_i32_0 : i32, i32
  }
  func.func @transform_3(%arg0: i32) -> (i32, i32) {
    %c0_i32 = arith.constant 0 : i32
    %c0_i32_0 = arith.constant 0 : i32
    return %arg0, %c0_i32 : i32, i32
  }
}

</mosaic_0001>

<llo_original>
// kernel: cnn_classifier_forward.10
$region0: #{cnn_classifier_forward.10}
  #allocation0 [shape = 'u32[]', space=smem, size = 0x4, offset = 0x4, fixed_abs, tag = 'smem constant byte address 0x4 - core index']
  #allocation1 [shape = 'u32[144,128]{1,0:T(1,128)}', space=vmem, size = 0x12000, scoped, tag = 'internal scratch']
  %s0 = inlined_call_operand.vmem [shape: bf16[2048,256], index: 0, kind: input, shape index: {}]
  %s1 = inlined_call_operand.vmem [shape: bf16[256,128], index: 1, kind: input, shape index: {}]
  %s2 = inlined_call_operand.vmem [shape: f32[1,128], index: 2, kind: input, shape index: {}]
  %s3 = inlined_call_operand.vmem [shape: bf16[2048,128], index: 3, kind: output, shape index: {}]
  %s4 = sld [smem:[#allocation0]]
  $region45: #{cnn_classifier_forward.10} parent=0
    _
  %s6 = ssub.s32 1, %s4
  %s7 = scalar_select 0, %s6, %s4
  loop: start=0, step=1, limit=6
  $region2: #{cnn_classifier_forward.10} parent=0 // loop_pre_header
    _
  $region3: #{cnn_classifier_forward.10} parent=0 // loop_header
    %s9 = sphi 0, %s13
    %p10 = scmp.ge.s32.totalorder %s9, 6
    %s19 = sphi 0, %s21
    %s22 = sphi 0, %s19
    %s23 = sphi 0, %s22
    %s39 = sphi 0, %s23
    %s43 = sphi 0, %s43
    %s45 = sphi 0, %s43
    %s46 = sphi 0, %s45
    %s60 = sphi 0, %s46
    %s64 = sphi 0, %s64
    %s66 = sphi 0, %s64
    %s67 = sphi 0, %s66
    %s81 = sphi 0, %s67
    %s87 = sphi 0, %s89
    %s90 = sphi 0, %s87
    %s91 = sphi 0, %s90
    %s107 = sphi 0, %s91
  $region4: #{cnn_classifier_forward.10} parent=0 // loop_header_branch
    %12 = sbr.rel (%p10) target = $region8
  $region5: #{cnn_classifier_forward.10} parent=0 // loop_body
    %s14 = ssub.s32 %s9, 1
    %s15 = ssub.s32 %s9, 2
    %s16 = sadd.s32 %s9, 1
    %s17 = ssub.s32 %s9, %s16
    %p18 = scmp.eq.s32.totalorder %s17, 0
    %s20 = sadd.s32 %s19, 1
    %s21 = scalar_select %p18, %s19, %s20
    %p24 = pneg %p18
    %p25 = scmp.eq.s32.totalorder %s9, 3
    %p26 = por %p24, %p25
    %p27 = scmp.ne.s32.totalorder %s19, %s22
    %p28 = scmp.eq.s32.totalorder %s9, 0
    %p29 = por %p27, %p28
    %p30 = scmp.ne.s32.totalorder %s19, %s22
    %p31 = scmp.eq.s32.totalorder %s14, 3
    %p32 = por %p30, %p31
    %p33 = scmp.ne.s32.totalorder %s22, %s23
    %p34 = scmp.eq.s32.totalorder %s14, 0
    %p35 = por %p33, %p34
    %p36 = scmp.ne.s32.totalorder %s22, %s23
    %p37 = scmp.eq.s32.totalorder %s15, 3
    %p38 = por %p36, %p37
    %p40 = scmp.ne.s32.totalorder %s23, %s39
    %p41 = scmp.eq.s32.totalorder %s15, 0
    %p42 = por %p40, %p41
    %s44 = sadd.s32 %s43, 1
    %p47 = scmp.eq.s32.totalorder %s9, 3
    %p48 = scmp.ne.s32.totalorder %s43, %s45
    %p49 = scmp.eq.s32.totalorder %s9, 0
    %p50 = por %p48, %p49
    %p51 = scmp.ne.s32.totalorder %s43, %s45
    %p52 = scmp.eq.s32.totalorder %s14, 3
    %p53 = por %p51, %p52
    %p54 = scmp.ne.s32.totalorder %s45, %s46
    %p55 = scmp.eq.s32.totalorder %s14, 0
    %p56 = por %p54, %p55
    %p57 = scmp.ne.s32.totalorder %s45, %s46
    %p58 = scmp.eq.s32.totalorder %s15, 3
    %p59 = por %p57, %p58
    %p61 = scmp.ne.s32.totalorder %s46, %s60
    %p62 = scmp.eq.s32.totalorder %s15, 0
    %p63 = por %p61, %p62
    %s65 = sadd.s32 %s64, 1
    %p68 = scmp.eq.s32.totalorder %s9, 3
    %p69 = scmp.ne.s32.totalorder %s64, %s66
    %p70 = scmp.eq.s32.totalorder %s9, 0
    %p71 = por %p69, %p70
    %p72 = scmp.ne.s32.totalorder %s64, %s66
    %p73 = scmp.eq.s32.totalorder %s14, 3
    %p74 = por %p72, %p73
    %p75 = scmp.ne.s32.totalorder %s66, %s67
    %p76 = scmp.eq.s32.totalorder %s14, 0
    %p77 = por %p75, %p76
    %p78 = scmp.ne.s32.totalorder %s66, %s67
    %p79 = scmp.eq.s32.totalorder %s15, 3
    %p80 = por %p78, %p79
    %p82 = scmp.ne.s32.totalorder %s67, %s81
    %p83 = scmp.eq.s32.totalorder %s15, 0
    %p84 = por %p82, %p83
    %s85 = ssub.s32 %s9, %s16
    %p86 = scmp.eq.s32.totalorder %s85, 0
    %s88 = sadd.s32 %s87, 1
    %s89 = scalar_select %p86, %s87, %s88
    %p92 = pneg %p86
    %p93 = scmp.eq.s32.totalorder %s9, 3
    %p94 = por %p92, %p93
    %p95 = scmp.ne.s32.totalorder %s87, %s90
    %p96 = scmp.eq.s32.totalorder %s9, 0
    %p97 = por %p95, %p96
    %p98 = scmp.ne.s32.totalorder %s87, %s90
    %p99 = scmp.eq.s32.totalorder %s14, 3
    %p100 = por %p98, %p99
    %p101 = scmp.ne.s32.totalorder %s90, %s91
    %p102 = scmp.eq.s32.totalorder %s14, 0
    %p103 = por %p101, %p102
    %p104 = scmp.ne.s32.totalorder %s90, %s91
    %p105 = scmp.eq.s32.totalorder %s15, 3
    %p106 = por %p104, %p105
    %p108 = scmp.ne.s32.totalorder %s91, %s107
    %p109 = scmp.eq.s32.totalorder %s15, 0
    %p110 = por %p108, %p109
    %p111 = scmp.le.s32.totalorder 1, %s9
    %p112 = scmp.lt.s32.totalorder %s9, 5
    %p113 = pnand %p111, %p112
    %p114 = pneg %p113
    // Predicated region
    $region9: #{cnn_classifier_forward.10} parent=5 // pred_check
      _
    $region10: #{cnn_classifier_forward.10} parent=5 // pred_check_branch
      %116 = sbr.rel (%p113) target = $region12
    $region11: #{cnn_classifier_forward.10} parent=5 // pred_region
      %s117 = ssub.s32 %s9, 1
      // Predicated region
      $region13: #{cnn_classifier_forward.10} parent=11 // pred_check
        %p118 = pneg %p56
      $region14: #{cnn_classifier_forward.10} parent=11 // pred_check_branch
        %120 = sbr.rel (%p118) target = $region16
      $region15: #{cnn_classifier_forward.10} parent=11 // pred_region
        _
      $region16: #{cnn_classifier_forward.10} parent=11 // pred_fallthru
        _
      // Predicated region
      $region17: #{cnn_classifier_forward.10} parent=11 // pred_check
        %p121 = pneg %p77
      $region18: #{cnn_classifier_forward.10} parent=11 // pred_check_branch
        %123 = sbr.rel (%p121) target = $region20
      $region19: #{cnn_classifier_forward.10} parent=11 // pred_region
        _
      $region20: #{cnn_classifier_forward.10} parent=11 // pred_fallthru
        _
    $region12: #{cnn_classifier_forward.10} parent=5 // pred_fallthru
      _
    %p124 = scmp.lt.s32.totalorder %s9, 4
    // Predicated region
    $region21: #{cnn_classifier_forward.10} parent=5 // pred_check
      %p125 = pneg %p124
    $region22: #{cnn_classifier_forward.10} parent=5 // pred_check_branch
      %127 = sbr.rel (%p125) target = $region24
    $region23: #{cnn_classifier_forward.10} parent=5 // pred_region
      // Predicated region
      $region25: #{cnn_classifier_forward.10} parent=23 // pred_check
        %p128 = pneg %p29
      $region26: #{cnn_classifier_forward.10} parent=23 // pred_check_branch
        %130 = sbr.rel (%p128) target = $region28
      $region27: #{cnn_classifier_forward.10} parent=23 // pred_region
        %s131 = smul.u32 64, %s9
        %p132 = scmp.lt.s32.totalorder %s131, 255
        %s133 = scalar_select %p132, %s131, 255
        %s134 = smul.addr %s133, 2
        %s135 = smul.addr %s134, 4
        %s136 = scalar_lea.vmem %s0, %s135
        %s137 = smul.u32 64, %s9
      $region28: #{cnn_classifier_forward.10} parent=23 // pred_fallthru
        _
    $region24: #{cnn_classifier_forward.10} parent=5 // pred_fallthru
      _
    %p138 = scmp.le.s32.totalorder 1, %s9
    %p139 = scmp.lt.s32.totalorder %s9, 5
    %p140 = pnand %p138, %p139
    %p141 = pneg %p140
    // Predicated region
    $region29: #{cnn_classifier_forward.10} parent=5 // pred_check
      _
    $region30: #{cnn_classifier_forward.10} parent=5 // pred_check_branch
      %143 = sbr.rel (%p140) target = $region32
    $region31: #{cnn_classifier_forward.10} parent=5 // pred_region
      %s144 = ssub.s32 %s9, 1
      %s145 = smul.u32 64, %s14
      %p146 = scmp.lt.s32.totalorder %s145, 255
      %s147 = scalar_select %p146, %s145, 255
      %s148 = smul.addr %s147, 2
      %s149 = smul.addr %s148, 4
      %s150 = scalar_lea.vmem %s0, %s149
      %p151 = pneg %p35
      %p152 = pneg %p32
      %p153 = pneg %p56
      %p154 = pneg %p53
      %p155 = pneg %p77
      %p156 = pneg %p74
      %p157 = pneg %p103
      %p158 = pneg %p100
      %s159 = smul.u32 64, %s14
      %p160 = scmp.lt.s32.totalorder %s159, 255
      %s161 = scalar_select %p160, %s159, 255
      %s162 = smul.addr %s161, 4
      %s163 = scalar_lea.vmem %s3, %s162
      %s164 = smul.u32 64, %s14
      %p165 = scmp.lt.s32.totalorder %s164, 255
      %s166 = scalar_select %p165, %s164, 255
      %s167 = smul.addr %s166, 2
      %s168 = smul.addr %s167, 4
      %s169 = scalar_lea.vmem %s0, %s168
      %s170 = smul.u32 64, %s14
      %s171 = smul.u32 64, %s14
      %p172 = scmp.lt.s32.totalorder %s171, 255
      %s173 = scalar_select %p172, %s171, 255
      %s174 = smul.addr %s173, 4
      %s175 = scalar_lea.vmem %s3, %s174
      %s176 = smul.u32 64, %s14
      %v178 = vld [vmem:[%s169] sm:$0xff]
      %v179 = vld [vmem:[%s169 + $0x8] sm:$0xff]
      %v180 = vld [vmem:[%s169 + $0x10] sm:$0xff]
      %v181 = vld [vmem:[%s169 + $0x18] sm:$0xff]
      %v182 = vld [vmem:[%s169 + $0x20] sm:$0xff]
      %v183 = vld [vmem:[%s169 + $0x28] sm:$0xff]
      %v184 = vld [vmem:[%s169 + $0x30] sm:$0xff]
      %v185 = vld [vmem:[%s169 + $0x38] sm:$0xff]
      %v186 = vld [vmem:[%s169 + $0x40] sm:$0xff]
      %v187 = vld [vmem:[%s169 + $0x48] sm:$0xff]
      %v188 = vld [vmem:[%s169 + $0x50] sm:$0xff]
      %v189 = vld [vmem:[%s169 + $0x58] sm:$0xff]
      %v190 = vld [vmem:[%s169 + $0x60] sm:$0xff]
      %v191 = vld [vmem:[%s169 + $0x68] sm:$0xff]
      %v192 = vld [vmem:[%s169 + $0x70] sm:$0xff]
      %v193 = vld [vmem:[%s169 + $0x78] sm:$0xff]
      %v194 = vld [vmem:[%s169 + $0x80] sm:$0xff]
      %v195 = vld [vmem:[%s169 + $0x88] sm:$0xff]
      %v196 = vld [vmem:[%s169 + $0x90] sm:$0xff]
      %v197 = vld [vmem:[%s169 + $0x98] sm:$0xff]
      %v198 = vld [vmem:[%s169 + $0xa0] sm:$0xff]
      %v199 = vld [vmem:[%s169 + $0xa8] sm:$0xff]
      %v200 = vld [vmem:[%s169 + $0xb0] sm:$0xff]
      %v201 = vld [vmem:[%s169 + $0xb8] sm:$0xff]
      %v202 = vld [vmem:[%s169 + $0xc0] sm:$0xff]
      %v203 = vld [vmem:[%s169 + $0xc8] sm:$0xff]
      %v204 = vld [vmem:[%s169 + $0xd0] sm:$0xff]
      %v205 = vld [vmem:[%s169 + $0xd8] sm:$0xff]
      %v206 = vld [vmem:[%s169 + $0xe0] sm:$0xff]
      %v207 = vld [vmem:[%s169 + $0xe8] sm:$0xff]
      %v208 = vld [vmem:[%s169 + $0xf0] sm:$0xff]
      %v209 = vld [vmem:[%s169 + $0xf8] sm:$0xff]
      %v210 = vld [vmem:[%s169 + $0x100] sm:$0xff]
      %v211 = vld [vmem:[%s169 + $0x108] sm:$0xff]
      %v212 = vld [vmem:[%s169 + $0x110] sm:$0xff]
      %v213 = vld [vmem:[%s169 + $0x118] sm:$0xff]
      %v214 = vld [vmem:[%s169 + $0x120] sm:$0xff]
      %v215 = vld [vmem:[%s169 + $0x128] sm:$0xff]
      %v216 = vld [vmem:[%s169 + $0x130] sm:$0xff]
      %v217 = vld [vmem:[%s169 + $0x138] sm:$0xff]
      %v218 = vld [vmem:[%s169 + $0x140] sm:$0xff]
      %v219 = vld [vmem:[%s169 + $0x148] sm:$0xff]
      %v220 = vld [vmem:[%s169 + $0x150] sm:$0xff]
      %v221 = vld [vmem:[%s169 + $0x158] sm:$0xff]
      %v222 = vld [vmem:[%s169 + $0x160] sm:$0xff]
      %v223 = vld [vmem:[%s169 + $0x168] sm:$0xff]
      %v224 = vld [vmem:[%s169 + $0x170] sm:$0xff]
      %v225 = vld [vmem:[%s169 + $0x178] sm:$0xff]
      %v226 = vld [vmem:[%s169 + $0x180] sm:$0xff]
      %v227 = vld [vmem:[%s169 + $0x188] sm:$0xff]
      %v228 = vld [vmem:[%s169 + $0x190] sm:$0xff]
      %v229 = vld [vmem:[%s169 + $0x198] sm:$0xff]
      %v230 = vld [vmem:[%s169 + $0x1a0] sm:$0xff]
      %v231 = vld [vmem:[%s169 + $0x1a8] sm:$0xff]
      %v232 = vld [vmem:[%s169 + $0x1b0] sm:$0xff]
      %v233 = vld [vmem:[%s169 + $0x1b8] sm:$0xff]
      %v234 = vld [vmem:[%s169 + $0x1c0] sm:$0xff]
      %v235 = vld [vmem:[%s169 + $0x1c8] sm:$0xff]
      %v236 = vld [vmem:[%s169 + $0x1d0] sm:$0xff]
      %v237 = vld [vmem:[%s169 + $0x1d8] sm:$0xff]
      %v238 = vld [vmem:[%s169 + $0x1e0] sm:$0xff]
      %v239 = vld [vmem:[%s169 + $0x1e8] sm:$0xff]
      %v240 = vld [vmem:[%s169 + $0x1f0] sm:$0xff]
      %v241 = vld [vmem:[%s169 + $0x1f8] sm:$0xff]
      %v242 = vld [vmem:[%s1] sm:$0xf]
      %v243 = vld [vmem:[%s1 + $0x4] sm:$0xf]
      %v244 = vld [vmem:[%s1 + $0x8] sm:$0xf]
      %v245 = vld [vmem:[%s1 + $0xc] sm:$0xf]
      %v246 = vld [vmem:[%s1 + $0x10] sm:$0xf]
      %v247 = vld [vmem:[%s1 + $0x14] sm:$0xf]
      %v248 = vld [vmem:[%s1 + $0x18] sm:$0xf]
      %v249 = vld [vmem:[%s1 + $0x1c] sm:$0xf]
      %v250 = vld [vmem:[%s1 + $0x20] sm:$0xf]
      %v251 = vld [vmem:[%s1 + $0x24] sm:$0xf]
      %v252 = vld [vmem:[%s1 + $0x28] sm:$0xf]
      %v253 = vld [vmem:[%s1 + $0x2c] sm:$0xf]
      %v254 = vld [vmem:[%s1 + $0x30] sm:$0xf]
      %v255 = vld [vmem:[%s1 + $0x34] sm:$0xf]
      %v256 = vld [vmem:[%s1 + $0x38] sm:$0xf]
      %v257 = vld [vmem:[%s1 + $0x3c] sm:$0xf]
      %v258 = vld [vmem:[%s1 + $0x40] sm:$0xf]
      %v259 = vld [vmem:[%s1 + $0x44] sm:$0xf]
      %v260 = vld [vmem:[%s1 + $0x48] sm:$0xf]
      %v261 = vld [vmem:[%s1 + $0x4c] sm:$0xf]
      %v262 = vld [vmem:[%s1 + $0x50] sm:$0xf]
      %v263 = vld [vmem:[%s1 + $0x54] sm:$0xf]
      %v264 = vld [vmem:[%s1 + $0x58] sm:$0xf]
      %v265 = vld [vmem:[%s1 + $0x5c] sm:$0xf]
      %v266 = vld [vmem:[%s1 + $0x60] sm:$0xf]
      %v267 = vld [vmem:[%s1 + $0x64] sm:$0xf]
      %v268 = vld [vmem:[%s1 + $0x68] sm:$0xf]
      %v269 = vld [vmem:[%s1 + $0x6c] sm:$0xf]
      %v270 = vld [vmem:[%s1 + $0x70] sm:$0xf]
      %v271 = vld [vmem:[%s1 + $0x74] sm:$0xf]
      %v272 = vld [vmem:[%s1 + $0x78] sm:$0xf]
      %v273 = vld [vmem:[%s1 + $0x7c] sm:$0xf]
      %v274 = vld [vmem:[%s2] sm:$0x1]
      %v276 = vlaneseq
      %v277 = vshrl.u32 %v276, 7
      %v278 = vsub.s32 0, %v277
      %v279 = vrot.slane %v274, %v278
      %v345 = vunpack.c.l.b16 %v178
      %v346 = vunpack.c.h.b16 %v178
      %v347 = vunpack.c.l.b16 %v179
      %v348 = vunpack.c.h.b16 %v179
      %v349 = vunpack.c.l.b16 %v180
      %v350 = vunpack.c.h.b16 %v180
      %v351 = vunpack.c.l.b16 %v181
      %v352 = vunpack.c.h.b16 %v181
      %v353 = vunpack.c.l.b16 %v182
      %v354 = vunpack.c.h.b16 %v182
      %v355 = vunpack.c.l.b16 %v183
      %v356 = vunpack.c.h.b16 %v183
      %v357 = vunpack.c.l.b16 %v184
      %v358 = vunpack.c.h.b16 %v184
      %v359 = vunpack.c.l.b16 %v185
      %v360 = vunpack.c.h.b16 %v185
      %v361 = vunpack.c.l.b16 %v186
      %v362 = vunpack.c.h.b16 %v186
      %v363 = vunpack.c.l.b16 %v187
      %v364 = vunpack.c.h.b16 %v187
      %v365 = vunpack.c.l.b16 %v188
      %v366 = vunpack.c.h.b16 %v188
      %v367 = vunpack.c.l.b16 %v189
      %v368 = vunpack.c.h.b16 %v189
      %v369 = vunpack.c.l.b16 %v190
      %v370 = vunpack.c.h.b16 %v190
      %v371 = vunpack.c.l.b16 %v191
      %v372 = vunpack.c.h.b16 %v191
      %v373 = vunpack.c.l.b16 %v192
      %v374 = vunpack.c.h.b16 %v192
      %v375 = vunpack.c.l.b16 %v193
      %v376 = vunpack.c.h.b16 %v193
      %v377 = vunpack.c.l.b16 %v194
      %v378 = vunpack.c.h.b16 %v194
      %v379 = vunpack.c.l.b16 %v195
      %v380 = vunpack.c.h.b16 %v195
      %v381 = vunpack.c.l.b16 %v196
      %v382 = vunpack.c.h.b16 %v196
      %v383 = vunpack.c.l.b16 %v197
      %v384 = vunpack.c.h.b16 %v197
      %v385 = vunpack.c.l.b16 %v198
      %v386 = vunpack.c.h.b16 %v198
      %v387 = vunpack.c.l.b16 %v199
      %v388 = vunpack.c.h.b16 %v199
      %v389 = vunpack.c.l.b16 %v200
      %v390 = vunpack.c.h.b16 %v200
      %v391 = vunpack.c.l.b16 %v201
      %v392 = vunpack.c.h.b16 %v201
      %v393 = vunpack.c.l.b16 %v202
      %v394 = vunpack.c.h.b16 %v202
      %v395 = vunpack.c.l.b16 %v203
      %v396 = vunpack.c.h.b16 %v203
      %v397 = vunpack.c.l.b16 %v204
      %v398 = vunpack.c.h.b16 %v204
      %v399 = vunpack.c.l.b16 %v205
      %v400 = vunpack.c.h.b16 %v205
      %v401 = vunpack.c.l.b16 %v206
      %v402 = vunpack.c.h.b16 %v206
      %v403 = vunpack.c.l.b16 %v207
      %v404 = vunpack.c.h.b16 %v207
      %v405 = vunpack.c.l.b16 %v208
      %v406 = vunpack.c.h.b16 %v208
      %v407 = vunpack.c.l.b16 %v209
      %v408 = vunpack.c.h.b16 %v209
      %v409 = vunpack.c.l.b16 %v210
      %v410 = vunpack.c.h.b16 %v210
      %v411 = vunpack.c.l.b16 %v211
      %v412 = vunpack.c.h.b16 %v211
      %v413 = vunpack.c.l.b16 %v212
      %v414 = vunpack.c.h.b16 %v212
      %v415 = vunpack.c.l.b16 %v213
      %v416 = vunpack.c.h.b16 %v213
      %v417 = vunpack.c.l.b16 %v214
      %v418 = vunpack.c.h.b16 %v214
      %v419 = vunpack.c.l.b16 %v215
      %v420 = vunpack.c.h.b16 %v215
      %v421 = vunpack.c.l.b16 %v216
      %v422 = vunpack.c.h.b16 %v216
      %v423 = vunpack.c.l.b16 %v217
      %v424 = vunpack.c.h.b16 %v217
      %v425 = vunpack.c.l.b16 %v218
      %v426 = vunpack.c.h.b16 %v218
      %v427 = vunpack.c.l.b16 %v219
      %v428 = vunpack.c.h.b16 %v219
      %v429 = vunpack.c.l.b16 %v220
      %v430 = vunpack.c.h.b16 %v220
      %v431 = vunpack.c.l.b16 %v221
      %v432 = vunpack.c.h.b16 %v221
      %v433 = vunpack.c.l.b16 %v222
      %v434 = vunpack.c.h.b16 %v222
      %v435 = vunpack.c.l.b16 %v223
      %v436 = vunpack.c.h.b16 %v223
      %v437 = vunpack.c.l.b16 %v224
      %v438 = vunpack.c.h.b16 %v224
      %v439 = vunpack.c.l.b16 %v225
      %v440 = vunpack.c.h.b16 %v225
      %v441 = vunpack.c.l.b16 %v226
      %v442 = vunpack.c.h.b16 %v226
      %v443 = vunpack.c.l.b16 %v227
      %v444 = vunpack.c.h.b16 %v227
      %v445 = vunpack.c.l.b16 %v228
      %v446 = vunpack.c.h.b16 %v228
      %v447 = vunpack.c.l.b16 %v229
      %v448 = vunpack.c.h.b16 %v229
      %v449 = vunpack.c.l.b16 %v230
      %v450 = vunpack.c.h.b16 %v230
      %v451 = vunpack.c.l.b16 %v231
      %v452 = vunpack.c.h.b16 %v231
      %v453 = vunpack.c.l.b16 %v232
      %v454 = vunpack.c.h.b16 %v232
      %v455 = vunpack.c.l.b16 %v233
      %v456 = vunpack.c.h.b16 %v233
      %v457 = vunpack.c.l.b16 %v234
      %v458 = vunpack.c.h.b16 %v234
      %v459 = vunpack.c.l.b16 %v235
      %v460 = vunpack.c.h.b16 %v235
      %v461 = vunpack.c.l.b16 %v236
      %v462 = vunpack.c.h.b16 %v236
      %v463 = vunpack.c.l.b16 %v237
      %v464 = vunpack.c.h.b16 %v237
      %v465 = vunpack.c.l.b16 %v238
      %v466 = vunpack.c.h.b16 %v238
      %v467 = vunpack.c.l.b16 %v239
      %v468 = vunpack.c.h.b16 %v239
      %v469 = vunpack.c.l.b16 %v240
      %v470 = vunpack.c.h.b16 %v240
      %v471 = vunpack.c.l.b16 %v241
      %v472 = vunpack.c.h.b16 %v241
      %v473 = vpack.c.b16 %v347, %v345
      %v474 = vpack.c.b16 %v348, %v346
      %v475 = vpack.c.b16 %v351, %v349
      %v476 = vpack.c.b16 %v352, %v350
      %v477 = vpack.c.b16 %v355, %v353
      %v478 = vpack.c.b16 %v356, %v354
      %v479 = vpack.c.b16 %v359, %v357
      %v480 = vpack.c.b16 %v360, %v358
      %v481 = vpack.c.b16 %v363, %v361
      %v482 = vpack.c.b16 %v364, %v362
      %v483 = vpack.c.b16 %v367, %v365
      %v484 = vpack.c.b16 %v368, %v366
      %v485 = vpack.c.b16 %v371, %v369
      %v486 = vpack.c.b16 %v372, %v370
      %v487 = vpack.c.b16 %v375, %v373
      %v488 = vpack.c.b16 %v376, %v374
      %v489 = vpack.c.b16 %v379, %v377
      %v490 = vpack.c.b16 %v380, %v378
      %v491 = vpack.c.b16 %v383, %v381
      %v492 = vpack.c.b16 %v384, %v382
      %v493 = vpack.c.b16 %v387, %v385
      %v494 = vpack.c.b16 %v388, %v386
      %v495 = vpack.c.b16 %v391, %v389
      %v496 = vpack.c.b16 %v392, %v390
      %v497 = vpack.c.b16 %v395, %v393
      %v498 = vpack.c.b16 %v396, %v394
      %v499 = vpack.c.b16 %v399, %v397
      %v500 = vpack.c.b16 %v400, %v398
      %v501 = vpack.c.b16 %v403, %v401
      %v502 = vpack.c.b16 %v404, %v402
      %v503 = vpack.c.b16 %v407, %v405
      %v504 = vpack.c.b16 %v408, %v406
      %v505 = vpack.c.b16 %v411, %v409
      %v506 = vpack.c.b16 %v412, %v410
      %v507 = vpack.c.b16 %v415, %v413
      %v508 = vpack.c.b16 %v416, %v414
      %v509 = vpack.c.b16 %v419, %v417
      %v510 = vpack.c.b16 %v420, %v418
      %v511 = vpack.c.b16 %v423, %v421
      %v512 = vpack.c.b16 %v424, %v422
      %v513 = vpack.c.b16 %v427, %v425
      %v514 = vpack.c.b16 %v428, %v426
      %v515 = vpack.c.b16 %v431, %v429
      %v516 = vpack.c.b16 %v432, %v430
      %v517 = vpack.c.b16 %v435, %v433
      %v518 = vpack.c.b16 %v436, %v434
      %v519 = vpack.c.b16 %v439, %v437
      %v520 = vpack.c.b16 %v440, %v438
      %v521 = vpack.c.b16 %v443, %v441
      %v522 = vpack.c.b16 %v444, %v442
      %v523 = vpack.c.b16 %v447, %v445
      %v524 = vpack.c.b16 %v448, %v446
      %v525 = vpack.c.b16 %v451, %v449
      %v526 = vpack.c.b16 %v452, %v450
      %v527 = vpack.c.b16 %v455, %v453
      %v528 = vpack.c.b16 %v456, %v454
      %v529 = vpack.c.b16 %v459, %v457
      %v530 = vpack.c.b16 %v460, %v458
      %v531 = vpack.c.b16 %v463, %v461
      %v532 = vpack.c.b16 %v464, %v462
      %v533 = vpack.c.b16 %v467, %v465
      %v534 = vpack.c.b16 %v468, %v466
      %v535 = vpack.c.b16 %v471, %v469
      %v536 = vpack.c.b16 %v472, %v470
      %v633 = vunpack.c.l.b16 %v242
      %v634 = vunpack.c.l.b16 %v243
      %v635 = vunpack.c.l.b16 %v244
      %v636 = vunpack.c.l.b16 %v245
      %v637 = vunpack.c.l.b16 %v246
      %v638 = vunpack.c.l.b16 %v247
      %v639 = vunpack.c.l.b16 %v248
      %v640 = vunpack.c.l.b16 %v249
      %v641 = vunpack.c.l.b16 %v250
      %v642 = vunpack.c.l.b16 %v251
      %v643 = vunpack.c.l.b16 %v252
      %v644 = vunpack.c.l.b16 %v253
      %v645 = vunpack.c.l.b16 %v254
      %v646 = vunpack.c.l.b16 %v255
      %v647 = vunpack.c.l.b16 %v256
      %v648 = vunpack.c.l.b16 %v257
      %v649 = vunpack.c.l.b16 %v258
      %v650 = vunpack.c.l.b16 %v259
      %v651 = vunpack.c.l.b16 %v260
      %v652 = vunpack.c.l.b16 %v261
      %v653 = vunpack.c.l.b16 %v262
      %v654 = vunpack.c.l.b16 %v263
      %v655 = vunpack.c.l.b16 %v264
      %v656 = vunpack.c.l.b16 %v265
      %v657 = vunpack.c.l.b16 %v266
      %v658 = vunpack.c.l.b16 %v267
      %v659 = vunpack.c.l.b16 %v268
      %v660 = vunpack.c.l.b16 %v269
      %v661 = vunpack.c.l.b16 %v270
      %v662 = vunpack.c.l.b16 %v271
      %v663 = vunpack.c.l.b16 %v272
      %v664 = vunpack.c.l.b16 %v273
      %v665 = vpack.c.b16 %v634, %v633
      %v666 = vpack.c.b16 %v636, %v635
      %v667 = vpack.c.b16 %v638, %v637
      %v668 = vpack.c.b16 %v640, %v639
      %v669 = vpack.c.b16 %v642, %v641
      %v670 = vpack.c.b16 %v644, %v643
      %v671 = vpack.c.b16 %v646, %v645
      %v672 = vpack.c.b16 %v648, %v647
      %v673 = vpack.c.b16 %v650, %v649
      %v674 = vpack.c.b16 %v652, %v651
      %v675 = vpack.c.b16 %v654, %v653
      %v676 = vpack.c.b16 %v656, %v655
      %v677 = vpack.c.b16 %v658, %v657
      %v678 = vpack.c.b16 %v660, %v659
      %v679 = vpack.c.b16 %v662, %v661
      %v680 = vpack.c.b16 %v664, %v663
      %697 = vmatprep.subr.bf16.mxu0 0
      %698 = vmatpush1.bf16.msra.mxu0 %v672
      %699 = vmatprep.subr.bf16.mxu0 0
      %700 = vmatpush1.bf16.msra.mxu0 %v671
      %701 = vmatprep.subr.bf16.mxu0 0
      %702 = vmatpush1.bf16.msra.mxu0 %v670
      %703 = vmatprep.subr.bf16.mxu0 0
      %704 = vmatpush1.bf16.msra.mxu0 %v669
      %705 = vmatprep.subr.bf16.mxu0 0
      %706 = vmatpush1.bf16.msra.mxu0 %v668
      %707 = vmatprep.subr.bf16.mxu0 0
      %708 = vmatpush1.bf16.msra.mxu0 %v667
      %709 = vmatprep.subr.bf16.mxu0 0
      %710 = vmatpush1.bf16.msra.mxu0 %v666
      %711 = vmatprep.subr.bf16.mxu0 0
      %712 = vmatpush1.bf16.msra.mxu0 %v665
      %713 = vmatprep.subr.bf16.mxu0 0
      %714 = vmatpush2.bf16.msra.mxu0 %v680
      %715 = vmatprep.subr.bf16.mxu0 0
      %716 = vmatpush2.bf16.msra.mxu0 %v679
      %717 = vmatprep.subr.bf16.mxu0 0
      %718 = vmatpush2.bf16.msra.mxu0 %v678
      %719 = vmatprep.subr.bf16.mxu0 0
      %720 = vmatpush2.bf16.msra.mxu0 %v677
      %721 = vmatprep.subr.bf16.mxu0 0
      %722 = vmatpush2.bf16.msra.mxu0 %v676
      %723 = vmatprep.subr.bf16.mxu0 0
      %724 = vmatpush2.bf16.msra.mxu0 %v675
      %725 = vmatprep.subr.bf16.mxu0 0
      %726 = vmatpush2.bf16.msra.mxu0 %v674
      %727 = vmatprep.subr.bf16.mxu0 0
      %728 = vmatpush2.bf16.msra.mxu0 %v673
      %729 = vmatprep.mubr.bf16.mxu0 %v474
      %730 = vmatmul.mubr.bf16.gmra.mxu0 %v473
      %v731 = vpop.f32.mrf.mxu0
      %v732 = vadd.f32 %v279, %v731
      %v733 = vpop.f32.mrf.mxu0
      %v734 = vpop.f32.mrf.mxu0
      %v735 = vadd.f32 %v279, %v734
      %v736 = vpop.f32.mrf.mxu0
      %737 = vmatprep.mubr.bf16.mxu0 %v476
      %738 = vmatmul.mubr.bf16.gmra.mxu0 %v475
      %v739 = vpop.f32.mrf.mxu0
      %v740 = vadd.f32 %v279, %v739
      %v741 = vpop.f32.mrf.mxu0
      %v742 = vpop.f32.mrf.mxu0
      %v743 = vadd.f32 %v279, %v742
      %v744 = vpop.f32.mrf.mxu0
      %745 = vmatprep.mubr.bf16.mxu0 %v478
      %746 = vmatmul.mubr.bf16.gmra.mxu0 %v477
      %v747 = vpop.f32.mrf.mxu0
      %v748 = vadd.f32 %v279, %v747
      %v749 = vpop.f32.mrf.mxu0
      %v750 = vpop.f32.mrf.mxu0
      %v751 = vadd.f32 %v279, %v750
      %v752 = vpop.f32.mrf.mxu0
      %753 = vmatprep.mubr.bf16.mxu0 %v480
      %754 = vmatmul.mubr.bf16.gmra.mxu0 %v479
      %v755 = vpop.f32.mrf.mxu0
      %v756 = vadd.f32 %v279, %v755
      %v757 = vpop.f32.mrf.mxu0
      %v758 = vpop.f32.mrf.mxu0
      %v759 = vadd.f32 %v279, %v758
      %v760 = vpop.f32.mrf.mxu0
      %761 = vmatprep.mubr.bf16.mxu0 %v482
      %762 = vmatmul.mubr.bf16.gmra.mxu0 %v481
      %v763 = vpop.f32.mrf.mxu0
      %v764 = vadd.f32 %v279, %v763
      %v765 = vpop.f32.mrf.mxu0
      %v766 = vpop.f32.mrf.mxu0
      %v767 = vadd.f32 %v279, %v766
      %v768 = vpop.f32.mrf.mxu0
      %769 = vmatprep.mubr.bf16.mxu0 %v484
      %770 = vmatmul.mubr.bf16.gmra.mxu0 %v483
      %v771 = vpop.f32.mrf.mxu0
      %v772 = vadd.f32 %v279, %v771
      %v773 = vpop.f32.mrf.mxu0
      %v774 = vpop.f32.mrf.mxu0
      %v775 = vadd.f32 %v279, %v774
      %v776 = vpop.f32.mrf.mxu0
      %777 = vmatprep.mubr.bf16.mxu0 %v486
      %778 = vmatmul.mubr.bf16.gmra.mxu0 %v485
      %v779 = vpop.f32.mrf.mxu0
      %v780 = vadd.f32 %v279, %v779
      %v781 = vpop.f32.mrf.mxu0
      %v782 = vpop.f32.mrf.mxu0
      %v783 = vadd.f32 %v279, %v782
      %v784 = vpop.f32.mrf.mxu0
      %785 = vmatprep.mubr.bf16.mxu0 %v488
      %786 = vmatmul.mubr.bf16.gmra.mxu0 %v487
      %v787 = vpop.f32.mrf.mxu0
      %v788 = vadd.f32 %v279, %v787
      %v789 = vpop.f32.mrf.mxu0
      %v790 = vpop.f32.mrf.mxu0
      %v791 = vadd.f32 %v279, %v790
      %v792 = vpop.f32.mrf.mxu0
      %793 = vmatprep.mubr.bf16.mxu0 %v490
      %794 = vmatmul.mubr.bf16.gmra.mxu0 %v489
      %v795 = vpop.f32.mrf.mxu0
      %v796 = vadd.f32 %v279, %v795
      %v797 = vpop.f32.mrf.mxu0
      %v798 = vpop.f32.mrf.mxu0
      %v799 = vadd.f32 %v279, %v798
      %v800 = vpop.f32.mrf.mxu0
      %801 = vmatprep.mubr.bf16.mxu0 %v492
      %802 = vmatmul.mubr.bf16.gmra.mxu0 %v491
      %v803 = vpop.f32.mrf.mxu0
      %v804 = vadd.f32 %v279, %v803
      %v805 = vpop.f32.mrf.mxu0
      %v806 = vpop.f32.mrf.mxu0
      %v807 = vadd.f32 %v279, %v806
      %v808 = vpop.f32.mrf.mxu0
      %809 = vmatprep.mubr.bf16.mxu0 %v494
      %810 = vmatmul.mubr.bf16.gmra.mxu0 %v493
      %v811 = vpop.f32.mrf.mxu0
      %v812 = vadd.f32 %v279, %v811
      %v813 = vpop.f32.mrf.mxu0
      %v814 = vpop.f32.mrf.mxu0
      %v815 = vadd.f32 %v279, %v814
      %v816 = vpop.f32.mrf.mxu0
      %817 = vmatprep.mubr.bf16.mxu0 %v496
      %818 = vmatmul.mubr.bf16.gmra.mxu0 %v495
      %v819 = vpop.f32.mrf.mxu0
      %v820 = vadd.f32 %v279, %v819
      %v821 = vpop.f32.mrf.mxu0
      %v822 = vpop.f32.mrf.mxu0
      %v823 = vadd.f32 %v279, %v822
      %v824 = vpop.f32.mrf.mxu0
      %825 = vmatprep.mubr.bf16.mxu0 %v498
      %826 = vmatmul.mubr.bf16.gmra.mxu0 %v497
      %v827 = vpop.f32.mrf.mxu0
      %v828 = vadd.f32 %v279, %v827
      %v829 = vpop.f32.mrf.mxu0
      %v830 = vpop.f32.mrf.mxu0
      %v831 = vadd.f32 %v279, %v830
      %v832 = vpop.f32.mrf.mxu0
      %833 = vmatprep.mubr.bf16.mxu0 %v500
      %834 = vmatmul.mubr.bf16.gmra.mxu0 %v499
      %v835 = vpop.f32.mrf.mxu0
      %v836 = vadd.f32 %v279, %v835
      %v837 = vpop.f32.mrf.mxu0
      %v838 = vpop.f32.mrf.mxu0
      %v839 = vadd.f32 %v279, %v838
      %v840 = vpop.f32.mrf.mxu0
      %841 = vmatprep.mubr.bf16.mxu0 %v502
      %842 = vmatmul.mubr.bf16.gmra.mxu0 %v501
      %v843 = vpop.f32.mrf.mxu0
      %v844 = vadd.f32 %v279, %v843
      %v845 = vpop.f32.mrf.mxu0
      %v846 = vpop.f32.mrf.mxu0
      %v847 = vadd.f32 %v279, %v846
      %v848 = vpop.f32.mrf.mxu0
      %849 = vmatprep.mubr.bf16.mxu0 %v504
      %850 = vmatmul.mubr.bf16.gmra.mxu0 %v503
      %v851 = vpop.f32.mrf.mxu0
      %v852 = vadd.f32 %v279, %v851
      %v853 = vpop.f32.mrf.mxu0
      %v854 = vpop.f32.mrf.mxu0
      %v855 = vadd.f32 %v279, %v854
      %v856 = vpop.f32.mrf.mxu0
      %857 = vmatprep.mubr.bf16.mxu0 %v506
      %858 = vmatmul.mubr.bf16.gmra.mxu0 %v505
      %v859 = vpop.f32.mrf.mxu0
      %v860 = vadd.f32 %v279, %v859
      %v861 = vpop.f32.mrf.mxu0
      %v862 = vpop.f32.mrf.mxu0
      %v863 = vadd.f32 %v279, %v862
      %v864 = vpop.f32.mrf.mxu0
      %865 = vmatprep.mubr.bf16.mxu0 %v508
      %866 = vmatmul.mubr.bf16.gmra.mxu0 %v507
      %v867 = vpop.f32.mrf.mxu0
      %v868 = vadd.f32 %v279, %v867
      %v869 = vpop.f32.mrf.mxu0
      %v870 = vpop.f32.mrf.mxu0
      %v871 = vadd.f32 %v279, %v870
      %v872 = vpop.f32.mrf.mxu0
      %873 = vmatprep.mubr.bf16.mxu0 %v510
      %874 = vmatmul.mubr.bf16.gmra.mxu0 %v509
      %v875 = vpop.f32.mrf.mxu0
      %v876 = vadd.f32 %v279, %v875
      %v877 = vpop.f32.mrf.mxu0
      %v878 = vpop.f32.mrf.mxu0
      %v879 = vadd.f32 %v279, %v878
      %v880 = vpop.f32.mrf.mxu0
      %881 = vmatprep.mubr.bf16.mxu0 %v512
      %882 = vmatmul.mubr.bf16.gmra.mxu0 %v511
      %v883 = vpop.f32.mrf.mxu0
      %v884 = vadd.f32 %v279, %v883
      %v885 = vpop.f32.mrf.mxu0
      %v886 = vpop.f32.mrf.mxu0
      %v887 = vadd.f32 %v279, %v886
      %v888 = vpop.f32.mrf.mxu0
      %889 = vmatprep.mubr.bf16.mxu0 %v514
      %890 = vmatmul.mubr.bf16.gmra.mxu0 %v513
      %v891 = vpop.f32.mrf.mxu0
      %v892 = vadd.f32 %v279, %v891
      %v893 = vpop.f32.mrf.mxu0
      %v894 = vpop.f32.mrf.mxu0
      %v895 = vadd.f32 %v279, %v894
      %v896 = vpop.f32.mrf.mxu0
      %897 = vmatprep.mubr.bf16.mxu0 %v516
      %898 = vmatmul.mubr.bf16.gmra.mxu0 %v515
      %v899 = vpop.f32.mrf.mxu0
      %v900 = vadd.f32 %v279, %v899
      %v901 = vpop.f32.mrf.mxu0
      %v902 = vpop.f32.mrf.mxu0
      %v903 = vadd.f32 %v279, %v902
      %v904 = vpop.f32.mrf.mxu0
      %905 = vmatprep.mubr.bf16.mxu0 %v518
      %906 = vmatmul.mubr.bf16.gmra.mxu0 %v517
      %v907 = vpop.f32.mrf.mxu0
      %v908 = vadd.f32 %v279, %v907
      %v909 = vpop.f32.mrf.mxu0
      %v910 = vpop.f32.mrf.mxu0
      %v911 = vadd.f32 %v279, %v910
      %v912 = vpop.f32.mrf.mxu0
      %913 = vmatprep.mubr.bf16.mxu0 %v520
      %914 = vmatmul.mubr.bf16.gmra.mxu0 %v519
      %v915 = vpop.f32.mrf.mxu0
      %v916 = vadd.f32 %v279, %v915
      %v917 = vpop.f32.mrf.mxu0
      %v918 = vpop.f32.mrf.mxu0
      %v919 = vadd.f32 %v279, %v918
      %v920 = vpop.f32.mrf.mxu0
      %921 = vmatprep.mubr.bf16.mxu0 %v522
      %922 = vmatmul.mubr.bf16.gmra.mxu0 %v521
      %v923 = vpop.f32.mrf.mxu0
      %v924 = vadd.f32 %v279, %v923
      %v925 = vpop.f32.mrf.mxu0
      %v926 = vpop.f32.mrf.mxu0
      %v927 = vadd.f32 %v279, %v926
      %v928 = vpop.f32.mrf.mxu0
      %929 = vmatprep.mubr.bf16.mxu0 %v524
      %930 = vmatmul.mubr.bf16.gmra.mxu0 %v523
      %v931 = vpop.f32.mrf.mxu0
      %v932 = vadd.f32 %v279, %v931
      %v933 = vpop.f32.mrf.mxu0
      %v934 = vpop.f32.mrf.mxu0
      %v935 = vadd.f32 %v279, %v934
      %v936 = vpop.f32.mrf.mxu0
      %937 = vmatprep.mubr.bf16.mxu0 %v526
      %938 = vmatmul.mubr.bf16.gmra.mxu0 %v525
      %v939 = vpop.f32.mrf.mxu0
      %v940 = vadd.f32 %v279, %v939
      %v941 = vpop.f32.mrf.mxu0
      %v942 = vpop.f32.mrf.mxu0
      %v943 = vadd.f32 %v279, %v942
      %v944 = vpop.f32.mrf.mxu0
      %945 = vmatprep.mubr.bf16.mxu0 %v528
      %946 = vmatmul.mubr.bf16.gmra.mxu0 %v527
      %v947 = vpop.f32.mrf.mxu0
      %v948 = vadd.f32 %v279, %v947
      %v949 = vpop.f32.mrf.mxu0
      %v950 = vpop.f32.mrf.mxu0
      %v951 = vadd.f32 %v279, %v950
      %v952 = vpop.f32.mrf.mxu0
      %953 = vmatprep.mubr.bf16.mxu0 %v530
      %954 = vmatmul.mubr.bf16.gmra.mxu0 %v529
      %v955 = vpop.f32.mrf.mxu0
      %v956 = vadd.f32 %v279, %v955
      %v957 = vpop.f32.mrf.mxu0
      %v958 = vpop.f32.mrf.mxu0
      %v959 = vadd.f32 %v279, %v958
      %v960 = vpop.f32.mrf.mxu0
      %961 = vmatprep.mubr.bf16.mxu0 %v532
      %962 = vmatmul.mubr.bf16.gmra.mxu0 %v531
      %v963 = vpop.f32.mrf.mxu0
      %v964 = vadd.f32 %v279, %v963
      %v965 = vpop.f32.mrf.mxu0
      %v966 = vpop.f32.mrf.mxu0
      %v967 = vadd.f32 %v279, %v966
      %v968 = vpop.f32.mrf.mxu0
      %969 = vmatprep.mubr.bf16.mxu0 %v534
      %970 = vmatmul.mubr.bf16.gmra.mxu0 %v533
      %v971 = vpop.f32.mrf.mxu0
      %v972 = vadd.f32 %v279, %v971
      %v973 = vpop.f32.mrf.mxu0
      %v974 = vpop.f32.mrf.mxu0
      %v975 = vadd.f32 %v279, %v974
      %v976 = vpop.f32.mrf.mxu0
      %977 = vmatprep.mubr.bf16.mxu0 %v536
      %978 = vmatmul.mubr.bf16.gmra.mxu0 %v535
      %v979 = vpop.f32.mrf.mxu0
      %v980 = vadd.f32 %v279, %v979
      %v981 = vpop.f32.mrf.mxu0
      %v982 = vpop.f32.mrf.mxu0
      %v983 = vadd.f32 %v279, %v982
      %v984 = vpop.f32.mrf.mxu0
      %985 = vdwg.mxu0
      %v986 = vmax.f32 %v732, 0.0
      %v987 = vmax.f32 %v735, 0.0
      %v988 = vmax.f32 %v740, 0.0
      %v989 = vmax.f32 %v743, 0.0
      %v990 = vmax.f32 %v748, 0.0
      %v991 = vmax.f32 %v751, 0.0
      %v992 = vmax.f32 %v756, 0.0
      %v993 = vmax.f32 %v759, 0.0
      %v994 = vmax.f32 %v764, 0.0
      %v995 = vmax.f32 %v767, 0.0
      %v996 = vmax.f32 %v772, 0.0
      %v997 = vmax.f32 %v775, 0.0
      %v998 = vmax.f32 %v780, 0.0
      %v999 = vmax.f32 %v783, 0.0
      %v1000 = vmax.f32 %v788, 0.0
      %v1001 = vmax.f32 %v791, 0.0
      %v1002 = vmax.f32 %v796, 0.0
      %v1003 = vmax.f32 %v799, 0.0
      %v1004 = vmax.f32 %v804, 0.0
      %v1005 = vmax.f32 %v807, 0.0
      %v1006 = vmax.f32 %v812, 0.0
      %v1007 = vmax.f32 %v815, 0.0
      %v1008 = vmax.f32 %v820, 0.0
      %v1009 = vmax.f32 %v823, 0.0
      %v1010 = vmax.f32 %v828, 0.0
      %v1011 = vmax.f32 %v831, 0.0
      %v1012 = vmax.f32 %v836, 0.0
      %v1013 = vmax.f32 %v839, 0.0
      %v1014 = vmax.f32 %v844, 0.0
      %v1015 = vmax.f32 %v847, 0.0
      %v1016 = vmax.f32 %v852, 0.0
      %v1017 = vmax.f32 %v855, 0.0
      %v1018 = vmax.f32 %v860, 0.0
      %v1019 = vmax.f32 %v863, 0.0
      %v1020 = vmax.f32 %v868, 0.0
      %v1021 = vmax.f32 %v871, 0.0
      %v1022 = vmax.f32 %v876, 0.0
      %v1023 = vmax.f32 %v879, 0.0
      %v1024 = vmax.f32 %v884, 0.0
      %v1025 = vmax.f32 %v887, 0.0
      %v1026 = vmax.f32 %v892, 0.0
      %v1027 = vmax.f32 %v895, 0.0
      %v1028 = vmax.f32 %v900, 0.0
      %v1029 = vmax.f32 %v903, 0.0
      %v1030 = vmax.f32 %v908, 0.0
      %v1031 = vmax.f32 %v911, 0.0
      %v1032 = vmax.f32 %v916, 0.0
      %v1033 = vmax.f32 %v919, 0.0
      %v1034 = vmax.f32 %v924, 0.0
      %v1035 = vmax.f32 %v927, 0.0
      %v1036 = vmax.f32 %v932, 0.0
      %v1037 = vmax.f32 %v935, 0.0
      %v1038 = vmax.f32 %v940, 0.0
      %v1039 = vmax.f32 %v943, 0.0
      %v1040 = vmax.f32 %v948, 0.0
      %v1041 = vmax.f32 %v951, 0.0
      %v1042 = vmax.f32 %v956, 0.0
      %v1043 = vmax.f32 %v959, 0.0
      %v1044 = vmax.f32 %v964, 0.0
      %v1045 = vmax.f32 %v967, 0.0
      %v1046 = vmax.f32 %v972, 0.0
      %v1047 = vmax.f32 %v975, 0.0
      %v1048 = vmax.f32 %v980, 0.0
      %v1049 = vmax.f32 %v983, 0.0
      %v1050 = vpack.c.bf16 %v987, %v986
      %v1051 = vpack.c.bf16 %v989, %v988
      %v1052 = vpack.c.bf16 %v991, %v990
      %v1053 = vpack.c.bf16 %v993, %v992
      %v1054 = vpack.c.bf16 %v995, %v994
      %v1055 = vpack.c.bf16 %v997, %v996
      %v1056 = vpack.c.bf16 %v999, %v998
      %v1057 = vpack.c.bf16 %v1001, %v1000
      %v1058 = vpack.c.bf16 %v1003, %v1002
      %v1059 = vpack.c.bf16 %v1005, %v1004
      %v1060 = vpack.c.bf16 %v1007, %v1006
      %v1061 = vpack.c.bf16 %v1009, %v1008
      %v1062 = vpack.c.bf16 %v1011, %v1010
      %v1063 = vpack.c.bf16 %v1013, %v1012
      %v1064 = vpack.c.bf16 %v1015, %v1014
      %v1065 = vpack.c.bf16 %v1017, %v1016
      %v1066 = vpack.c.bf16 %v1019, %v1018
      %v1067 = vpack.c.bf16 %v1021, %v1020
      %v1068 = vpack.c.bf16 %v1023, %v1022
      %v1069 = vpack.c.bf16 %v1025, %v1024
      %v1070 = vpack.c.bf16 %v1027, %v1026
      %v1071 = vpack.c.bf16 %v1029, %v1028
      %v1072 = vpack.c.bf16 %v1031, %v1030
      %v1073 = vpack.c.bf16 %v1033, %v1032
      %v1074 = vpack.c.bf16 %v1035, %v1034
      %v1075 = vpack.c.bf16 %v1037, %v1036
      %v1076 = vpack.c.bf16 %v1039, %v1038
      %v1077 = vpack.c.bf16 %v1041, %v1040
      %v1078 = vpack.c.bf16 %v1043, %v1042
      %v1079 = vpack.c.bf16 %v1045, %v1044
      %v1080 = vpack.c.bf16 %v1047, %v1046
      %v1081 = vpack.c.bf16 %v1049, %v1048
      %v1114 = vunpack.c.l.b16 %v1050
      %v1115 = vunpack.c.h.b16 %v1050
      %v1116 = vunpack.c.l.b16 %v1051
      %v1117 = vunpack.c.h.b16 %v1051
      %v1118 = vunpack.c.l.b16 %v1052
      %v1119 = vunpack.c.h.b16 %v1052
      %v1120 = vunpack.c.l.b16 %v1053
      %v1121 = vunpack.c.h.b16 %v1053
      %v1122 = vunpack.c.l.b16 %v1054
      %v1123 = vunpack.c.h.b16 %v1054
      %v1124 = vunpack.c.l.b16 %v1055
      %v1125 = vunpack.c.h.b16 %v1055
      %v1126 = vunpack.c.l.b16 %v1056
      %v1127 = vunpack.c.h.b16 %v1056
      %v1128 = vunpack.c.l.b16 %v1057
      %v1129 = vunpack.c.h.b16 %v1057
      %v1130 = vunpack.c.l.b16 %v1058
      %v1131 = vunpack.c.h.b16 %v1058
      %v1132 = vunpack.c.l.b16 %v1059
      %v1133 = vunpack.c.h.b16 %v1059
      %v1134 = vunpack.c.l.b16 %v1060
      %v1135 = vunpack.c.h.b16 %v1060
      %v1136 = vunpack.c.l.b16 %v1061
      %v1137 = vunpack.c.h.b16 %v1061
      %v1138 = vunpack.c.l.b16 %v1062
      %v1139 = vunpack.c.h.b16 %v1062
      %v1140 = vunpack.c.l.b16 %v1063
      %v1141 = vunpack.c.h.b16 %v1063
      %v1142 = vunpack.c.l.b16 %v1064
      %v1143 = vunpack.c.h.b16 %v1064
      %v1144 = vunpack.c.l.b16 %v1065
      %v1145 = vunpack.c.h.b16 %v1065
      %v1146 = vunpack.c.l.b16 %v1066
      %v1147 = vunpack.c.h.b16 %v1066
      %v1148 = vunpack.c.l.b16 %v1067
      %v1149 = vunpack.c.h.b16 %v1067
      %v1150 = vunpack.c.l.b16 %v1068
      %v1151 = vunpack.c.h.b16 %v1068
      %v1152 = vunpack.c.l.b16 %v1069
      %v1153 = vunpack.c.h.b16 %v1069
      %v1154 = vunpack.c.l.b16 %v1070
      %v1155 = vunpack.c.h.b16 %v1070
      %v1156 = vunpack.c.l.b16 %v1071
      %v1157 = vunpack.c.h.b16 %v1071
      %v1158 = vunpack.c.l.b16 %v1072
      %v1159 = vunpack.c.h.b16 %v1072
      %v1160 = vunpack.c.l.b16 %v1073
      %v1161 = vunpack.c.h.b16 %v1073
      %v1162 = vunpack.c.l.b16 %v1074
      %v1163 = vunpack.c.h.b16 %v1074
      %v1164 = vunpack.c.l.b16 %v1075
      %v1165 = vunpack.c.h.b16 %v1075
      %v1166 = vunpack.c.l.b16 %v1076
      %v1167 = vunpack.c.h.b16 %v1076
      %v1168 = vunpack.c.l.b16 %v1077
      %v1169 = vunpack.c.h.b16 %v1077
      %v1170 = vunpack.c.l.b16 %v1078
      %v1171 = vunpack.c.h.b16 %v1078
      %v1172 = vunpack.c.l.b16 %v1079
      %v1173 = vunpack.c.h.b16 %v1079
      %v1174 = vunpack.c.l.b16 %v1080
      %v1175 = vunpack.c.h.b16 %v1080
      %v1176 = vunpack.c.l.b16 %v1081
      %v1177 = vunpack.c.h.b16 %v1081
      %v1178 = vpack.c.b16 %v1114, %v1114
      %v1179 = vpack.c.b16 %v1115, %v1115
      %v1180 = vpack.c.b16 %v1116, %v1116
      %v1181 = vpack.c.b16 %v1117, %v1117
      %v1182 = vpack.c.b16 %v1118, %v1118
      %v1183 = vpack.c.b16 %v1119, %v1119
      %v1184 = vpack.c.b16 %v1120, %v1120
      %v1185 = vpack.c.b16 %v1121, %v1121
      %v1186 = vpack.c.b16 %v1122, %v1122
      %v1187 = vpack.c.b16 %v1123, %v1123
      %v1188 = vpack.c.b16 %v1124, %v1124
      %v1189 = vpack.c.b16 %v1125, %v1125
      %v1190 = vpack.c.b16 %v1126, %v1126
      %v1191 = vpack.c.b16 %v1127, %v1127
      %v1192 = vpack.c.b16 %v1128, %v1128
      %v1193 = vpack.c.b16 %v1129, %v1129
      %v1194 = vpack.c.b16 %v1130, %v1130
      %v1195 = vpack.c.b16 %v1131, %v1131
      %v1196 = vpack.c.b16 %v1132, %v1132
      %v1197 = vpack.c.b16 %v1133, %v1133
      %v1198 = vpack.c.b16 %v1134, %v1134
      %v1199 = vpack.c.b16 %v1135, %v1135
      %v1200 = vpack.c.b16 %v1136, %v1136
      %v1201 = vpack.c.b16 %v1137, %v1137
      %v1202 = vpack.c.b16 %v1138, %v1138
      %v1203 = vpack.c.b16 %v1139, %v1139
      %v1204 = vpack.c.b16 %v1140, %v1140
      %v1205 = vpack.c.b16 %v1141, %v1141
      %v1206 = vpack.c.b16 %v1142, %v1142
      %v1207 = vpack.c.b16 %v1143, %v1143
      %v1208 = vpack.c.b16 %v1144, %v1144
      %v1209 = vpack.c.b16 %v1145, %v1145
      %v1210 = vpack.c.b16 %v1146, %v1146
      %v1211 = vpack.c.b16 %v1147, %v1147
      %v1212 = vpack.c.b16 %v1148, %v1148
      %v1213 = vpack.c.b16 %v1149, %v1149
      %v1214 = vpack.c.b16 %v1150, %v1150
      %v1215 = vpack.c.b16 %v1151, %v1151
      %v1216 = vpack.c.b16 %v1152, %v1152
      %v1217 = vpack.c.b16 %v1153, %v1153
      %v1218 = vpack.c.b16 %v1154, %v1154
      %v1219 = vpack.c.b16 %v1155, %v1155
      %v1220 = vpack.c.b16 %v1156, %v1156
      %v1221 = vpack.c.b16 %v1157, %v1157
      %v1222 = vpack.c.b16 %v1158, %v1158
      %v1223 = vpack.c.b16 %v1159, %v1159
      %v1224 = vpack.c.b16 %v1160, %v1160
      %v1225 = vpack.c.b16 %v1161, %v1161
      %v1226 = vpack.c.b16 %v1162, %v1162
      %v1227 = vpack.c.b16 %v1163, %v1163
      %v1228 = vpack.c.b16 %v1164, %v1164
      %v1229 = vpack.c.b16 %v1165, %v1165
      %v1230 = vpack.c.b16 %v1166, %v1166
      %v1231 = vpack.c.b16 %v1167, %v1167
      %v1232 = vpack.c.b16 %v1168, %v1168
      %v1233 = vpack.c.b16 %v1169, %v1169
      %v1234 = vpack.c.b16 %v1170, %v1170
      %v1235 = vpack.c.b16 %v1171, %v1171
      %v1236 = vpack.c.b16 %v1172, %v1172
      %v1237 = vpack.c.b16 %v1173, %v1173
      %v1238 = vpack.c.b16 %v1174, %v1174
      %v1239 = vpack.c.b16 %v1175, %v1175
      %v1240 = vpack.c.b16 %v1176, %v1176
      %v1241 = vpack.c.b16 %v1177, %v1177
      %1306 = vst [vmem:[%s175] sm:$0xf] %v1178
      %1307 = vst [vmem:[%s175 + $0x4] sm:$0xf] %v1179
      %1308 = vst [vmem:[%s175 + $0x8] sm:$0xf] %v1180
      %1309 = vst [vmem:[%s175 + $0xc] sm:$0xf] %v1181
      %1310 = vst [vmem:[%s175 + $0x10] sm:$0xf] %v1182
      %1311 = vst [vmem:[%s175 + $0x14] sm:$0xf] %v1183
      %1312 = vst [vmem:[%s175 + $0x18] sm:$0xf] %v1184
      %1313 = vst [vmem:[%s175 + $0x1c] sm:$0xf] %v1185
      %1314 = vst [vmem:[%s175 + $0x20] sm:$0xf] %v1186
      %1315 = vst [vmem:[%s175 + $0x24] sm:$0xf] %v1187
      %1316 = vst [vmem:[%s175 + $0x28] sm:$0xf] %v1188
      %1317 = vst [vmem:[%s175 + $0x2c] sm:$0xf] %v1189
      %1318 = vst [vmem:[%s175 + $0x30] sm:$0xf] %v1190
      %1319 = vst [vmem:[%s175 + $0x34] sm:$0xf] %v1191
      %1320 = vst [vmem:[%s175 + $0x38] sm:$0xf] %v1192
      %1321 = vst [vmem:[%s175 + $0x3c] sm:$0xf] %v1193
      %1322 = vst [vmem:[%s175 + $0x40] sm:$0xf] %v1194
      %1323 = vst [vmem:[%s175 + $0x44] sm:$0xf] %v1195
      %1324 = vst [vmem:[%s175 + $0x48] sm:$0xf] %v1196
      %1325 = vst [vmem:[%s175 + $0x4c] sm:$0xf] %v1197
      %1326 = vst [vmem:[%s175 + $0x50] sm:$0xf] %v1198
      %1327 = vst [vmem:[%s175 + $0x54] sm:$0xf] %v1199
      %1328 = vst [vmem:[%s175 + $0x58] sm:$0xf] %v1200
      %1329 = vst [vmem:[%s175 + $0x5c] sm:$0xf] %v1201
      %1330 = vst [vmem:[%s175 + $0x60] sm:$0xf] %v1202
      %1331 = vst [vmem:[%s175 + $0x64] sm:$0xf] %v1203
      %1332 = vst [vmem:[%s175 + $0x68] sm:$0xf] %v1204
      %1333 = vst [vmem:[%s175 + $0x6c] sm:$0xf] %v1205
      %1334 = vst [vmem:[%s175 + $0x70] sm:$0xf] %v1206
      %1335 = vst [vmem:[%s175 + $0x74] sm:$0xf] %v1207
      %1336 = vst [vmem:[%s175 + $0x78] sm:$0xf] %v1208
      %1337 = vst [vmem:[%s175 + $0x7c] sm:$0xf] %v1209
      %1338 = vst [vmem:[%s175 + $0x80] sm:$0xf] %v1210
      %1339 = vst [vmem:[%s175 + $0x84] sm:$0xf] %v1211
      %1340 = vst [vmem:[%s175 + $0x88] sm:$0xf] %v1212
      %1341 = vst [vmem:[%s175 + $0x8c] sm:$0xf] %v1213
      %1342 = vst [vmem:[%s175 + $0x90] sm:$0xf] %v1214
      %1343 = vst [vmem:[%s175 + $0x94] sm:$0xf] %v1215
      %1344 = vst [vmem:[%s175 + $0x98] sm:$0xf] %v1216
      %1345 = vst [vmem:[%s175 + $0x9c] sm:$0xf] %v1217
      %1346 = vst [vmem:[%s175 + $0xa0] sm:$0xf] %v1218
      %1347 = vst [vmem:[%s175 + $0xa4] sm:$0xf] %v1219
      %1348 = vst [vmem:[%s175 + $0xa8] sm:$0xf] %v1220
      %1349 = vst [vmem:[%s175 + $0xac] sm:$0xf] %v1221
      %1350 = vst [vmem:[%s175 + $0xb0] sm:$0xf] %v1222
      %1351 = vst [vmem:[%s175 + $0xb4] sm:$0xf] %v1223
      %1352 = vst [vmem:[%s175 + $0xb8] sm:$0xf] %v1224
      %1353 = vst [vmem:[%s175 + $0xbc] sm:$0xf] %v1225
      %1354 = vst [vmem:[%s175 + $0xc0] sm:$0xf] %v1226
      %1355 = vst [vmem:[%s175 + $0xc4] sm:$0xf] %v1227
      %1356 = vst [vmem:[%s175 + $0xc8] sm:$0xf] %v1228
      %1357 = vst [vmem:[%s175 + $0xcc] sm:$0xf] %v1229
      %1358 = vst [vmem:[%s175 + $0xd0] sm:$0xf] %v1230
      %1359 = vst [vmem:[%s175 + $0xd4] sm:$0xf] %v1231
      %1360 = vst [vmem:[%s175 + $0xd8] sm:$0xf] %v1232
      %1361 = vst [vmem:[%s175 + $0xdc] sm:$0xf] %v1233
      %1362 = vst [vmem:[%s175 + $0xe0] sm:$0xf] %v1234
      %1363 = vst [vmem:[%s175 + $0xe4] sm:$0xf] %v1235
      %1364 = vst [vmem:[%s175 + $0xe8] sm:$0xf] %v1236
      %1365 = vst [vmem:[%s175 + $0xec] sm:$0xf] %v1237
      %1366 = vst [vmem:[%s175 + $0xf0] sm:$0xf] %v1238
      %1367 = vst [vmem:[%s175 + $0xf4] sm:$0xf] %v1239
      %1368 = vst [vmem:[%s175 + $0xf8] sm:$0xf] %v1240
      %1369 = vst [vmem:[%s175 + $0xfc] sm:$0xf] %v1241
      %s1370 = smul.u32 64, %s14
      %p1371 = scmp.lt.s32.totalorder %s1370, 255
      %s1372 = scalar_select %p1371, %s1370, 255
      %s1373 = smul.addr %s1372, 4
      %s1374 = scalar_lea.vmem %s3, %s1373
      // Predicated region
      $region33: #{cnn_classifier_forward.10} parent=31 // pred_check
        %p1375 = pneg %p100
      $region34: #{cnn_classifier_forward.10} parent=31 // pred_check_branch
        %1377 = sbr.rel (%p1375) target = $region36
      $region35: #{cnn_classifier_forward.10} parent=31 // pred_region
        %s1378 = smul.u32 64, %s14
      $region36: #{cnn_classifier_forward.10} parent=31 // pred_fallthru
        _
    $region32: #{cnn_classifier_forward.10} parent=5 // pred_fallthru
      _
    %p1379 = scmp.le.s32.totalorder 2, %s9
    // Predicated region
    $region37: #{cnn_classifier_forward.10} parent=5 // pred_check
      %p1380 = pneg %p1379
    $region38: #{cnn_classifier_forward.10} parent=5 // pred_check_branch
      %1382 = sbr.rel (%p1380) target = $region40
    $region39: #{cnn_classifier_forward.10} parent=5 // pred_region
      %s1383 = ssub.s32 %s9, 2
      // Predicated region
      $region41: #{cnn_classifier_forward.10} parent=39 // pred_check
        %p1384 = pneg %p106
      $region42: #{cnn_classifier_forward.10} parent=39 // pred_check_branch
        %1386 = sbr.rel (%p1384) target = $region44
      $region43: #{cnn_classifier_forward.10} parent=39 // pred_region
        %s1387 = smul.u32 64, %s15
        %p1388 = scmp.lt.s32.totalorder %s1387, 255
        %s1389 = scalar_select %p1388, %s1387, 255
        %s1390 = smul.addr %s1389, 4
        %s1391 = scalar_lea.vmem %s3, %s1390
      $region44: #{cnn_classifier_forward.10} parent=39 // pred_fallthru
        _
    $region40: #{cnn_classifier_forward.10} parent=5 // pred_fallthru
      _
  $region6: #{cnn_classifier_forward.10} parent=0 // loop_footer
    %s13 = sadd.s32 1, %s9
  $region7: #{cnn_classifier_forward.10} parent=0 // loop_footer_branch
    %8 = sbr.rel target = $region3
  $region8: #{cnn_classifier_forward.10} parent=0 // loop_exit
    _

// kernel: cnn_classifier_forward.11
$region0: #{cnn_classifier_forward.11}
  #allocation0 [shape = 'u32[]', space=smem, size = 0x4, offset = 0x4, fixed_abs, tag = 'smem constant byte address 0x4 - core index']
  #allocation1 [shape = 'u32[144,128]{1,0:T(1,128)}', space=vmem, size = 0x12000, scoped, tag = 'internal scratch']
  %s0 = inlined_call_operand.vmem [shape: bf16[9,32,512], index: 0, kind: input, shape index: {}]
  %s1 = inlined_call_operand.vmem [shape: bf16[32,512], index: 1, kind: output, shape index: {}]
  %s2 = sld [smem:[#allocation0]]
  $region60: #{cnn_classifier_forward.11} parent=0
    _
  %s4 = ssub.s32 1, %s2
  %s5 = scalar_select 0, %s4, %s2
  $region1: #{cnn_classifier_forward.11} parent=0
    #allocation2 [shape = 'u8[294912]{0}', space=vmem, size = 0x48000, scoped, tag = 'input window, operand 0']
    loop: start=0, step=1, limit=4
    $region2: #{cnn_classifier_forward.11} parent=1 // loop_pre_header
      _
    $region3: #{cnn_classifier_forward.11} parent=1 // loop_header
      %s7 = sphi 0, %s11
      %p8 = scmp.ge.s32.totalorder %s7, 4
      %s17 = sphi 0, %s19
      %s20 = sphi 0, %s17
      %s21 = sphi 0, %s20
      %s37 = sphi 0, %s21
      %s43 = sphi 0, %s45
      %s46 = sphi 0, %s43
      %s47 = sphi 0, %s46
      %s63 = sphi 0, %s47
    $region4: #{cnn_classifier_forward.11} parent=1 // loop_header_branch
      %10 = sbr.rel (%p8) target = $region8
    $region5: #{cnn_classifier_forward.11} parent=1 // loop_body
      %s12 = ssub.s32 %s7, 1
      %s13 = ssub.s32 %s7, 2
      %s14 = sadd.s32 %s7, 1
      %s15 = ssub.s32 %s7, %s14
      %p16 = scmp.eq.s32.totalorder %s15, 0
      %s18 = sadd.s32 %s17, 1
      %s19 = scalar_select %p16, %s17, %s18
      %p22 = pneg %p16
      %p23 = scmp.eq.s32.totalorder %s7, 1
      %p24 = por %p22, %p23
      %p25 = scmp.ne.s32.totalorder %s17, %s20
      %p26 = scmp.eq.s32.totalorder %s7, 0
      %p27 = por %p25, %p26
      %p28 = scmp.ne.s32.totalorder %s17, %s20
      %p29 = scmp.eq.s32.totalorder %s12, 1
      %p30 = por %p28, %p29
      %p31 = scmp.ne.s32.totalorder %s20, %s21
      %p32 = scmp.eq.s32.totalorder %s12, 0
      %p33 = por %p31, %p32
      %p34 = scmp.ne.s32.totalorder %s20, %s21
      %p35 = scmp.eq.s32.totalorder %s13, 1
      %p36 = por %p34, %p35
      %p38 = scmp.ne.s32.totalorder %s21, %s37
      %p39 = scmp.eq.s32.totalorder %s13, 0
      %p40 = por %p38, %p39
      %s41 = ssub.s32 %s7, %s14
      %p42 = scmp.eq.s32.totalorder %s41, 0
      %s44 = sadd.s32 %s43, 1
      %s45 = scalar_select %p42, %s43, %s44
      %p48 = pneg %p42
      %p49 = scmp.eq.s32.totalorder %s7, 1
      %p50 = por %p48, %p49
      %p51 = scmp.ne.s32.totalorder %s43, %s46
      %p52 = scmp.eq.s32.totalorder %s7, 0
      %p53 = por %p51, %p52
      %p54 = scmp.ne.s32.totalorder %s43, %s46
      %p55 = scmp.eq.s32.totalorder %s12, 1
      %p56 = por %p54, %p55
      %p57 = scmp.ne.s32.totalorder %s46, %s47
      %p58 = scmp.eq.s32.totalorder %s12, 0
      %p59 = por %p57, %p58
      %p60 = scmp.ne.s32.totalorder %s46, %s47
      %p61 = scmp.eq.s32.totalorder %s13, 1
      %p62 = por %p60, %p61
      %p64 = scmp.ne.s32.totalorder %s47, %s63
      %p65 = scmp.eq.s32.totalorder %s13, 0
      %p66 = por %p64, %p65
      %p67 = scmp.le.s32.totalorder 1, %s7
      %p68 = scmp.lt.s32.totalorder %s7, 3
      %p69 = pnand %p67, %p68
      %p70 = pneg %p69
      // Predicated region
      $region9: #{cnn_classifier_forward.11} parent=5 // pred_check
        _
      $region10: #{cnn_classifier_forward.11} parent=5 // pred_check_branch
        %72 = sbr.rel (%p69) target = $region12
      $region11: #{cnn_classifier_forward.11} parent=5 // pred_region
        %s73 = ssub.s32 %s7, 1
      $region12: #{cnn_classifier_forward.11} parent=5 // pred_fallthru
        _
      %p74 = scmp.lt.s32.totalorder %s7, 2
      // Predicated region
      $region13: #{cnn_classifier_forward.11} parent=5 // pred_check
        %p75 = pneg %p74
      $region14: #{cnn_classifier_forward.11} parent=5 // pred_check_branch
        %77 = sbr.rel (%p75) target = $region16
      $region15: #{cnn_classifier_forward.11} parent=5 // pred_region
        // Predicated region
        $region17: #{cnn_classifier_forward.11} parent=15 // pred_check
          %p78 = pneg %p27
        $region18: #{cnn_classifier_forward.11} parent=15 // pred_check_branch
          %80 = sbr.rel (%p78) target = $region20
        $region19: #{cnn_classifier_forward.11} parent=15 // pred_region
          %s81 = sand.u32 %s17, 1
          %s82 = sand.u32 %s17, 1
          %s83 = smul.addr %s82, 288
          %s84 = scalar_lea.vmem [#allocation2], %s83
          %s85 = smul.u32 2, %s7
          %s86 = smul.addr %s85, 4
          %s87 = smul.addr %s86, 4
          %s88 = scalar_lea.vmem %s0, %s87
          // Predicated region
          $region21: #{cnn_classifier_forward.11} parent=19 // pred_check
            _
          $region22: #{cnn_classifier_forward.11} parent=19 // pred_check_branch
            %90 = sbr.rel (0) target = $region24
          $region23: #{cnn_classifier_forward.11} parent=19 // pred_region
            // Predicated region
            $region25: #{cnn_classifier_forward.11} parent=23 // pred_check
              _
            $region26: #{cnn_classifier_forward.11} parent=23 // pred_check_branch
              %92 = sbr.rel (0) target = $region28
            $region27: #{cnn_classifier_forward.11} parent=23 // pred_region
              loop: start=0, step=1, limit=1
              $region29: #{cnn_classifier_forward.11} parent=27 // loop_pre_header
                _
              $region30: #{cnn_classifier_forward.11} parent=27 // loop_header
                %s94 = sphi 0, %s98
                %p95 = scmp.ge.s32.totalorder %s94, 1
                %s99 = sphi %s88, %s88
                %s100 = sphi %s84, %s84
              $region31: #{cnn_classifier_forward.11} parent=27 // loop_header_branch
                %97 = sbr.rel (%p95) target = $region35
              $region32: #{cnn_classifier_forward.11} parent=27 // loop_body
                %v101 = vld [vmem:[%s99] sm:$0xff]
                %102 = vst [vmem:[%s100] sm:$0xff] %v101
                %v103 = vld [vmem:[%s99 + $0x8] sm:$0xff]
                %104 = vst [vmem:[%s100 + $0x8] sm:$0xff] %v103
                %v105 = vld [vmem:[%s99 + $0x10] sm:$0xff]
                %106 = vst [vmem:[%s100 + $0x10] sm:$0xff] %v105
                %v107 = vld [vmem:[%s99 + $0x18] sm:$0xff]
                %108 = vst [vmem:[%s100 + $0x18] sm:$0xff] %v107
                %v109 = vld [vmem:[%s99 + $0x40] sm:$0xff]
                %110 = vst [vmem:[%s100 + $0x20] sm:$0xff] %v109
                %v111 = vld [vmem:[%s99 + $0x48] sm:$0xff]
                %112 = vst [vmem:[%s100 + $0x28] sm:$0xff] %v111
                %v113 = vld [vmem:[%s99 + $0x50] sm:$0xff]
                %114 = vst [vmem:[%s100 + $0x30] sm:$0xff] %v113
                %v115 = vld [vmem:[%s99 + $0x58] sm:$0xff]
                %116 = vst [vmem:[%s100 + $0x38] sm:$0xff] %v115
                %v117 = vld [vmem:[%s99 + $0x80] sm:$0xff]
                %118 = vst [vmem:[%s100 + $0x40] sm:$0xff] %v117
                %v119 = vld [vmem:[%s99 + $0x88] sm:$0xff]
                %120 = vst [vmem:[%s100 + $0x48] sm:$0xff] %v119
                %v121 = vld [vmem:[%s99 + $0x90] sm:$0xff]
                %122 = vst [vmem:[%s100 + $0x50] sm:$0xff] %v121
                %v123 = vld [vmem:[%s99 + $0x98] sm:$0xff]
                %124 = vst [vmem:[%s100 + $0x58] sm:$0xff] %v123
                %v125 = vld [vmem:[%s99 + $0xc0] sm:$0xff]
                %126 = vst [vmem:[%s100 + $0x60] sm:$0xff] %v125
                %v127 = vld [vmem:[%s99 + $0xc8] sm:$0xff]
                %128 = vst [vmem:[%s100 + $0x68] sm:$0xff] %v127
                %v129 = vld [vmem:[%s99 + $0xd0] sm:$0xff]
                %130 = vst [vmem:[%s100 + $0x70] sm:$0xff] %v129
                %v131 = vld [vmem:[%s99 + $0xd8] sm:$0xff]
                %132 = vst [vmem:[%s100 + $0x78] sm:$0xff] %v131
                %v133 = vld [vmem:[%s99 + $0x100] sm:$0xff]
                %134 = vst [vmem:[%s100 + $0x80] sm:$0xff] %v133
                %v135 = vld [vmem:[%s99 + $0x108] sm:$0xff]
                %136 = vst [vmem:[%s100 + $0x88] sm:$0xff] %v135
                %v137 = vld [vmem:[%s99 + $0x110] sm:$0xff]
                %138 = vst [vmem:[%s100 + $0x90] sm:$0xff] %v137
                %v139 = vld [vmem:[%s99 + $0x118] sm:$0xff]
                %140 = vst [vmem:[%s100 + $0x98] sm:$0xff] %v139
                %v141 = vld [vmem:[%s99 + $0x140] sm:$0xff]
                %142 = vst [vmem:[%s100 + $0xa0] sm:$0xff] %v141
                %v143 = vld [vmem:[%s99 + $0x148] sm:$0xff]
                %144 = vst [vmem:[%s100 + $0xa8] sm:$0xff] %v143
                %v145 = vld [vmem:[%s99 + $0x150] sm:$0xff]
                %146 = vst [vmem:[%s100 + $0xb0] sm:$0xff] %v145
                %v147 = vld [vmem:[%s99 + $0x158] sm:$0xff]
                %148 = vst [vmem:[%s100 + $0xb8] sm:$0xff] %v147
                %v149 = vld [vmem:[%s99 + $0x180] sm:$0xff]
                %150 = vst [vmem:[%s100 + $0xc0] sm:$0xff] %v149
                %v151 = vld [vmem:[%s99 + $0x188] sm:$0xff]
                %152 = vst [vmem:[%s100 + $0xc8] sm:$0xff] %v151
                %v153 = vld [vmem:[%s99 + $0x190] sm:$0xff]
                %154 = vst [vmem:[%s100 + $0xd0] sm:$0xff] %v153
                %v155 = vld [vmem:[%s99 + $0x198] sm:$0xff]
                %156 = vst [vmem:[%s100 + $0xd8] sm:$0xff] %v155
                %v157 = vld [vmem:[%s99 + $0x1c0] sm:$0xff]
                %158 = vst [vmem:[%s100 + $0xe0] sm:$0xff] %v157
                %v159 = vld [vmem:[%s99 + $0x1c8] sm:$0xff]
                %160 = vst [vmem:[%s100 + $0xe8] sm:$0xff] %v159
                %v161 = vld [vmem:[%s99 + $0x1d0] sm:$0xff]
                %162 = vst [vmem:[%s100 + $0xf0] sm:$0xff] %v161
                %v163 = vld [vmem:[%s99 + $0x1d8] sm:$0xff]
                %164 = vst [vmem:[%s100 + $0xf8] sm:$0xff] %v163
                %v165 = vld [vmem:[%s99 + $0x200] sm:$0xff]
                %166 = vst [vmem:[%s100 + $0x100] sm:$0xff] %v165
                %v167 = vld [vmem:[%s99 + $0x208] sm:$0xff]
                %168 = vst [vmem:[%s100 + $0x108] sm:$0xff] %v167
                %v169 = vld [vmem:[%s99 + $0x210] sm:$0xff]
                %170 = vst [vmem:[%s100 + $0x110] sm:$0xff] %v169
                %v171 = vld [vmem:[%s99 + $0x218] sm:$0xff]
                %172 = vst [vmem:[%s100 + $0x118] sm:$0xff] %v171
              $region33: #{cnn_classifier_forward.11} parent=27 // loop_footer
                %s98 = sadd.s32 1, %s94
              $region34: #{cnn_classifier_forward.11} parent=27 // loop_footer_branch
                %93 = sbr.rel target = $region30
              $region35: #{cnn_classifier_forward.11} parent=27 // loop_exit
                _
            $region28: #{cnn_classifier_forward.11} parent=23 // pred_fallthru
              _
            // Predicated region
            $region36: #{cnn_classifier_forward.11} parent=23 // pred_check
              _
            $region37: #{cnn_classifier_forward.11} parent=23 // pred_check_branch
              %174 = sbr.rel target = $region39
            $region38: #{cnn_classifier_forward.11} parent=23 // pred_region
              _
            $region39: #{cnn_classifier_forward.11} parent=23 // pred_fallthru
              _
          $region24: #{cnn_classifier_forward.11} parent=19 // pred_fallthru
            _
          %175 = vnop
        $region20: #{cnn_classifier_forward.11} parent=15 // pred_fallthru
          _
      $region16: #{cnn_classifier_forward.11} parent=5 // pred_fallthru
        _
      %p176 = scmp.le.s32.totalorder 1, %s7
      %p177 = scmp.lt.s32.totalorder %s7, 3
      %p178 = pnand %p176, %p177
      %p179 = pneg %p178
      // Predicated region
      $region40: #{cnn_classifier_forward.11} parent=5 // pred_check
        _
      $region41: #{cnn_classifier_forward.11} parent=5 // pred_check_branch
        %181 = sbr.rel (%p178) target = $region43
      $region42: #{cnn_classifier_forward.11} parent=5 // pred_region
        %s182 = ssub.s32 %s7, 1
        %s183 = sand.u32 %s20, 1
        %s184 = sand.u32 %s20, 1
        %s185 = smul.addr %s184, 288
        %s186 = scalar_lea.vmem [#allocation2], %s185
        // Predicated region
        $region44: #{cnn_classifier_forward.11} parent=42 // pred_check
          %p187 = pneg %p33
        $region45: #{cnn_classifier_forward.11} parent=42 // pred_check_branch
          %189 = sbr.rel (%p187) target = $region47
        $region46: #{cnn_classifier_forward.11} parent=42 // pred_region
          _
        $region47: #{cnn_classifier_forward.11} parent=42 // pred_fallthru
          _
        %s190 = sand.u32 %s20, 1
        %s191 = sand.u32 %s20, 1
        %s192 = smul.addr %s191, 288
        %s193 = scalar_lea.vmem [#allocation2], %s192
        %p194 = pneg %p33
        %p195 = pneg %p30
        %p196 = pneg %p59
        %p197 = pneg %p56
        %s198 = smul.u32 2, %s12
        %p199 = scmp.lt.s32.totalorder %s198, 3
        %s200 = scalar_select %p199, %s198, 3
        %s201 = smul.addr %s200, 4
        %s202 = smul.addr %s201, 4
        %s203 = scalar_lea.vmem %s1, %s202
        %s204 = smul.u32 2, %s12
        %s205 = smul.u32 2, %s12
        %p206 = scmp.lt.s32.totalorder %s205, 3
        %s207 = scalar_select %p206, %s205, 3
        %s208 = smul.addr %s207, 4
        %s209 = smul.addr %s208, 4
        %s210 = scalar_lea.vmem %s1, %s209
        %s211 = smul.u32 2, %s12
        %v212 = vld [vmem:[%s186] sm:$0xff]
        %v213 = vld [vmem:[%s186 + $0x8] sm:$0xff]
        %v214 = vld [vmem:[%s186 + $0x10] sm:$0xff]
        %v215 = vld [vmem:[%s186 + $0x18] sm:$0xff]
        %v216 = vld [vmem:[%s186 + $0x20] sm:$0xff]
        %v217 = vld [vmem:[%s186 + $0x28] sm:$0xff]
        %v218 = vld [vmem:[%s186 + $0x30] sm:$0xff]
        %v219 = vld [vmem:[%s186 + $0x38] sm:$0xff]
        %v220 = vld [vmem:[%s186 + $0x40] sm:$0xff]
        %v221 = vld [vmem:[%s186 + $0x48] sm:$0xff]
        %v222 = vld [vmem:[%s186 + $0x50] sm:$0xff]
        %v223 = vld [vmem:[%s186 + $0x58] sm:$0xff]
        %v224 = vld [vmem:[%s186 + $0x60] sm:$0xff]
        %v225 = vld [vmem:[%s186 + $0x68] sm:$0xff]
        %v226 = vld [vmem:[%s186 + $0x70] sm:$0xff]
        %v227 = vld [vmem:[%s186 + $0x78] sm:$0xff]
        %v228 = vld [vmem:[%s186 + $0x80] sm:$0xff]
        %v229 = vld [vmem:[%s186 + $0x88] sm:$0xff]
        %v230 = vld [vmem:[%s186 + $0x90] sm:$0xff]
        %v231 = vld [vmem:[%s186 + $0x98] sm:$0xff]
        %v232 = vld [vmem:[%s186 + $0xa0] sm:$0xff]
        %v233 = vld [vmem:[%s186 + $0xa8] sm:$0xff]
        %v234 = vld [vmem:[%s186 + $0xb0] sm:$0xff]
        %v235 = vld [vmem:[%s186 + $0xb8] sm:$0xff]
        %v236 = vld [vmem:[%s186 + $0xc0] sm:$0xff]
        %v237 = vld [vmem:[%s186 + $0xc8] sm:$0xff]
        %v238 = vld [vmem:[%s186 + $0xd0] sm:$0xff]
        %v239 = vld [vmem:[%s186 + $0xd8] sm:$0xff]
        %v240 = vld [vmem:[%s186 + $0xe0] sm:$0xff]
        %v241 = vld [vmem:[%s186 + $0xe8] sm:$0xff]
        %v242 = vld [vmem:[%s186 + $0xf0] sm:$0xff]
        %v243 = vld [vmem:[%s186 + $0xf8] sm:$0xff]
        %v244 = vld [vmem:[%s186 + $0x100] sm:$0xff]
        %v245 = vld [vmem:[%s186 + $0x108] sm:$0xff]
        %v246 = vld [vmem:[%s186 + $0x110] sm:$0xff]
        %v247 = vld [vmem:[%s186 + $0x118] sm:$0xff]
        %v248 = vmax.bf16 %v212, %v216
        %v249 = vmax.bf16 %v248, %v220
        %v250 = vmax.bf16 %v249, %v224
        %v251 = vmax.bf16 %v250, %v228
        %v252 = vmax.bf16 %v251, %v232
        %v253 = vmax.bf16 %v252, %v236
        %v254 = vmax.bf16 %v253, %v240
        %v255 = vmax.bf16 %v254, %v244
        %v256 = vmax.bf16 %v213, %v217
        %v257 = vmax.bf16 %v256, %v221
        %v258 = vmax.bf16 %v257, %v225
        %v259 = vmax.bf16 %v258, %v229
        %v260 = vmax.bf16 %v259, %v233
        %v261 = vmax.bf16 %v260, %v237
        %v262 = vmax.bf16 %v261, %v241
        %v263 = vmax.bf16 %v262, %v245
        %v264 = vmax.bf16 %v214, %v218
        %v265 = vmax.bf16 %v264, %v222
        %v266 = vmax.bf16 %v265, %v226
        %v267 = vmax.bf16 %v266, %v230
        %v268 = vmax.bf16 %v267, %v234
        %v269 = vmax.bf16 %v268, %v238
        %v270 = vmax.bf16 %v269, %v242
        %v271 = vmax.bf16 %v270, %v246
        %v272 = vmax.bf16 %v215, %v219
        %v273 = vmax.bf16 %v272, %v223
        %v274 = vmax.bf16 %v273, %v227
        %v275 = vmax.bf16 %v274, %v231
        %v276 = vmax.bf16 %v275, %v235
        %v277 = vmax.bf16 %v276, %v239
        %v278 = vmax.bf16 %v277, %v243
        %v279 = vmax.bf16 %v278, %v247
        %280 = vst [vmem:[%s210] sm:$0xff] %v255
        %281 = vst [vmem:[%s210 + $0x8] sm:$0xff] %v263
        %282 = vst [vmem:[%s210 + $0x10] sm:$0xff] %v271
        %283 = vst [vmem:[%s210 + $0x18] sm:$0xff] %v279
        %s284 = smul.u32 2, %s12
        %p285 = scmp.lt.s32.totalorder %s284, 3
        %s286 = scalar_select %p285, %s284, 3
        %s287 = smul.addr %s286, 4
        %s288 = smul.addr %s287, 4
        %s289 = scalar_lea.vmem %s1, %s288
        // Predicated region
        $region48: #{cnn_classifier_forward.11} parent=42 // pred_check
          %p290 = pneg %p56
        $region49: #{cnn_classifier_forward.11} parent=42 // pred_check_branch
          %292 = sbr.rel (%p290) target = $region51
        $region50: #{cnn_classifier_forward.11} parent=42 // pred_region
          %s293 = smul.u32 2, %s12
        $region51: #{cnn_classifier_forward.11} parent=42 // pred_fallthru
          _
      $region43: #{cnn_classifier_forward.11} parent=5 // pred_fallthru
        _
      %p294 = scmp.le.s32.totalorder 2, %s7
      // Predicated region
      $region52: #{cnn_classifier_forward.11} parent=5 // pred_check
        %p295 = pneg %p294
      $region53: #{cnn_classifier_forward.11} parent=5 // pred_check_branch
        %297 = sbr.rel (%p295) target = $region55
      $region54: #{cnn_classifier_forward.11} parent=5 // pred_region
        %s298 = ssub.s32 %s7, 2
        // Predicated region
        $region56: #{cnn_classifier_forward.11} parent=54 // pred_check
          %p299 = pneg %p62
        $region57: #{cnn_classifier_forward.11} parent=54 // pred_check_branch
          %301 = sbr.rel (%p299) target = $region59
        $region58: #{cnn_classifier_forward.11} parent=54 // pred_region
          %s302 = smul.u32 2, %s13
          %p303 = scmp.lt.s32.totalorder %s302, 3
          %s304 = scalar_select %p303, %s302, 3
          %s305 = smul.addr %s304, 4
          %s306 = smul.addr %s305, 4
          %s307 = scalar_lea.vmem %s1, %s306
        $region59: #{cnn_classifier_forward.11} parent=54 // pred_fallthru
          _
      $region55: #{cnn_classifier_forward.11} parent=5 // pred_fallthru
        _
    $region6: #{cnn_classifier_forward.11} parent=1 // loop_footer
      %s11 = sadd.s32 1, %s7
    $region7: #{cnn_classifier_forward.11} parent=1 // loop_footer_branch
      %6 = sbr.rel target = $region3
    $region8: #{cnn_classifier_forward.11} parent=1 // loop_exit
      _

// kernel: cnn_classifier_forward.12
$region0: #{cnn_classifier_forward.12}
  #allocation0 [shape = 'u32[]', space=smem, size = 0x4, offset = 0x4, fixed_abs, tag = 'smem constant byte address 0x4 - core index']
  #allocation1 [shape = 'u32[144,128]{1,0:T(1,128)}', space=vmem, size = 0x12000, scoped, tag = 'internal scratch']
  %s0 = inlined_call_operand.vmem [shape: bf16[128,384], index: 0, kind: input, shape index: {}]
  %s1 = inlined_call_operand.vmem [shape: bf16[384,128], index: 1, kind: input, shape index: {}]
  %s2 = inlined_call_operand.vmem [shape: f32[1,128], index: 2, kind: input, shape index: {}]
  %s3 = inlined_call_operand.vmem [shape: bf16[128,128], index: 3, kind: output, shape index: {}]
  %s4 = sld [smem:[#allocation0]]
  $region22: #{cnn_classifier_forward.12} parent=0
    _
  %s6 = ssub.s32 1, %s4
  %s7 = scalar_select 0, %s6, %s4
  // Predicated region
  $region2: #{cnn_classifier_forward.12} parent=0 // pred_check
    _
  $region3: #{cnn_classifier_forward.12} parent=0 // pred_check_branch
    %9 = sbr.rel (0) target = $region5
  $region4: #{cnn_classifier_forward.12} parent=0 // pred_region
    _
  $region5: #{cnn_classifier_forward.12} parent=0 // pred_fallthru
    _
  // Predicated region
  $region6: #{cnn_classifier_forward.12} parent=0 // pred_check
    _
  $region7: #{cnn_classifier_forward.12} parent=0 // pred_check_branch
    %11 = sbr.rel (0) target = $region9
  $region8: #{cnn_classifier_forward.12} parent=0 // pred_region
    _
  $region9: #{cnn_classifier_forward.12} parent=0 // pred_fallthru
    _
  // Predicated region
  $region10: #{cnn_classifier_forward.12} parent=0 // pred_check
    _
  $region11: #{cnn_classifier_forward.12} parent=0 // pred_check_branch
    %13 = sbr.rel (0) target = $region13
  $region12: #{cnn_classifier_forward.12} parent=0 // pred_region
    _
  $region13: #{cnn_classifier_forward.12} parent=0 // pred_fallthru
    _
  %v15 = vld [vmem:[%s0] sm:$0xff]
  %v16 = vld [vmem:[%s0 + $0x8] sm:$0xf]
  %v17 = vld [vmem:[%s0 + $0xc] sm:$0xff]
  %v18 = vld [vmem:[%s0 + $0x14] sm:$0xf]
  %v19 = vld [vmem:[%s0 + $0x18] sm:$0xff]
  %v20 = vld [vmem:[%s0 + $0x20] sm:$0xf]
  %v21 = vld [vmem:[%s0 + $0x24] sm:$0xff]
  %v22 = vld [vmem:[%s0 + $0x2c] sm:$0xf]
  %v23 = vld [vmem:[%s0 + $0x30] sm:$0xff]
  %v24 = vld [vmem:[%s0 + $0x38] sm:$0xf]
  %v25 = vld [vmem:[%s0 + $0x3c] sm:$0xff]
  %v26 = vld [vmem:[%s0 + $0x44] sm:$0xf]
  %v27 = vld [vmem:[%s0 + $0x48] sm:$0xff]
  %v28 = vld [vmem:[%s0 + $0x50] sm:$0xf]
  %v29 = vld [vmem:[%s0 + $0x54] sm:$0xff]
  %v30 = vld [vmem:[%s0 + $0x5c] sm:$0xf]
  %v31 = vld [vmem:[%s0 + $0x60] sm:$0xff]
  %v32 = vld [vmem:[%s0 + $0x68] sm:$0xf]
  %v33 = vld [vmem:[%s0 + $0x6c] sm:$0xff]
  %v34 = vld [vmem:[%s0 + $0x74] sm:$0xf]
  %v35 = vld [vmem:[%s0 + $0x78] sm:$0xff]
  %v36 = vld [vmem:[%s0 + $0x80] sm:$0xf]
  %v37 = vld [vmem:[%s0 + $0x84] sm:$0xff]
  %v38 = vld [vmem:[%s0 + $0x8c] sm:$0xf]
  %v39 = vld [vmem:[%s0 + $0x90] sm:$0xff]
  %v40 = vld [vmem:[%s0 + $0x98] sm:$0xf]
  %v41 = vld [vmem:[%s0 + $0x9c] sm:$0xff]
  %v42 = vld [vmem:[%s0 + $0xa4] sm:$0xf]
  %v43 = vld [vmem:[%s0 + $0xa8] sm:$0xff]
  %v44 = vld [vmem:[%s0 + $0xb0] sm:$0xf]
  %v45 = vld [vmem:[%s0 + $0xb4] sm:$0xff]
  %v46 = vld [vmem:[%s0 + $0xbc] sm:$0xf]
  %v47 = vld [vmem:[%s1] sm:$0xf]
  %v48 = vld [vmem:[%s1 + $0x4] sm:$0xf]
  %v49 = vld [vmem:[%s1 + $0x8] sm:$0xf]
  %v50 = vld [vmem:[%s1 + $0xc] sm:$0xf]
  %v51 = vld [vmem:[%s1 + $0x10] sm:$0xf]
  %v52 = vld [vmem:[%s1 + $0x14] sm:$0xf]
  %v53 = vld [vmem:[%s1 + $0x18] sm:$0xf]
  %v54 = vld [vmem:[%s1 + $0x1c] sm:$0xf]
  %v55 = vld [vmem:[%s1 + $0x20] sm:$0xf]
  %v56 = vld [vmem:[%s1 + $0x24] sm:$0xf]
  %v57 = vld [vmem:[%s1 + $0x28] sm:$0xf]
  %v58 = vld [vmem:[%s1 + $0x2c] sm:$0xf]
  %v59 = vld [vmem:[%s1 + $0x30] sm:$0xf]
  %v60 = vld [vmem:[%s1 + $0x34] sm:$0xf]
  %v61 = vld [vmem:[%s1 + $0x38] sm:$0xf]
  %v62 = vld [vmem:[%s1 + $0x3c] sm:$0xf]
  %v63 = vld [vmem:[%s1 + $0x40] sm:$0xf]
  %v64 = vld [vmem:[%s1 + $0x44] sm:$0xf]
  %v65 = vld [vmem:[%s1 + $0x48] sm:$0xf]
  %v66 = vld [vmem:[%s1 + $0x4c] sm:$0xf]
  %v67 = vld [vmem:[%s1 + $0x50] sm:$0xf]
  %v68 = vld [vmem:[%s1 + $0x54] sm:$0xf]
  %v69 = vld [vmem:[%s1 + $0x58] sm:$0xf]
  %v70 = vld [vmem:[%s1 + $0x5c] sm:$0xf]
  %v71 = vld [vmem:[%s1 + $0x60] sm:$0xf]
  %v72 = vld [vmem:[%s1 + $0x64] sm:$0xf]
  %v73 = vld [vmem:[%s1 + $0x68] sm:$0xf]
  %v74 = vld [vmem:[%s1 + $0x6c] sm:$0xf]
  %v75 = vld [vmem:[%s1 + $0x70] sm:$0xf]
  %v76 = vld [vmem:[%s1 + $0x74] sm:$0xf]
  %v77 = vld [vmem:[%s1 + $0x78] sm:$0xf]
  %v78 = vld [vmem:[%s1 + $0x7c] sm:$0xf]
  %v79 = vld [vmem:[%s1 + $0x80] sm:$0xf]
  %v80 = vld [vmem:[%s1 + $0x84] sm:$0xf]
  %v81 = vld [vmem:[%s1 + $0x88] sm:$0xf]
  %v82 = vld [vmem:[%s1 + $0x8c] sm:$0xf]
  %v83 = vld [vmem:[%s1 + $0x90] sm:$0xf]
  %v84 = vld [vmem:[%s1 + $0x94] sm:$0xf]
  %v85 = vld [vmem:[%s1 + $0x98] sm:$0xf]
  %v86 = vld [vmem:[%s1 + $0x9c] sm:$0xf]
  %v87 = vld [vmem:[%s1 + $0xa0] sm:$0xf]
  %v88 = vld [vmem:[%s1 + $0xa4] sm:$0xf]
  %v89 = vld [vmem:[%s1 + $0xa8] sm:$0xf]
  %v90 = vld [vmem:[%s1 + $0xac] sm:$0xf]
  %v91 = vld [vmem:[%s1 + $0xb0] sm:$0xf]
  %v92 = vld [vmem:[%s1 + $0xb4] sm:$0xf]
  %v93 = vld [vmem:[%s1 + $0xb8] sm:$0xf]
  %v94 = vld [vmem:[%s1 + $0xbc] sm:$0xf]
  %v95 = vld [vmem:[%s2] sm:$0x1]
  %v97 = vlaneseq
  %v98 = vshrl.u32 %v97, 7
  %v99 = vsub.s32 0, %v98
  %v100 = vrot.slane %v95, %v99
  %v134 = vunpack.c.l.b16 %v15
  %v135 = vunpack.c.h.b16 %v15
  %v136 = vunpack.c.l.b16 %v16
  %v137 = vunpack.c.l.b16 %v17
  %v138 = vunpack.c.h.b16 %v17
  %v139 = vunpack.c.l.b16 %v18
  %v140 = vunpack.c.l.b16 %v19
  %v141 = vunpack.c.h.b16 %v19
  %v142 = vunpack.c.l.b16 %v20
  %v143 = vunpack.c.l.b16 %v21
  %v144 = vunpack.c.h.b16 %v21
  %v145 = vunpack.c.l.b16 %v22
  %v146 = vunpack.c.l.b16 %v23
  %v147 = vunpack.c.h.b16 %v23
  %v148 = vunpack.c.l.b16 %v24
  %v149 = vunpack.c.l.b16 %v25
  %v150 = vunpack.c.h.b16 %v25
  %v151 = vunpack.c.l.b16 %v26
  %v152 = vunpack.c.l.b16 %v27
  %v153 = vunpack.c.h.b16 %v27
  %v154 = vunpack.c.l.b16 %v28
  %v155 = vunpack.c.l.b16 %v29
  %v156 = vunpack.c.h.b16 %v29
  %v157 = vunpack.c.l.b16 %v30
  %v158 = vunpack.c.l.b16 %v31
  %v159 = vunpack.c.h.b16 %v31
  %v160 = vunpack.c.l.b16 %v32
  %v161 = vunpack.c.l.b16 %v33
  %v162 = vunpack.c.h.b16 %v33
  %v163 = vunpack.c.l.b16 %v34
  %v164 = vunpack.c.l.b16 %v35
  %v165 = vunpack.c.h.b16 %v35
  %v166 = vunpack.c.l.b16 %v36
  %v167 = vunpack.c.l.b16 %v37
  %v168 = vunpack.c.h.b16 %v37
  %v169 = vunpack.c.l.b16 %v38
  %v170 = vunpack.c.l.b16 %v39
  %v171 = vunpack.c.h.b16 %v39
  %v172 = vunpack.c.l.b16 %v40
  %v173 = vunpack.c.l.b16 %v41
  %v174 = vunpack.c.h.b16 %v41
  %v175 = vunpack.c.l.b16 %v42
  %v176 = vunpack.c.l.b16 %v43
  %v177 = vunpack.c.h.b16 %v43
  %v178 = vunpack.c.l.b16 %v44
  %v179 = vunpack.c.l.b16 %v45
  %v180 = vunpack.c.h.b16 %v45
  %v181 = vunpack.c.l.b16 %v46
  %v182 = vpack.c.b16 %v137, %v134
  %v183 = vpack.c.b16 %v138, %v135
  %v184 = vpack.c.b16 %v139, %v136
  %v185 = vpack.c.b16 %v143, %v140
  %v186 = vpack.c.b16 %v144, %v141
  %v187 = vpack.c.b16 %v145, %v142
  %v188 = vpack.c.b16 %v149, %v146
  %v189 = vpack.c.b16 %v150, %v147
  %v190 = vpack.c.b16 %v151, %v148
  %v191 = vpack.c.b16 %v155, %v152
  %v192 = vpack.c.b16 %v156, %v153
  %v193 = vpack.c.b16 %v157, %v154
  %v194 = vpack.c.b16 %v161, %v158
  %v195 = vpack.c.b16 %v162, %v159
  %v196 = vpack.c.b16 %v163, %v160
  %v197 = vpack.c.b16 %v167, %v164
  %v198 = vpack.c.b16 %v168, %v165
  %v199 = vpack.c.b16 %v169, %v166
  %v200 = vpack.c.b16 %v173, %v170
  %v201 = vpack.c.b16 %v174, %v171
  %v202 = vpack.c.b16 %v175, %v172
  %v203 = vpack.c.b16 %v179, %v176
  %v204 = vpack.c.b16 %v180, %v177
  %v205 = vpack.c.b16 %v181, %v178
  %v278 = vunpack.c.l.b16 %v47
  %v279 = vunpack.c.l.b16 %v48
  %v280 = vunpack.c.l.b16 %v49
  %v281 = vunpack.c.l.b16 %v50
  %v282 = vunpack.c.l.b16 %v51
  %v283 = vunpack.c.l.b16 %v52
  %v284 = vunpack.c.l.b16 %v53
  %v285 = vunpack.c.l.b16 %v54
  %v286 = vunpack.c.l.b16 %v55
  %v287 = vunpack.c.l.b16 %v56
  %v288 = vunpack.c.l.b16 %v57
  %v289 = vunpack.c.l.b16 %v58
  %v290 = vunpack.c.l.b16 %v59
  %v291 = vunpack.c.l.b16 %v60
  %v292 = vunpack.c.l.b16 %v61
  %v293 = vunpack.c.l.b16 %v62
  %v294 = vunpack.c.l.b16 %v63
  %v295 = vunpack.c.l.b16 %v64
  %v296 = vunpack.c.l.b16 %v65
  %v297 = vunpack.c.l.b16 %v66
  %v298 = vunpack.c.l.b16 %v67
  %v299 = vunpack.c.l.b16 %v68
  %v300 = vunpack.c.l.b16 %v69
  %v301 = vunpack.c.l.b16 %v70
  %v302 = vunpack.c.l.b16 %v71
  %v303 = vunpack.c.l.b16 %v72
  %v304 = vunpack.c.l.b16 %v73
  %v305 = vunpack.c.l.b16 %v74
  %v306 = vunpack.c.l.b16 %v75
  %v307 = vunpack.c.l.b16 %v76
  %v308 = vunpack.c.l.b16 %v77
  %v309 = vunpack.c.l.b16 %v78
  %v310 = vunpack.c.l.b16 %v79
  %v311 = vunpack.c.l.b16 %v80
  %v312 = vunpack.c.l.b16 %v81
  %v313 = vunpack.c.l.b16 %v82
  %v314 = vunpack.c.l.b16 %v83
  %v315 = vunpack.c.l.b16 %v84
  %v316 = vunpack.c.l.b16 %v85
  %v317 = vunpack.c.l.b16 %v86
  %v318 = vunpack.c.l.b16 %v87
  %v319 = vunpack.c.l.b16 %v88
  %v320 = vunpack.c.l.b16 %v89
  %v321 = vunpack.c.l.b16 %v90
  %v322 = vunpack.c.l.b16 %v91
  %v323 = vunpack.c.l.b16 %v92
  %v324 = vunpack.c.l.b16 %v93
  %v325 = vunpack.c.l.b16 %v94
  %v326 = vpack.c.b16 %v279, %v278
  %v327 = vpack.c.b16 %v281, %v280
  %v328 = vpack.c.b16 %v283, %v282
  %v329 = vpack.c.b16 %v285, %v284
  %v330 = vpack.c.b16 %v287, %v286
  %v331 = vpack.c.b16 %v289, %v288
  %v332 = vpack.c.b16 %v291, %v290
  %v333 = vpack.c.b16 %v293, %v292
  %v334 = vpack.c.b16 %v295, %v294
  %v335 = vpack.c.b16 %v297, %v296
  %v336 = vpack.c.b16 %v299, %v298
  %v337 = vpack.c.b16 %v301, %v300
  %v338 = vpack.c.b16 %v303, %v302
  %v339 = vpack.c.b16 %v305, %v304
  %v340 = vpack.c.b16 %v307, %v306
  %v341 = vpack.c.b16 %v309, %v308
  %v342 = vpack.c.b16 %v311, %v310
  %v343 = vpack.c.b16 %v313, %v312
  %v344 = vpack.c.b16 %v315, %v314
  %v345 = vpack.c.b16 %v317, %v316
  %v346 = vpack.c.b16 %v319, %v318
  %v347 = vpack.c.b16 %v321, %v320
  %v348 = vpack.c.b16 %v323, %v322
  %v349 = vpack.c.b16 %v325, %v324
  %374 = vmatprep.subr.bf16.mxu0 0
  %375 = vmatpush1.bf16.msra.mxu0 %v333
  %376 = vmatprep.subr.bf16.mxu0 0
  %377 = vmatpush1.bf16.msra.mxu0 %v332
  %378 = vmatprep.subr.bf16.mxu0 0
  %379 = vmatpush1.bf16.msra.mxu0 %v331
  %380 = vmatprep.subr.bf16.mxu0 0
  %381 = vmatpush1.bf16.msra.mxu0 %v330
  %382 = vmatprep.subr.bf16.mxu0 0
  %383 = vmatpush1.bf16.msra.mxu0 %v329
  %384 = vmatprep.subr.bf16.mxu0 0
  %385 = vmatpush1.bf16.msra.mxu0 %v328
  %386 = vmatprep.subr.bf16.mxu0 0
  %387 = vmatpush1.bf16.msra.mxu0 %v327
  %388 = vmatprep.subr.bf16.mxu0 0
  %389 = vmatpush1.bf16.msra.mxu0 %v326
  %390 = vmatprep.subr.bf16.mxu0 0
  %391 = vmatpush2.bf16.msra.mxu0 %v341
  %392 = vmatprep.subr.bf16.mxu0 0
  %393 = vmatpush2.bf16.msra.mxu0 %v340
  %394 = vmatprep.subr.bf16.mxu0 0
  %395 = vmatpush2.bf16.msra.mxu0 %v339
  %396 = vmatprep.subr.bf16.mxu0 0
  %397 = vmatpush2.bf16.msra.mxu0 %v338
  %398 = vmatprep.subr.bf16.mxu0 0
  %399 = vmatpush2.bf16.msra.mxu0 %v337
  %400 = vmatprep.subr.bf16.mxu0 0
  %401 = vmatpush2.bf16.msra.mxu0 %v336
  %402 = vmatprep.subr.bf16.mxu0 0
  %403 = vmatpush2.bf16.msra.mxu0 %v335
  %404 = vmatprep.subr.bf16.mxu0 0
  %405 = vmatpush2.bf16.msra.mxu0 %v334
  %406 = vmatprep.mubr.bf16.mxu0 %v183
  %407 = vmatmul.mubr.bf16.gmra.mxu0 %v182
  %v408 = vpop.f32.mrf.mxu0
  %v409 = vadd.f32 %v100, %v408
  %v410 = vpop.f32.mrf.mxu0
  %v411 = vpop.f32.mrf.mxu0
  %v412 = vadd.f32 %v100, %v411
  %v413 = vpop.f32.mrf.mxu0
  %414 = vmatprep.mubr.bf16.mxu0 %v186
  %415 = vmatmul.mubr.bf16.gmra.mxu0 %v185
  %v416 = vpop.f32.mrf.mxu0
  %v417 = vadd.f32 %v100, %v416
  %v418 = vpop.f32.mrf.mxu0
  %v419 = vpop.f32.mrf.mxu0
  %v420 = vadd.f32 %v100, %v419
  %v421 = vpop.f32.mrf.mxu0
  %422 = vmatprep.mubr.bf16.mxu0 %v189
  %423 = vmatmul.mubr.bf16.gmra.mxu0 %v188
  %v424 = vpop.f32.mrf.mxu0
  %v425 = vadd.f32 %v100, %v424
  %v426 = vpop.f32.mrf.mxu0
  %v427 = vpop.f32.mrf.mxu0
  %v428 = vadd.f32 %v100, %v427
  %v429 = vpop.f32.mrf.mxu0
  %430 = vmatprep.mubr.bf16.mxu0 %v192
  %431 = vmatmul.mubr.bf16.gmra.mxu0 %v191
  %v432 = vpop.f32.mrf.mxu0
  %v433 = vadd.f32 %v100, %v432
  %v434 = vpop.f32.mrf.mxu0
  %v435 = vpop.f32.mrf.mxu0
  %v436 = vadd.f32 %v100, %v435
  %v437 = vpop.f32.mrf.mxu0
  %438 = vmatprep.mubr.bf16.mxu0 %v195
  %439 = vmatmul.mubr.bf16.gmra.mxu0 %v194
  %v440 = vpop.f32.mrf.mxu0
  %v441 = vadd.f32 %v100, %v440
  %v442 = vpop.f32.mrf.mxu0
  %v443 = vpop.f32.mrf.mxu0
  %v444 = vadd.f32 %v100, %v443
  %v445 = vpop.f32.mrf.mxu0
  %446 = vmatprep.mubr.bf16.mxu0 %v198
  %447 = vmatmul.mubr.bf16.gmra.mxu0 %v197
  %v448 = vpop.f32.mrf.mxu0
  %v449 = vadd.f32 %v100, %v448
  %v450 = vpop.f32.mrf.mxu0
  %v451 = vpop.f32.mrf.mxu0
  %v452 = vadd.f32 %v100, %v451
  %v453 = vpop.f32.mrf.mxu0
  %454 = vmatprep.mubr.bf16.mxu0 %v201
  %455 = vmatmul.mubr.bf16.gmra.mxu0 %v200
  %v456 = vpop.f32.mrf.mxu0
  %v457 = vadd.f32 %v100, %v456
  %v458 = vpop.f32.mrf.mxu0
  %v459 = vpop.f32.mrf.mxu0
  %v460 = vadd.f32 %v100, %v459
  %v461 = vpop.f32.mrf.mxu0
  %462 = vmatprep.mubr.bf16.mxu0 %v204
  %463 = vmatmul.mubr.bf16.gmra.mxu0 %v203
  %v464 = vpop.f32.mrf.mxu0
  %v465 = vadd.f32 %v100, %v464
  %v466 = vpop.f32.mrf.mxu0
  %v467 = vpop.f32.mrf.mxu0
  %v468 = vadd.f32 %v100, %v467
  %v469 = vpop.f32.mrf.mxu0
  %470 = vdwg.mxu0
  %471 = vmatprep.subr.bf16.mxu0 0
  %472 = vmatpush1.bf16.msra.mxu0 %v349
  %473 = vmatprep.subr.bf16.mxu0 0
  %474 = vmatpush1.bf16.msra.mxu0 %v348
  %475 = vmatprep.subr.bf16.mxu0 0
  %476 = vmatpush1.bf16.msra.mxu0 %v347
  %477 = vmatprep.subr.bf16.mxu0 0
  %478 = vmatpush1.bf16.msra.mxu0 %v346
  %479 = vmatprep.subr.bf16.mxu0 0
  %480 = vmatpush1.bf16.msra.mxu0 %v345
  %481 = vmatprep.subr.bf16.mxu0 0
  %482 = vmatpush1.bf16.msra.mxu0 %v344
  %483 = vmatprep.subr.bf16.mxu0 0
  %484 = vmatpush1.bf16.msra.mxu0 %v343
  %485 = vmatprep.subr.bf16.mxu0 0
  %486 = vmatpush1.bf16.msra.mxu0 %v342
  %487 = vmatprep.subr.bf16.mxu0 0
  %488 = vmatpush2.bf16.msra.mxu0 0
  %489 = vmatprep.subr.bf16.mxu0 0
  %490 = vmatpush2.bf16.msra.mxu0 0
  %491 = vmatprep.subr.bf16.mxu0 0
  %492 = vmatpush2.bf16.msra.mxu0 0
  %493 = vmatprep.subr.bf16.mxu0 0
  %494 = vmatpush2.bf16.msra.mxu0 0
  %495 = vmatprep.subr.bf16.mxu0 0
  %496 = vmatpush2.bf16.msra.mxu0 0
  %497 = vmatprep.subr.bf16.mxu0 0
  %498 = vmatpush2.bf16.msra.mxu0 0
  %499 = vmatprep.subr.bf16.mxu0 0
  %500 = vmatpush2.bf16.msra.mxu0 0
  %501 = vmatprep.subr.bf16.mxu0 0
  %502 = vmatpush2.bf16.msra.mxu0 0
  %503 = vmatprep.mubr.bf16.mxu0 0
  %504 = vmatmul.mubr.bf16.gmra.mxu0 %v184
  %v505 = vpop.f32.mrf.mxu0
  %v506 = vadd.f32 %v409, %v505
  %v507 = vpop.f32.mrf.mxu0
  %v508 = vpop.f32.mrf.mxu0
  %v509 = vadd.f32 %v412, %v508
  %v510 = vpop.f32.mrf.mxu0
  %511 = vmatprep.mubr.bf16.mxu0 0
  %512 = vmatmul.mubr.bf16.gmra.mxu0 %v187
  %v513 = vpop.f32.mrf.mxu0
  %v514 = vadd.f32 %v417, %v513
  %v515 = vpop.f32.mrf.mxu0
  %v516 = vpop.f32.mrf.mxu0
  %v517 = vadd.f32 %v420, %v516
  %v518 = vpop.f32.mrf.mxu0
  %519 = vmatprep.mubr.bf16.mxu0 0
  %520 = vmatmul.mubr.bf16.gmra.mxu0 %v190
  %v521 = vpop.f32.mrf.mxu0
  %v522 = vadd.f32 %v425, %v521
  %v523 = vpop.f32.mrf.mxu0
  %v524 = vpop.f32.mrf.mxu0
  %v525 = vadd.f32 %v428, %v524
  %v526 = vpop.f32.mrf.mxu0
  %527 = vmatprep.mubr.bf16.mxu0 0
  %528 = vmatmul.mubr.bf16.gmra.mxu0 %v193
  %v529 = vpop.f32.mrf.mxu0
  %v530 = vadd.f32 %v433, %v529
  %v531 = vpop.f32.mrf.mxu0
  %v532 = vpop.f32.mrf.mxu0
  %v533 = vadd.f32 %v436, %v532
  %v534 = vpop.f32.mrf.mxu0
  %535 = vmatprep.mubr.bf16.mxu0 0
  %536 = vmatmul.mubr.bf16.gmra.mxu0 %v196
  %v537 = vpop.f32.mrf.mxu0
  %v538 = vadd.f32 %v441, %v537
  %v539 = vpop.f32.mrf.mxu0
  %v540 = vpop.f32.mrf.mxu0
  %v541 = vadd.f32 %v444, %v540
  %v542 = vpop.f32.mrf.mxu0
  %543 = vmatprep.mubr.bf16.mxu0 0
  %544 = vmatmul.mubr.bf16.gmra.mxu0 %v199
  %v545 = vpop.f32.mrf.mxu0
  %v546 = vadd.f32 %v449, %v545
  %v547 = vpop.f32.mrf.mxu0
  %v548 = vpop.f32.mrf.mxu0
  %v549 = vadd.f32 %v452, %v548
  %v550 = vpop.f32.mrf.mxu0
  %551 = vmatprep.mubr.bf16.mxu0 0
  %552 = vmatmul.mubr.bf16.gmra.mxu0 %v202
  %v553 = vpop.f32.mrf.mxu0
  %v554 = vadd.f32 %v457, %v553
  %v555 = vpop.f32.mrf.mxu0
  %v556 = vpop.f32.mrf.mxu0
  %v557 = vadd.f32 %v460, %v556
  %v558 = vpop.f32.mrf.mxu0
  %559 = vmatprep.mubr.bf16.mxu0 0
  %560 = vmatmul.mubr.bf16.gmra.mxu0 %v205
  %v561 = vpop.f32.mrf.mxu0
  %v562 = vadd.f32 %v465, %v561
  %v563 = vpop.f32.mrf.mxu0
  %v564 = vpop.f32.mrf.mxu0
  %v565 = vadd.f32 %v468, %v564
  %v566 = vpop.f32.mrf.mxu0
  %567 = vdwg.mxu0
  %v568 = vmax.f32 %v506, 0.0
  %v569 = vmax.f32 %v509, 0.0
  %v570 = vmax.f32 %v514, 0.0
  %v571 = vmax.f32 %v517, 0.0
  %v572 = vmax.f32 %v522, 0.0
  %v573 = vmax.f32 %v525, 0.0
  %v574 = vmax.f32 %v530, 0.0
  %v575 = vmax.f32 %v533, 0.0
  %v576 = vmax.f32 %v538, 0.0
  %v577 = vmax.f32 %v541, 0.0
  %v578 = vmax.f32 %v546, 0.0
  %v579 = vmax.f32 %v549, 0.0
  %v580 = vmax.f32 %v554, 0.0
  %v581 = vmax.f32 %v557, 0.0
  %v582 = vmax.f32 %v562, 0.0
  %v583 = vmax.f32 %v565, 0.0
  %v584 = vpack.c.bf16 %v569, %v568
  %v585 = vpack.c.bf16 %v571, %v570
  %v586 = vpack.c.bf16 %v573, %v572
  %v587 = vpack.c.bf16 %v575, %v574
  %v588 = vpack.c.bf16 %v577, %v576
  %v589 = vpack.c.bf16 %v579, %v578
  %v590 = vpack.c.bf16 %v581, %v580
  %v591 = vpack.c.bf16 %v583, %v582
  %v600 = vunpack.c.l.b16 %v584
  %v601 = vunpack.c.h.b16 %v584
  %v602 = vunpack.c.l.b16 %v585
  %v603 = vunpack.c.h.b16 %v585
  %v604 = vunpack.c.l.b16 %v586
  %v605 = vunpack.c.h.b16 %v586
  %v606 = vunpack.c.l.b16 %v587
  %v607 = vunpack.c.h.b16 %v587
  %v608 = vunpack.c.l.b16 %v588
  %v609 = vunpack.c.h.b16 %v588
  %v610 = vunpack.c.l.b16 %v589
  %v611 = vunpack.c.h.b16 %v589
  %v612 = vunpack.c.l.b16 %v590
  %v613 = vunpack.c.h.b16 %v590
  %v614 = vunpack.c.l.b16 %v591
  %v615 = vunpack.c.h.b16 %v591
  %v616 = vpack.c.b16 %v600, %v600
  %v617 = vpack.c.b16 %v601, %v601
  %v618 = vpack.c.b16 %v602, %v602
  %v619 = vpack.c.b16 %v603, %v603
  %v620 = vpack.c.b16 %v604, %v604
  %v621 = vpack.c.b16 %v605, %v605
  %v622 = vpack.c.b16 %v606, %v606
  %v623 = vpack.c.b16 %v607, %v607
  %v624 = vpack.c.b16 %v608, %v608
  %v625 = vpack.c.b16 %v609, %v609
  %v626 = vpack.c.b16 %v610, %v610
  %v627 = vpack.c.b16 %v611, %v611
  %v628 = vpack.c.b16 %v612, %v612
  %v629 = vpack.c.b16 %v613, %v613
  %v630 = vpack.c.b16 %v614, %v614
  %v631 = vpack.c.b16 %v615, %v615
  %648 = vst [vmem:[%s3] sm:$0xf] %v616
  %649 = vst [vmem:[%s3 + $0x4] sm:$0xf] %v617
  %650 = vst [vmem:[%s3 + $0x8] sm:$0xf] %v618
  %651 = vst [vmem:[%s3 + $0xc] sm:$0xf] %v619
  %652 = vst [vmem:[%s3 + $0x10] sm:$0xf] %v620
  %653 = vst [vmem:[%s3 + $0x14] sm:$0xf] %v621
  %654 = vst [vmem:[%s3 + $0x18] sm:$0xf] %v622
  %655 = vst [vmem:[%s3 + $0x1c] sm:$0xf] %v623
  %656 = vst [vmem:[%s3 + $0x20] sm:$0xf] %v624
  %657 = vst [vmem:[%s3 + $0x24] sm:$0xf] %v625
  %658 = vst [vmem:[%s3 + $0x28] sm:$0xf] %v626
  %659 = vst [vmem:[%s3 + $0x2c] sm:$0xf] %v627
  %660 = vst [vmem:[%s3 + $0x30] sm:$0xf] %v628
  %661 = vst [vmem:[%s3 + $0x34] sm:$0xf] %v629
  %662 = vst [vmem:[%s3 + $0x38] sm:$0xf] %v630
  %663 = vst [vmem:[%s3 + $0x3c] sm:$0xf] %v631
  // Predicated region
  $region14: #{cnn_classifier_forward.12} parent=0 // pred_check
    _
  $region15: #{cnn_classifier_forward.12} parent=0 // pred_check_branch
    %665 = sbr.rel (0) target = $region17
  $region16: #{cnn_classifier_forward.12} parent=0 // pred_region
    _
  $region17: #{cnn_classifier_forward.12} parent=0 // pred_fallthru
    _
  // Predicated region
  $region18: #{cnn_classifier_forward.12} parent=0 // pred_check
    _
  $region19: #{cnn_classifier_forward.12} parent=0 // pred_check_branch
    %667 = sbr.rel (0) target = $region21
  $region20: #{cnn_classifier_forward.12} parent=0 // pred_region
    _
  $region21: #{cnn_classifier_forward.12} parent=0 // pred_fallthru
    _

// kernel: cnn_classifier_forward.14
$region0: #{cnn_classifier_forward.14}
  #allocation0 [shape = 'u32[]', space=smem, size = 0x4, offset = 0x4, fixed_abs, tag = 'smem constant byte address 0x4 - core index']
  #allocation1 [shape = 'u32[144,128]{1,0:T(1,128)}', space=vmem, size = 0x12000, scoped, tag = 'internal scratch']
  %s0 = inlined_call_operand.vmem [shape: bf16[32,384], index: 0, kind: input, shape index: {}]
  %s1 = inlined_call_operand.vmem [shape: bf16[384,128], index: 1, kind: input, shape index: {}]
  %s2 = inlined_call_operand.vmem [shape: f32[1,128], index: 2, kind: input, shape index: {}]
  %s3 = inlined_call_operand.vmem [shape: bf16[32,128], index: 3, kind: output, shape index: {}]
  %s4 = sld [smem:[#allocation0]]
  $region22: #{cnn_classifier_forward.14} parent=0
    _
  %s6 = ssub.s32 1, %s4
  %s7 = scalar_select 0, %s6, %s4
  // Predicated region
  $region2: #{cnn_classifier_forward.14} parent=0 // pred_check
    _
  $region3: #{cnn_classifier_forward.14} parent=0 // pred_check_branch
    %9 = sbr.rel (0) target = $region5
  $region4: #{cnn_classifier_forward.14} parent=0 // pred_region
    _
  $region5: #{cnn_classifier_forward.14} parent=0 // pred_fallthru
    _
  // Predicated region
  $region6: #{cnn_classifier_forward.14} parent=0 // pred_check
    _
  $region7: #{cnn_classifier_forward.14} parent=0 // pred_check_branch
    %11 = sbr.rel (0) target = $region9
  $region8: #{cnn_classifier_forward.14} parent=0 // pred_region
    _
  $region9: #{cnn_classifier_forward.14} parent=0 // pred_fallthru
    _
  // Predicated region
  $region10: #{cnn_classifier_forward.14} parent=0 // pred_check
    _
  $region11: #{cnn_classifier_forward.14} parent=0 // pred_check_branch
    %13 = sbr.rel (0) target = $region13
  $region12: #{cnn_classifier_forward.14} parent=0 // pred_region
    _
  $region13: #{cnn_classifier_forward.14} parent=0 // pred_fallthru
    _
  %v15 = vld [vmem:[%s0] sm:$0xff]
  %v16 = vld [vmem:[%s0 + $0x8] sm:$0xf]
  %v17 = vld [vmem:[%s0 + $0xc] sm:$0xff]
  %v18 = vld [vmem:[%s0 + $0x14] sm:$0xf]
  %v19 = vld [vmem:[%s0 + $0x18] sm:$0xff]
  %v20 = vld [vmem:[%s0 + $0x20] sm:$0xf]
  %v21 = vld [vmem:[%s0 + $0x24] sm:$0xff]
  %v22 = vld [vmem:[%s0 + $0x2c] sm:$0xf]
  %v23 = vld [vmem:[%s1] sm:$0xf]
  %v24 = vld [vmem:[%s1 + $0x4] sm:$0xf]
  %v25 = vld [vmem:[%s1 + $0x8] sm:$0xf]
  %v26 = vld [vmem:[%s1 + $0xc] sm:$0xf]
  %v27 = vld [vmem:[%s1 + $0x10] sm:$0xf]
  %v28 = vld [vmem:[%s1 + $0x14] sm:$0xf]
  %v29 = vld [vmem:[%s1 + $0x18] sm:$0xf]
  %v30 = vld [vmem:[%s1 + $0x1c] sm:$0xf]
  %v31 = vld [vmem:[%s1 + $0x20] sm:$0xf]
  %v32 = vld [vmem:[%s1 + $0x24] sm:$0xf]
  %v33 = vld [vmem:[%s1 + $0x28] sm:$0xf]
  %v34 = vld [vmem:[%s1 + $0x2c] sm:$0xf]
  %v35 = vld [vmem:[%s1 + $0x30] sm:$0xf]
  %v36 = vld [vmem:[%s1 + $0x34] sm:$0xf]
  %v37 = vld [vmem:[%s1 + $0x38] sm:$0xf]
  %v38 = vld [vmem:[%s1 + $0x3c] sm:$0xf]
  %v39 = vld [vmem:[%s1 + $0x40] sm:$0xf]
  %v40 = vld [vmem:[%s1 + $0x44] sm:$0xf]
  %v41 = vld [vmem:[%s1 + $0x48] sm:$0xf]
  %v42 = vld [vmem:[%s1 + $0x4c] sm:$0xf]
  %v43 = vld [vmem:[%s1 + $0x50] sm:$0xf]
  %v44 = vld [vmem:[%s1 + $0x54] sm:$0xf]
  %v45 = vld [vmem:[%s1 + $0x58] sm:$0xf]
  %v46 = vld [vmem:[%s1 + $0x5c] sm:$0xf]
  %v47 = vld [vmem:[%s1 + $0x60] sm:$0xf]
  %v48 = vld [vmem:[%s1 + $0x64] sm:$0xf]
  %v49 = vld [vmem:[%s1 + $0x68] sm:$0xf]
  %v50 = vld [vmem:[%s1 + $0x6c] sm:$0xf]
  %v51 = vld [vmem:[%s1 + $0x70] sm:$0xf]
  %v52 = vld [vmem:[%s1 + $0x74] sm:$0xf]
  %v53 = vld [vmem:[%s1 + $0x78] sm:$0xf]
  %v54 = vld [vmem:[%s1 + $0x7c] sm:$0xf]
  %v55 = vld [vmem:[%s1 + $0x80] sm:$0xf]
  %v56 = vld [vmem:[%s1 + $0x84] sm:$0xf]
  %v57 = vld [vmem:[%s1 + $0x88] sm:$0xf]
  %v58 = vld [vmem:[%s1 + $0x8c] sm:$0xf]
  %v59 = vld [vmem:[%s1 + $0x90] sm:$0xf]
  %v60 = vld [vmem:[%s1 + $0x94] sm:$0xf]
  %v61 = vld [vmem:[%s1 + $0x98] sm:$0xf]
  %v62 = vld [vmem:[%s1 + $0x9c] sm:$0xf]
  %v63 = vld [vmem:[%s1 + $0xa0] sm:$0xf]
  %v64 = vld [vmem:[%s1 + $0xa4] sm:$0xf]
  %v65 = vld [vmem:[%s1 + $0xa8] sm:$0xf]
  %v66 = vld [vmem:[%s1 + $0xac] sm:$0xf]
  %v67 = vld [vmem:[%s1 + $0xb0] sm:$0xf]
  %v68 = vld [vmem:[%s1 + $0xb4] sm:$0xf]
  %v69 = vld [vmem:[%s1 + $0xb8] sm:$0xf]
  %v70 = vld [vmem:[%s1 + $0xbc] sm:$0xf]
  %v71 = vld [vmem:[%s2] sm:$0x1]
  %v73 = vlaneseq
  %v74 = vshrl.u32 %v73, 7
  %v75 = vsub.s32 0, %v74
  %v76 = vrot.slane %v71, %v75
  %v86 = vunpack.c.l.b16 %v15
  %v87 = vunpack.c.h.b16 %v15
  %v88 = vunpack.c.l.b16 %v16
  %v89 = vunpack.c.l.b16 %v17
  %v90 = vunpack.c.h.b16 %v17
  %v91 = vunpack.c.l.b16 %v18
  %v92 = vunpack.c.l.b16 %v19
  %v93 = vunpack.c.h.b16 %v19
  %v94 = vunpack.c.l.b16 %v20
  %v95 = vunpack.c.l.b16 %v21
  %v96 = vunpack.c.h.b16 %v21
  %v97 = vunpack.c.l.b16 %v22
  %v98 = vpack.c.b16 %v89, %v86
  %v99 = vpack.c.b16 %v90, %v87
  %v100 = vpack.c.b16 %v91, %v88
  %v101 = vpack.c.b16 %v95, %v92
  %v102 = vpack.c.b16 %v96, %v93
  %v103 = vpack.c.b16 %v97, %v94
  %v158 = vunpack.c.l.b16 %v23
  %v159 = vunpack.c.l.b16 %v24
  %v160 = vunpack.c.l.b16 %v25
  %v161 = vunpack.c.l.b16 %v26
  %v162 = vunpack.c.l.b16 %v27
  %v163 = vunpack.c.l.b16 %v28
  %v164 = vunpack.c.l.b16 %v29
  %v165 = vunpack.c.l.b16 %v30
  %v166 = vunpack.c.l.b16 %v31
  %v167 = vunpack.c.l.b16 %v32
  %v168 = vunpack.c.l.b16 %v33
  %v169 = vunpack.c.l.b16 %v34
  %v170 = vunpack.c.l.b16 %v35
  %v171 = vunpack.c.l.b16 %v36
  %v172 = vunpack.c.l.b16 %v37
  %v173 = vunpack.c.l.b16 %v38
  %v174 = vunpack.c.l.b16 %v39
  %v175 = vunpack.c.l.b16 %v40
  %v176 = vunpack.c.l.b16 %v41
  %v177 = vunpack.c.l.b16 %v42
  %v178 = vunpack.c.l.b16 %v43
  %v179 = vunpack.c.l.b16 %v44
  %v180 = vunpack.c.l.b16 %v45
  %v181 = vunpack.c.l.b16 %v46
  %v182 = vunpack.c.l.b16 %v47
  %v183 = vunpack.c.l.b16 %v48
  %v184 = vunpack.c.l.b16 %v49
  %v185 = vunpack.c.l.b16 %v50
  %v186 = vunpack.c.l.b16 %v51
  %v187 = vunpack.c.l.b16 %v52
  %v188 = vunpack.c.l.b16 %v53
  %v189 = vunpack.c.l.b16 %v54
  %v190 = vunpack.c.l.b16 %v55
  %v191 = vunpack.c.l.b16 %v56
  %v192 = vunpack.c.l.b16 %v57
  %v193 = vunpack.c.l.b16 %v58
  %v194 = vunpack.c.l.b16 %v59
  %v195 = vunpack.c.l.b16 %v60
  %v196 = vunpack.c.l.b16 %v61
  %v197 = vunpack.c.l.b16 %v62
  %v198 = vunpack.c.l.b16 %v63
  %v199 = vunpack.c.l.b16 %v64
  %v200 = vunpack.c.l.b16 %v65
  %v201 = vunpack.c.l.b16 %v66
  %v202 = vunpack.c.l.b16 %v67
  %v203 = vunpack.c.l.b16 %v68
  %v204 = vunpack.c.l.b16 %v69
  %v205 = vunpack.c.l.b16 %v70
  %v206 = vpack.c.b16 %v159, %v158
  %v207 = vpack.c.b16 %v161, %v160
  %v208 = vpack.c.b16 %v163, %v162
  %v209 = vpack.c.b16 %v165, %v164
  %v210 = vpack.c.b16 %v167, %v166
  %v211 = vpack.c.b16 %v169, %v168
  %v212 = vpack.c.b16 %v171, %v170
  %v213 = vpack.c.b16 %v173, %v172
  %v214 = vpack.c.b16 %v175, %v174
  %v215 = vpack.c.b16 %v177, %v176
  %v216 = vpack.c.b16 %v179, %v178
  %v217 = vpack.c.b16 %v181, %v180
  %v218 = vpack.c.b16 %v183, %v182
  %v219 = vpack.c.b16 %v185, %v184
  %v220 = vpack.c.b16 %v187, %v186
  %v221 = vpack.c.b16 %v189, %v188
  %v222 = vpack.c.b16 %v191, %v190
  %v223 = vpack.c.b16 %v193, %v192
  %v224 = vpack.c.b16 %v195, %v194
  %v225 = vpack.c.b16 %v197, %v196
  %v226 = vpack.c.b16 %v199, %v198
  %v227 = vpack.c.b16 %v201, %v200
  %v228 = vpack.c.b16 %v203, %v202
  %v229 = vpack.c.b16 %v205, %v204
  %254 = vmatprep.subr.bf16.mxu0 0
  %255 = vmatpush1.bf16.msra.mxu0 %v213
  %256 = vmatprep.subr.bf16.mxu0 0
  %257 = vmatpush1.bf16.msra.mxu0 %v212
  %258 = vmatprep.subr.bf16.mxu0 0
  %259 = vmatpush1.bf16.msra.mxu0 %v211
  %260 = vmatprep.subr.bf16.mxu0 0
  %261 = vmatpush1.bf16.msra.mxu0 %v210
  %262 = vmatprep.subr.bf16.mxu0 0
  %263 = vmatpush1.bf16.msra.mxu0 %v209
  %264 = vmatprep.subr.bf16.mxu0 0
  %265 = vmatpush1.bf16.msra.mxu0 %v208
  %266 = vmatprep.subr.bf16.mxu0 0
  %267 = vmatpush1.bf16.msra.mxu0 %v207
  %268 = vmatprep.subr.bf16.mxu0 0
  %269 = vmatpush1.bf16.msra.mxu0 %v206
  %270 = vmatprep.subr.bf16.mxu0 0
  %271 = vmatpush2.bf16.msra.mxu0 %v221
  %272 = vmatprep.subr.bf16.mxu0 0
  %273 = vmatpush2.bf16.msra.mxu0 %v220
  %274 = vmatprep.subr.bf16.mxu0 0
  %275 = vmatpush2.bf16.msra.mxu0 %v219
  %276 = vmatprep.subr.bf16.mxu0 0
  %277 = vmatpush2.bf16.msra.mxu0 %v218
  %278 = vmatprep.subr.bf16.mxu0 0
  %279 = vmatpush2.bf16.msra.mxu0 %v217
  %280 = vmatprep.subr.bf16.mxu0 0
  %281 = vmatpush2.bf16.msra.mxu0 %v216
  %282 = vmatprep.subr.bf16.mxu0 0
  %283 = vmatpush2.bf16.msra.mxu0 %v215
  %284 = vmatprep.subr.bf16.mxu0 0
  %285 = vmatpush2.bf16.msra.mxu0 %v214
  %286 = vmatprep.mubr.bf16.mxu0 %v99
  %287 = vmatmul.mubr.bf16.gmra.mxu0 %v98
  %v288 = vpop.f32.mrf.mxu0
  %v289 = vadd.f32 %v76, %v288
  %v290 = vpop.f32.mrf.mxu0
  %v291 = vpop.f32.mrf.mxu0
  %v292 = vadd.f32 %v76, %v291
  %v293 = vpop.f32.mrf.mxu0
  %294 = vmatprep.mubr.bf16.mxu0 %v102
  %295 = vmatmul.mubr.bf16.gmra.mxu0 %v101
  %v296 = vpop.f32.mrf.mxu0
  %v297 = vadd.f32 %v76, %v296
  %v298 = vpop.f32.mrf.mxu0
  %v299 = vpop.f32.mrf.mxu0
  %v300 = vadd.f32 %v76, %v299
  %v301 = vpop.f32.mrf.mxu0
  %302 = vdwg.mxu0
  %303 = vmatprep.subr.bf16.mxu0 0
  %304 = vmatpush1.bf16.msra.mxu0 %v229
  %305 = vmatprep.subr.bf16.mxu0 0
  %306 = vmatpush1.bf16.msra.mxu0 %v228
  %307 = vmatprep.subr.bf16.mxu0 0
  %308 = vmatpush1.bf16.msra.mxu0 %v227
  %309 = vmatprep.subr.bf16.mxu0 0
  %310 = vmatpush1.bf16.msra.mxu0 %v226
  %311 = vmatprep.subr.bf16.mxu0 0
  %312 = vmatpush1.bf16.msra.mxu0 %v225
  %313 = vmatprep.subr.bf16.mxu0 0
  %314 = vmatpush1.bf16.msra.mxu0 %v224
  %315 = vmatprep.subr.bf16.mxu0 0
  %316 = vmatpush1.bf16.msra.mxu0 %v223
  %317 = vmatprep.subr.bf16.mxu0 0
  %318 = vmatpush1.bf16.msra.mxu0 %v222
  %319 = vmatprep.subr.bf16.mxu0 0
  %320 = vmatpush2.bf16.msra.mxu0 0
  %321 = vmatprep.subr.bf16.mxu0 0
  %322 = vmatpush2.bf16.msra.mxu0 0
  %323 = vmatprep.subr.bf16.mxu0 0
  %324 = vmatpush2.bf16.msra.mxu0 0
  %325 = vmatprep.subr.bf16.mxu0 0
  %326 = vmatpush2.bf16.msra.mxu0 0
  %327 = vmatprep.subr.bf16.mxu0 0
  %328 = vmatpush2.bf16.msra.mxu0 0
  %329 = vmatprep.subr.bf16.mxu0 0
  %330 = vmatpush2.bf16.msra.mxu0 0
  %331 = vmatprep.subr.bf16.mxu0 0
  %332 = vmatpush2.bf16.msra.mxu0 0
  %333 = vmatprep.subr.bf16.mxu0 0
  %334 = vmatpush2.bf16.msra.mxu0 0
  %335 = vmatprep.mubr.bf16.mxu0 0
  %336 = vmatmul.mubr.bf16.gmra.mxu0 %v100
  %v337 = vpop.f32.mrf.mxu0
  %v338 = vadd.f32 %v289, %v337
  %v339 = vpop.f32.mrf.mxu0
  %v340 = vpop.f32.mrf.mxu0
  %v341 = vadd.f32 %v292, %v340
  %v342 = vpop.f32.mrf.mxu0
  %343 = vmatprep.mubr.bf16.mxu0 0
  %344 = vmatmul.mubr.bf16.gmra.mxu0 %v103
  %v345 = vpop.f32.mrf.mxu0
  %v346 = vadd.f32 %v297, %v345
  %v347 = vpop.f32.mrf.mxu0
  %v348 = vpop.f32.mrf.mxu0
  %v349 = vadd.f32 %v300, %v348
  %v350 = vpop.f32.mrf.mxu0
  %351 = vdwg.mxu0
  %v352 = vmax.f32 %v338, 0.0
  %v353 = vmax.f32 %v341, 0.0
  %v354 = vmax.f32 %v346, 0.0
  %v355 = vmax.f32 %v349, 0.0
  %v356 = vpack.c.bf16 %v353, %v352
  %v357 = vpack.c.bf16 %v355, %v354
  %v360 = vunpack.c.l.b16 %v356
  %v361 = vunpack.c.h.b16 %v356
  %v362 = vunpack.c.l.b16 %v357
  %v363 = vunpack.c.h.b16 %v357
  %v364 = vpack.c.b16 %v360, %v360
  %v365 = vpack.c.b16 %v361, %v361
  %v366 = vpack.c.b16 %v362, %v362
  %v367 = vpack.c.b16 %v363, %v363
  %372 = vst [vmem:[%s3] sm:$0xf] %v364
  %373 = vst [vmem:[%s3 + $0x4] sm:$0xf] %v365
  %374 = vst [vmem:[%s3 + $0x8] sm:$0xf] %v366
  %375 = vst [vmem:[%s3 + $0xc] sm:$0xf] %v367
  // Predicated region
  $region14: #{cnn_classifier_forward.14} parent=0 // pred_check
    _
  $region15: #{cnn_classifier_forward.14} parent=0 // pred_check_branch
    %377 = sbr.rel (0) target = $region17
  $region16: #{cnn_classifier_forward.14} parent=0 // pred_region
    _
  $region17: #{cnn_classifier_forward.14} parent=0 // pred_fallthru
    _
  // Predicated region
  $region18: #{cnn_classifier_forward.14} parent=0 // pred_check
    _
  $region19: #{cnn_classifier_forward.14} parent=0 // pred_check_branch
    %379 = sbr.rel (0) target = $region21
  $region20: #{cnn_classifier_forward.14} parent=0 // pred_region
    _
  $region21: #{cnn_classifier_forward.14} parent=0 // pred_fallthru
    _

// kernel: cnn_classifier_forward.15
$region0: #{cnn_classifier_forward.15}
  #allocation0 [shape = 'u32[]', space=smem, size = 0x4, offset = 0x4, fixed_abs, tag = 'smem constant byte address 0x4 - core index']
  #allocation1 [shape = 'u32[144,128]{1,0:T(1,128)}', space=vmem, size = 0x12000, scoped, tag = 'internal scratch']
  %s0 = inlined_call_operand.vmem [shape: bf16[32,640], index: 0, kind: input, shape index: {}]
  %s1 = inlined_call_operand.vmem [shape: bf16[640,128], index: 1, kind: input, shape index: {}]
  %s2 = inlined_call_operand.vmem [shape: f32[1,128], index: 2, kind: input, shape index: {}]
  %s3 = inlined_call_operand.vmem [shape: bf16[32,128], index: 3, kind: output, shape index: {}]
  %s4 = sld [smem:[#allocation0]]
  $region22: #{cnn_classifier_forward.15} parent=0
    _
  %s6 = ssub.s32 1, %s4
  %s7 = scalar_select 0, %s6, %s4
  // Predicated region
  $region2: #{cnn_classifier_forward.15} parent=0 // pred_check
    _
  $region3: #{cnn_classifier_forward.15} parent=0 // pred_check_branch
    %9 = sbr.rel (0) target = $region5
  $region4: #{cnn_classifier_forward.15} parent=0 // pred_region
    _
  $region5: #{cnn_classifier_forward.15} parent=0 // pred_fallthru
    _
  // Predicated region
  $region6: #{cnn_classifier_forward.15} parent=0 // pred_check
    _
  $region7: #{cnn_classifier_forward.15} parent=0 // pred_check_branch
    %11 = sbr.rel (0) target = $region9
  $region8: #{cnn_classifier_forward.15} parent=0 // pred_region
    _
  $region9: #{cnn_classifier_forward.15} parent=0 // pred_fallthru
    _
  // Predicated region
  $region10: #{cnn_classifier_forward.15} parent=0 // pred_check
    _
  $region11: #{cnn_classifier_forward.15} parent=0 // pred_check_branch
    %13 = sbr.rel (0) target = $region13
  $region12: #{cnn_classifier_forward.15} parent=0 // pred_region
    _
  $region13: #{cnn_classifier_forward.15} parent=0 // pred_fallthru
    _
  %v15 = vld [vmem:[%s0] sm:$0xff]
  %v16 = vld [vmem:[%s0 + $0x8] sm:$0xff]
  %v17 = vld [vmem:[%s0 + $0x10] sm:$0xf]
  %v18 = vld [vmem:[%s0 + $0x14] sm:$0xff]
  %v19 = vld [vmem:[%s0 + $0x1c] sm:$0xff]
  %v20 = vld [vmem:[%s0 + $0x24] sm:$0xf]
  %v21 = vld [vmem:[%s0 + $0x28] sm:$0xff]
  %v22 = vld [vmem:[%s0 + $0x30] sm:$0xff]
  %v23 = vld [vmem:[%s0 + $0x38] sm:$0xf]
  %v24 = vld [vmem:[%s0 + $0x3c] sm:$0xff]
  %v25 = vld [vmem:[%s0 + $0x44] sm:$0xff]
  %v26 = vld [vmem:[%s0 + $0x4c] sm:$0xf]
  %v27 = vld [vmem:[%s1] sm:$0xf]
  %v28 = vld [vmem:[%s1 + $0x4] sm:$0xf]
  %v29 = vld [vmem:[%s1 + $0x8] sm:$0xf]
  %v30 = vld [vmem:[%s1 + $0xc] sm:$0xf]
  %v31 = vld [vmem:[%s1 + $0x10] sm:$0xf]
  %v32 = vld [vmem:[%s1 + $0x14] sm:$0xf]
  %v33 = vld [vmem:[%s1 + $0x18] sm:$0xf]
  %v34 = vld [vmem:[%s1 + $0x1c] sm:$0xf]
  %v35 = vld [vmem:[%s1 + $0x20] sm:$0xf]
  %v36 = vld [vmem:[%s1 + $0x24] sm:$0xf]
  %v37 = vld [vmem:[%s1 + $0x28] sm:$0xf]
  %v38 = vld [vmem:[%s1 + $0x2c] sm:$0xf]
  %v39 = vld [vmem:[%s1 + $0x30] sm:$0xf]
  %v40 = vld [vmem:[%s1 + $0x34] sm:$0xf]
  %v41 = vld [vmem:[%s1 + $0x38] sm:$0xf]
  %v42 = vld [vmem:[%s1 + $0x3c] sm:$0xf]
  %v43 = vld [vmem:[%s1 + $0x40] sm:$0xf]
  %v44 = vld [vmem:[%s1 + $0x44] sm:$0xf]
  %v45 = vld [vmem:[%s1 + $0x48] sm:$0xf]
  %v46 = vld [vmem:[%s1 + $0x4c] sm:$0xf]
  %v47 = vld [vmem:[%s1 + $0x50] sm:$0xf]
  %v48 = vld [vmem:[%s1 + $0x54] sm:$0xf]
  %v49 = vld [vmem:[%s1 + $0x58] sm:$0xf]
  %v50 = vld [vmem:[%s1 + $0x5c] sm:$0xf]
  %v51 = vld [vmem:[%s1 + $0x60] sm:$0xf]
  %v52 = vld [vmem:[%s1 + $0x64] sm:$0xf]
  %v53 = vld [vmem:[%s1 + $0x68] sm:$0xf]
  %v54 = vld [vmem:[%s1 + $0x6c] sm:$0xf]
  %v55 = vld [vmem:[%s1 + $0x70] sm:$0xf]
  %v56 = vld [vmem:[%s1 + $0x74] sm:$0xf]
  %v57 = vld [vmem:[%s1 + $0x78] sm:$0xf]
  %v58 = vld [vmem:[%s1 + $0x7c] sm:$0xf]
  %v59 = vld [vmem:[%s1 + $0x80] sm:$0xf]
  %v60 = vld [vmem:[%s1 + $0x84] sm:$0xf]
  %v61 = vld [vmem:[%s1 + $0x88] sm:$0xf]
  %v62 = vld [vmem:[%s1 + $0x8c] sm:$0xf]
  %v63 = vld [vmem:[%s1 + $0x90] sm:$0xf]
  %v64 = vld [vmem:[%s1 + $0x94] sm:$0xf]
  %v65 = vld [vmem:[%s1 + $0x98] sm:$0xf]
  %v66 = vld [vmem:[%s1 + $0x9c] sm:$0xf]
  %v67 = vld [vmem:[%s1 + $0xa0] sm:$0xf]
  %v68 = vld [vmem:[%s1 + $0xa4] sm:$0xf]
  %v69 = vld [vmem:[%s1 + $0xa8] sm:$0xf]
  %v70 = vld [vmem:[%s1 + $0xac] sm:$0xf]
  %v71 = vld [vmem:[%s1 + $0xb0] sm:$0xf]
  %v72 = vld [vmem:[%s1 + $0xb4] sm:$0xf]
  %v73 = vld [vmem:[%s1 + $0xb8] sm:$0xf]
  %v74 = vld [vmem:[%s1 + $0xbc] sm:$0xf]
  %v75 = vld [vmem:[%s1 + $0xc0] sm:$0xf]
  %v76 = vld [vmem:[%s1 + $0xc4] sm:$0xf]
  %v77 = vld [vmem:[%s1 + $0xc8] sm:$0xf]
  %v78 = vld [vmem:[%s1 + $0xcc] sm:$0xf]
  %v79 = vld [vmem:[%s1 + $0xd0] sm:$0xf]
  %v80 = vld [vmem:[%s1 + $0xd4] sm:$0xf]
  %v81 = vld [vmem:[%s1 + $0xd8] sm:$0xf]
  %v82 = vld [vmem:[%s1 + $0xdc] sm:$0xf]
  %v83 = vld [vmem:[%s1 + $0xe0] sm:$0xf]
  %v84 = vld [vmem:[%s1 + $0xe4] sm:$0xf]
  %v85 = vld [vmem:[%s1 + $0xe8] sm:$0xf]
  %v86 = vld [vmem:[%s1 + $0xec] sm:$0xf]
  %v87 = vld [vmem:[%s1 + $0xf0] sm:$0xf]
  %v88 = vld [vmem:[%s1 + $0xf4] sm:$0xf]
  %v89 = vld [vmem:[%s1 + $0xf8] sm:$0xf]
  %v90 = vld [vmem:[%s1 + $0xfc] sm:$0xf]
  %v91 = vld [vmem:[%s1 + $0x100] sm:$0xf]
  %v92 = vld [vmem:[%s1 + $0x104] sm:$0xf]
  %v93 = vld [vmem:[%s1 + $0x108] sm:$0xf]
  %v94 = vld [vmem:[%s1 + $0x10c] sm:$0xf]
  %v95 = vld [vmem:[%s1 + $0x110] sm:$0xf]
  %v96 = vld [vmem:[%s1 + $0x114] sm:$0xf]
  %v97 = vld [vmem:[%s1 + $0x118] sm:$0xf]
  %v98 = vld [vmem:[%s1 + $0x11c] sm:$0xf]
  %v99 = vld [vmem:[%s1 + $0x120] sm:$0xf]
  %v100 = vld [vmem:[%s1 + $0x124] sm:$0xf]
  %v101 = vld [vmem:[%s1 + $0x128] sm:$0xf]
  %v102 = vld [vmem:[%s1 + $0x12c] sm:$0xf]
  %v103 = vld [vmem:[%s1 + $0x130] sm:$0xf]
  %v104 = vld [vmem:[%s1 + $0x134] sm:$0xf]
  %v105 = vld [vmem:[%s1 + $0x138] sm:$0xf]
  %v106 = vld [vmem:[%s1 + $0x13c] sm:$0xf]
  %v107 = vld [vmem:[%s2] sm:$0x1]
  %v109 = vlaneseq
  %v110 = vshrl.u32 %v109, 7
  %v111 = vsub.s32 0, %v110
  %v112 = vrot.slane %v107, %v111
  %v126 = vunpack.c.l.b16 %v15
  %v127 = vunpack.c.h.b16 %v15
  %v128 = vunpack.c.l.b16 %v16
  %v129 = vunpack.c.h.b16 %v16
  %v130 = vunpack.c.l.b16 %v17
  %v131 = vunpack.c.l.b16 %v18
  %v132 = vunpack.c.h.b16 %v18
  %v133 = vunpack.c.l.b16 %v19
  %v134 = vunpack.c.h.b16 %v19
  %v135 = vunpack.c.l.b16 %v20
  %v136 = vunpack.c.l.b16 %v21
  %v137 = vunpack.c.h.b16 %v21
  %v138 = vunpack.c.l.b16 %v22
  %v139 = vunpack.c.h.b16 %v22
  %v140 = vunpack.c.l.b16 %v23
  %v141 = vunpack.c.l.b16 %v24
  %v142 = vunpack.c.h.b16 %v24
  %v143 = vunpack.c.l.b16 %v25
  %v144 = vunpack.c.h.b16 %v25
  %v145 = vunpack.c.l.b16 %v26
  %v146 = vpack.c.b16 %v131, %v126
  %v147 = vpack.c.b16 %v132, %v127
  %v148 = vpack.c.b16 %v133, %v128
  %v149 = vpack.c.b16 %v134, %v129
  %v150 = vpack.c.b16 %v135, %v130
  %v151 = vpack.c.b16 %v141, %v136
  %v152 = vpack.c.b16 %v142, %v137
  %v153 = vpack.c.b16 %v143, %v138
  %v154 = vpack.c.b16 %v144, %v139
  %v155 = vpack.c.b16 %v145, %v140
  %v246 = vunpack.c.l.b16 %v27
  %v247 = vunpack.c.l.b16 %v28
  %v248 = vunpack.c.l.b16 %v29
  %v249 = vunpack.c.l.b16 %v30
  %v250 = vunpack.c.l.b16 %v31
  %v251 = vunpack.c.l.b16 %v32
  %v252 = vunpack.c.l.b16 %v33
  %v253 = vunpack.c.l.b16 %v34
  %v254 = vunpack.c.l.b16 %v35
  %v255 = vunpack.c.l.b16 %v36
  %v256 = vunpack.c.l.b16 %v37
  %v257 = vunpack.c.l.b16 %v38
  %v258 = vunpack.c.l.b16 %v39
  %v259 = vunpack.c.l.b16 %v40
  %v260 = vunpack.c.l.b16 %v41
  %v261 = vunpack.c.l.b16 %v42
  %v262 = vunpack.c.l.b16 %v43
  %v263 = vunpack.c.l.b16 %v44
  %v264 = vunpack.c.l.b16 %v45
  %v265 = vunpack.c.l.b16 %v46
  %v266 = vunpack.c.l.b16 %v47
  %v267 = vunpack.c.l.b16 %v48
  %v268 = vunpack.c.l.b16 %v49
  %v269 = vunpack.c.l.b16 %v50
  %v270 = vunpack.c.l.b16 %v51
  %v271 = vunpack.c.l.b16 %v52
  %v272 = vunpack.c.l.b16 %v53
  %v273 = vunpack.c.l.b16 %v54
  %v274 = vunpack.c.l.b16 %v55
  %v275 = vunpack.c.l.b16 %v56
  %v276 = vunpack.c.l.b16 %v57
  %v277 = vunpack.c.l.b16 %v58
  %v278 = vunpack.c.l.b16 %v59
  %v279 = vunpack.c.l.b16 %v60
  %v280 = vunpack.c.l.b16 %v61
  %v281 = vunpack.c.l.b16 %v62
  %v282 = vunpack.c.l.b16 %v63
  %v283 = vunpack.c.l.b16 %v64
  %v284 = vunpack.c.l.b16 %v65
  %v285 = vunpack.c.l.b16 %v66
  %v286 = vunpack.c.l.b16 %v67
  %v287 = vunpack.c.l.b16 %v68
  %v288 = vunpack.c.l.b16 %v69
  %v289 = vunpack.c.l.b16 %v70
  %v290 = vunpack.c.l.b16 %v71
  %v291 = vunpack.c.l.b16 %v72
  %v292 = vunpack.c.l.b16 %v73
  %v293 = vunpack.c.l.b16 %v74
  %v294 = vunpack.c.l.b16 %v75
  %v295 = vunpack.c.l.b16 %v76
  %v296 = vunpack.c.l.b16 %v77
  %v297 = vunpack.c.l.b16 %v78
  %v298 = vunpack.c.l.b16 %v79
  %v299 = vunpack.c.l.b16 %v80
  %v300 = vunpack.c.l.b16 %v81
  %v301 = vunpack.c.l.b16 %v82
  %v302 = vunpack.c.l.b16 %v83
  %v303 = vunpack.c.l.b16 %v84
  %v304 = vunpack.c.l.b16 %v85
  %v305 = vunpack.c.l.b16 %v86
  %v306 = vunpack.c.l.b16 %v87
  %v307 = vunpack.c.l.b16 %v88
  %v308 = vunpack.c.l.b16 %v89
  %v309 = vunpack.c.l.b16 %v90
  %v310 = vunpack.c.l.b16 %v91
  %v311 = vunpack.c.l.b16 %v92
  %v312 = vunpack.c.l.b16 %v93
  %v313 = vunpack.c.l.b16 %v94
  %v314 = vunpack.c.l.b16 %v95
  %v315 = vunpack.c.l.b16 %v96
  %v316 = vunpack.c.l.b16 %v97
  %v317 = vunpack.c.l.b16 %v98
  %v318 = vunpack.c.l.b16 %v99
  %v319 = vunpack.c.l.b16 %v100
  %v320 = vunpack.c.l.b16 %v101
  %v321 = vunpack.c.l.b16 %v102
  %v322 = vunpack.c.l.b16 %v103
  %v323 = vunpack.c.l.b16 %v104
  %v324 = vunpack.c.l.b16 %v105
  %v325 = vunpack.c.l.b16 %v106
  %v326 = vpack.c.b16 %v247, %v246
  %v327 = vpack.c.b16 %v249, %v248
  %v328 = vpack.c.b16 %v251, %v250
  %v329 = vpack.c.b16 %v253, %v252
  %v330 = vpack.c.b16 %v255, %v254
  %v331 = vpack.c.b16 %v257, %v256
  %v332 = vpack.c.b16 %v259, %v258
  %v333 = vpack.c.b16 %v261, %v260
  %v334 = vpack.c.b16 %v263, %v262
  %v335 = vpack.c.b16 %v265, %v264
  %v336 = vpack.c.b16 %v267, %v266
  %v337 = vpack.c.b16 %v269, %v268
  %v338 = vpack.c.b16 %v271, %v270
  %v339 = vpack.c.b16 %v273, %v272
  %v340 = vpack.c.b16 %v275, %v274
  %v341 = vpack.c.b16 %v277, %v276
  %v342 = vpack.c.b16 %v279, %v278
  %v343 = vpack.c.b16 %v281, %v280
  %v344 = vpack.c.b16 %v283, %v282
  %v345 = vpack.c.b16 %v285, %v284
  %v346 = vpack.c.b16 %v287, %v286
  %v347 = vpack.c.b16 %v289, %v288
  %v348 = vpack.c.b16 %v291, %v290
  %v349 = vpack.c.b16 %v293, %v292
  %v350 = vpack.c.b16 %v295, %v294
  %v351 = vpack.c.b16 %v297, %v296
  %v352 = vpack.c.b16 %v299, %v298
  %v353 = vpack.c.b16 %v301, %v300
  %v354 = vpack.c.b16 %v303, %v302
  %v355 = vpack.c.b16 %v305, %v304
  %v356 = vpack.c.b16 %v307, %v306
  %v357 = vpack.c.b16 %v309, %v308
  %v358 = vpack.c.b16 %v311, %v310
  %v359 = vpack.c.b16 %v313, %v312
  %v360 = vpack.c.b16 %v315, %v314
  %v361 = vpack.c.b16 %v317, %v316
  %v362 = vpack.c.b16 %v319, %v318
  %v363 = vpack.c.b16 %v321, %v320
  %v364 = vpack.c.b16 %v323, %v322
  %v365 = vpack.c.b16 %v325, %v324
  %406 = vmatprep.subr.bf16.mxu0 0
  %407 = vmatpush1.bf16.msra.mxu0 %v333
  %408 = vmatprep.subr.bf16.mxu0 0
  %409 = vmatpush1.bf16.msra.mxu0 %v332
  %410 = vmatprep.subr.bf16.mxu0 0
  %411 = vmatpush1.bf16.msra.mxu0 %v331
  %412 = vmatprep.subr.bf16.mxu0 0
  %413 = vmatpush1.bf16.msra.mxu0 %v330
  %414 = vmatprep.subr.bf16.mxu0 0
  %415 = vmatpush1.bf16.msra.mxu0 %v329
  %416 = vmatprep.subr.bf16.mxu0 0
  %417 = vmatpush1.bf16.msra.mxu0 %v328
  %418 = vmatprep.subr.bf16.mxu0 0
  %419 = vmatpush1.bf16.msra.mxu0 %v327
  %420 = vmatprep.subr.bf16.mxu0 0
  %421 = vmatpush1.bf16.msra.mxu0 %v326
  %422 = vmatprep.subr.bf16.mxu0 0
  %423 = vmatpush2.bf16.msra.mxu0 %v341
  %424 = vmatprep.subr.bf16.mxu0 0
  %425 = vmatpush2.bf16.msra.mxu0 %v340
  %426 = vmatprep.subr.bf16.mxu0 0
  %427 = vmatpush2.bf16.msra.mxu0 %v339
  %428 = vmatprep.subr.bf16.mxu0 0
  %429 = vmatpush2.bf16.msra.mxu0 %v338
  %430 = vmatprep.subr.bf16.mxu0 0
  %431 = vmatpush2.bf16.msra.mxu0 %v337
  %432 = vmatprep.subr.bf16.mxu0 0
  %433 = vmatpush2.bf16.msra.mxu0 %v336
  %434 = vmatprep.subr.bf16.mxu0 0
  %435 = vmatpush2.bf16.msra.mxu0 %v335
  %436 = vmatprep.subr.bf16.mxu0 0
  %437 = vmatpush2.bf16.msra.mxu0 %v334
  %438 = vmatprep.mubr.bf16.mxu0 %v147
  %439 = vmatmul.mubr.bf16.gmra.mxu0 %v146
  %v440 = vpop.f32.mrf.mxu0
  %v441 = vadd.f32 %v112, %v440
  %v442 = vpop.f32.mrf.mxu0
  %v443 = vpop.f32.mrf.mxu0
  %v444 = vadd.f32 %v112, %v443
  %v445 = vpop.f32.mrf.mxu0
  %446 = vmatprep.mubr.bf16.mxu0 %v152
  %447 = vmatmul.mubr.bf16.gmra.mxu0 %v151
  %v448 = vpop.f32.mrf.mxu0
  %v449 = vadd.f32 %v112, %v448
  %v450 = vpop.f32.mrf.mxu0
  %v451 = vpop.f32.mrf.mxu0
  %v452 = vadd.f32 %v112, %v451
  %v453 = vpop.f32.mrf.mxu0
  %454 = vdwg.mxu0
  %455 = vmatprep.subr.bf16.mxu0 0
  %456 = vmatpush1.bf16.msra.mxu0 %v349
  %457 = vmatprep.subr.bf16.mxu0 0
  %458 = vmatpush1.bf16.msra.mxu0 %v348
  %459 = vmatprep.subr.bf16.mxu0 0
  %460 = vmatpush1.bf16.msra.mxu0 %v347
  %461 = vmatprep.subr.bf16.mxu0 0
  %462 = vmatpush1.bf16.msra.mxu0 %v346
  %463 = vmatprep.subr.bf16.mxu0 0
  %464 = vmatpush1.bf16.msra.mxu0 %v345
  %465 = vmatprep.subr.bf16.mxu0 0
  %466 = vmatpush1.bf16.msra.mxu0 %v344
  %467 = vmatprep.subr.bf16.mxu0 0
  %468 = vmatpush1.bf16.msra.mxu0 %v343
  %469 = vmatprep.subr.bf16.mxu0 0
  %470 = vmatpush1.bf16.msra.mxu0 %v342
  %471 = vmatprep.subr.bf16.mxu0 0
  %472 = vmatpush2.bf16.msra.mxu0 %v357
  %473 = vmatprep.subr.bf16.mxu0 0
  %474 = vmatpush2.bf16.msra.mxu0 %v356
  %475 = vmatprep.subr.bf16.mxu0 0
  %476 = vmatpush2.bf16.msra.mxu0 %v355
  %477 = vmatprep.subr.bf16.mxu0 0
  %478 = vmatpush2.bf16.msra.mxu0 %v354
  %479 = vmatprep.subr.bf16.mxu0 0
  %480 = vmatpush2.bf16.msra.mxu0 %v353
  %481 = vmatprep.subr.bf16.mxu0 0
  %482 = vmatpush2.bf16.msra.mxu0 %v352
  %483 = vmatprep.subr.bf16.mxu0 0
  %484 = vmatpush2.bf16.msra.mxu0 %v351
  %485 = vmatprep.subr.bf16.mxu0 0
  %486 = vmatpush2.bf16.msra.mxu0 %v350
  %487 = vmatprep.mubr.bf16.mxu0 %v149
  %488 = vmatmul.mubr.bf16.gmra.mxu0 %v148
  %v489 = vpop.f32.mrf.mxu0
  %v490 = vadd.f32 %v441, %v489
  %v491 = vpop.f32.mrf.mxu0
  %v492 = vpop.f32.mrf.mxu0
  %v493 = vadd.f32 %v444, %v492
  %v494 = vpop.f32.mrf.mxu0
  %495 = vmatprep.mubr.bf16.mxu0 %v154
  %496 = vmatmul.mubr.bf16.gmra.mxu0 %v153
  %v497 = vpop.f32.mrf.mxu0
  %v498 = vadd.f32 %v449, %v497
  %v499 = vpop.f32.mrf.mxu0
  %v500 = vpop.f32.mrf.mxu0
  %v501 = vadd.f32 %v452, %v500
  %v502 = vpop.f32.mrf.mxu0
  %503 = vdwg.mxu0
  %504 = vmatprep.subr.bf16.mxu0 0
  %505 = vmatpush1.bf16.msra.mxu0 %v365
  %506 = vmatprep.subr.bf16.mxu0 0
  %507 = vmatpush1.bf16.msra.mxu0 %v364
  %508 = vmatprep.subr.bf16.mxu0 0
  %509 = vmatpush1.bf16.msra.mxu0 %v363
  %510 = vmatprep.subr.bf16.mxu0 0
  %511 = vmatpush1.bf16.msra.mxu0 %v362
  %512 = vmatprep.subr.bf16.mxu0 0
  %513 = vmatpush1.bf16.msra.mxu0 %v361
  %514 = vmatprep.subr.bf16.mxu0 0
  %515 = vmatpush1.bf16.msra.mxu0 %v360
  %516 = vmatprep.subr.bf16.mxu0 0
  %517 = vmatpush1.bf16.msra.mxu0 %v359
  %518 = vmatprep.subr.bf16.mxu0 0
  %519 = vmatpush1.bf16.msra.mxu0 %v358
  %520 = vmatprep.subr.bf16.mxu0 0
  %521 = vmatpush2.bf16.msra.mxu0 0
  %522 = vmatprep.subr.bf16.mxu0 0
  %523 = vmatpush2.bf16.msra.mxu0 0
  %524 = vmatprep.subr.bf16.mxu0 0
  %525 = vmatpush2.bf16.msra.mxu0 0
  %526 = vmatprep.subr.bf16.mxu0 0
  %527 = vmatpush2.bf16.msra.mxu0 0
  %528 = vmatprep.subr.bf16.mxu0 0
  %529 = vmatpush2.bf16.msra.mxu0 0
  %530 = vmatprep.subr.bf16.mxu0 0
  %531 = vmatpush2.bf16.msra.mxu0 0
  %532 = vmatprep.subr.bf16.mxu0 0
  %533 = vmatpush2.bf16.msra.mxu0 0
  %534 = vmatprep.subr.bf16.mxu0 0
  %535 = vmatpush2.bf16.msra.mxu0 0
  %536 = vmatprep.mubr.bf16.mxu0 0
  %537 = vmatmul.mubr.bf16.gmra.mxu0 %v150
  %v538 = vpop.f32.mrf.mxu0
  %v539 = vadd.f32 %v490, %v538
  %v540 = vpop.f32.mrf.mxu0
  %v541 = vpop.f32.mrf.mxu0
  %v542 = vadd.f32 %v493, %v541
  %v543 = vpop.f32.mrf.mxu0
  %544 = vmatprep.mubr.bf16.mxu0 0
  %545 = vmatmul.mubr.bf16.gmra.mxu0 %v155
  %v546 = vpop.f32.mrf.mxu0
  %v547 = vadd.f32 %v498, %v546
  %v548 = vpop.f32.mrf.mxu0
  %v549 = vpop.f32.mrf.mxu0
  %v550 = vadd.f32 %v501, %v549
  %v551 = vpop.f32.mrf.mxu0
  %552 = vdwg.mxu0
  %v553 = vmax.f32 %v539, 0.0
  %v554 = vmax.f32 %v542, 0.0
  %v555 = vmax.f32 %v547, 0.0
  %v556 = vmax.f32 %v550, 0.0
  %v557 = vpack.c.bf16 %v554, %v553
  %v558 = vpack.c.bf16 %v556, %v555
  %v561 = vunpack.c.l.b16 %v557
  %v562 = vunpack.c.h.b16 %v557
  %v563 = vunpack.c.l.b16 %v558
  %v564 = vunpack.c.h.b16 %v558
  %v565 = vpack.c.b16 %v561, %v561
  %v566 = vpack.c.b16 %v562, %v562
  %v567 = vpack.c.b16 %v563, %v563
  %v568 = vpack.c.b16 %v564, %v564
  %573 = vst [vmem:[%s3] sm:$0xf] %v565
  %574 = vst [vmem:[%s3 + $0x4] sm:$0xf] %v566
  %575 = vst [vmem:[%s3 + $0x8] sm:$0xf] %v567
  %576 = vst [vmem:[%s3 + $0xc] sm:$0xf] %v568
  // Predicated region
  $region14: #{cnn_classifier_forward.15} parent=0 // pred_check
    _
  $region15: #{cnn_classifier_forward.15} parent=0 // pred_check_branch
    %578 = sbr.rel (0) target = $region17
  $region16: #{cnn_classifier_forward.15} parent=0 // pred_region
    _
  $region17: #{cnn_classifier_forward.15} parent=0 // pred_fallthru
    _
  // Predicated region
  $region18: #{cnn_classifier_forward.15} parent=0 // pred_check
    _
  $region19: #{cnn_classifier_forward.15} parent=0 // pred_check_branch
    %580 = sbr.rel (0) target = $region21
  $region20: #{cnn_classifier_forward.15} parent=0 // pred_region
    _
  $region21: #{cnn_classifier_forward.15} parent=0 // pred_fallthru
    _

// kernel: cnn_classifier_forward.16
$region0: #{cnn_classifier_forward.16}
  #allocation0 [shape = 'u32[]', space=smem, size = 0x4, offset = 0x4, fixed_abs, tag = 'smem constant byte address 0x4 - core index']
  #allocation1 [shape = 'u32[144,128]{1,0:T(1,128)}', space=vmem, size = 0x12000, scoped, tag = 'internal scratch']
  %s0 = inlined_call_operand.vmem [shape: bf16[16,640], index: 0, kind: input, shape index: {}]
  %s1 = inlined_call_operand.vmem [shape: bf16[640,128], index: 1, kind: input, shape index: {}]
  %s2 = inlined_call_operand.vmem [shape: f32[1,128], index: 2, kind: input, shape index: {}]
  %s3 = inlined_call_operand.vmem [shape: bf16[16,128], index: 3, kind: output, shape index: {}]
  %s4 = sld [smem:[#allocation0]]
  $region22: #{cnn_classifier_forward.16} parent=0
    _
  %s6 = ssub.s32 1, %s4
  %s7 = scalar_select 0, %s6, %s4
  // Predicated region
  $region2: #{cnn_classifier_forward.16} parent=0 // pred_check
    _
  $region3: #{cnn_classifier_forward.16} parent=0 // pred_check_branch
    %9 = sbr.rel (0) target = $region5
  $region4: #{cnn_classifier_forward.16} parent=0 // pred_region
    _
  $region5: #{cnn_classifier_forward.16} parent=0 // pred_fallthru
    _
  // Predicated region
  $region6: #{cnn_classifier_forward.16} parent=0 // pred_check
    _
  $region7: #{cnn_classifier_forward.16} parent=0 // pred_check_branch
    %11 = sbr.rel (0) target = $region9
  $region8: #{cnn_classifier_forward.16} parent=0 // pred_region
    _
  $region9: #{cnn_classifier_forward.16} parent=0 // pred_fallthru
    _
  // Predicated region
  $region10: #{cnn_classifier_forward.16} parent=0 // pred_check
    _
  $region11: #{cnn_classifier_forward.16} parent=0 // pred_check_branch
    %13 = sbr.rel (0) target = $region13
  $region12: #{cnn_classifier_forward.16} parent=0 // pred_region
    _
  $region13: #{cnn_classifier_forward.16} parent=0 // pred_fallthru
    _
  %v15 = vld [vmem:[%s0] sm:$0xff]
  %v16 = vld [vmem:[%s0 + $0x8] sm:$0xff]
  %v17 = vld [vmem:[%s0 + $0x10] sm:$0xf]
  %v18 = vld [vmem:[%s0 + $0x14] sm:$0xff]
  %v19 = vld [vmem:[%s0 + $0x1c] sm:$0xff]
  %v20 = vld [vmem:[%s0 + $0x24] sm:$0xf]
  %v21 = vld [vmem:[%s1] sm:$0xf]
  %v22 = vld [vmem:[%s1 + $0x4] sm:$0xf]
  %v23 = vld [vmem:[%s1 + $0x8] sm:$0xf]
  %v24 = vld [vmem:[%s1 + $0xc] sm:$0xf]
  %v25 = vld [vmem:[%s1 + $0x10] sm:$0xf]
  %v26 = vld [vmem:[%s1 + $0x14] sm:$0xf]
  %v27 = vld [vmem:[%s1 + $0x18] sm:$0xf]
  %v28 = vld [vmem:[%s1 + $0x1c] sm:$0xf]
  %v29 = vld [vmem:[%s1 + $0x20] sm:$0xf]
  %v30 = vld [vmem:[%s1 + $0x24] sm:$0xf]
  %v31 = vld [vmem:[%s1 + $0x28] sm:$0xf]
  %v32 = vld [vmem:[%s1 + $0x2c] sm:$0xf]
  %v33 = vld [vmem:[%s1 + $0x30] sm:$0xf]
  %v34 = vld [vmem:[%s1 + $0x34] sm:$0xf]
  %v35 = vld [vmem:[%s1 + $0x38] sm:$0xf]
  %v36 = vld [vmem:[%s1 + $0x3c] sm:$0xf]
  %v37 = vld [vmem:[%s1 + $0x40] sm:$0xf]
  %v38 = vld [vmem:[%s1 + $0x44] sm:$0xf]
  %v39 = vld [vmem:[%s1 + $0x48] sm:$0xf]
  %v40 = vld [vmem:[%s1 + $0x4c] sm:$0xf]
  %v41 = vld [vmem:[%s1 + $0x50] sm:$0xf]
  %v42 = vld [vmem:[%s1 + $0x54] sm:$0xf]
  %v43 = vld [vmem:[%s1 + $0x58] sm:$0xf]
  %v44 = vld [vmem:[%s1 + $0x5c] sm:$0xf]
  %v45 = vld [vmem:[%s1 + $0x60] sm:$0xf]
  %v46 = vld [vmem:[%s1 + $0x64] sm:$0xf]
  %v47 = vld [vmem:[%s1 + $0x68] sm:$0xf]
  %v48 = vld [vmem:[%s1 + $0x6c] sm:$0xf]
  %v49 = vld [vmem:[%s1 + $0x70] sm:$0xf]
  %v50 = vld [vmem:[%s1 + $0x74] sm:$0xf]
  %v51 = vld [vmem:[%s1 + $0x78] sm:$0xf]
  %v52 = vld [vmem:[%s1 + $0x7c] sm:$0xf]
  %v53 = vld [vmem:[%s1 + $0x80] sm:$0xf]
  %v54 = vld [vmem:[%s1 + $0x84] sm:$0xf]
  %v55 = vld [vmem:[%s1 + $0x88] sm:$0xf]
  %v56 = vld [vmem:[%s1 + $0x8c] sm:$0xf]
  %v57 = vld [vmem:[%s1 + $0x90] sm:$0xf]
  %v58 = vld [vmem:[%s1 + $0x94] sm:$0xf]
  %v59 = vld [vmem:[%s1 + $0x98] sm:$0xf]
  %v60 = vld [vmem:[%s1 + $0x9c] sm:$0xf]
  %v61 = vld [vmem:[%s1 + $0xa0] sm:$0xf]
  %v62 = vld [vmem:[%s1 + $0xa4] sm:$0xf]
  %v63 = vld [vmem:[%s1 + $0xa8] sm:$0xf]
  %v64 = vld [vmem:[%s1 + $0xac] sm:$0xf]
  %v65 = vld [vmem:[%s1 + $0xb0] sm:$0xf]
  %v66 = vld [vmem:[%s1 + $0xb4] sm:$0xf]
  %v67 = vld [vmem:[%s1 + $0xb8] sm:$0xf]
  %v68 = vld [vmem:[%s1 + $0xbc] sm:$0xf]
  %v69 = vld [vmem:[%s1 + $0xc0] sm:$0xf]
  %v70 = vld [vmem:[%s1 + $0xc4] sm:$0xf]
  %v71 = vld [vmem:[%s1 + $0xc8] sm:$0xf]
  %v72 = vld [vmem:[%s1 + $0xcc] sm:$0xf]
  %v73 = vld [vmem:[%s1 + $0xd0] sm:$0xf]
  %v74 = vld [vmem:[%s1 + $0xd4] sm:$0xf]
  %v75 = vld [vmem:[%s1 + $0xd8] sm:$0xf]
  %v76 = vld [vmem:[%s1 + $0xdc] sm:$0xf]
  %v77 = vld [vmem:[%s1 + $0xe0] sm:$0xf]
  %v78 = vld [vmem:[%s1 + $0xe4] sm:$0xf]
  %v79 = vld [vmem:[%s1 + $0xe8] sm:$0xf]
  %v80 = vld [vmem:[%s1 + $0xec] sm:$0xf]
  %v81 = vld [vmem:[%s1 + $0xf0] sm:$0xf]
  %v82 = vld [vmem:[%s1 + $0xf4] sm:$0xf]
  %v83 = vld [vmem:[%s1 + $0xf8] sm:$0xf]
  %v84 = vld [vmem:[%s1 + $0xfc] sm:$0xf]
  %v85 = vld [vmem:[%s1 + $0x100] sm:$0xf]
  %v86 = vld [vmem:[%s1 + $0x104] sm:$0xf]
  %v87 = vld [vmem:[%s1 + $0x108] sm:$0xf]
  %v88 = vld [vmem:[%s1 + $0x10c] sm:$0xf]
  %v89 = vld [vmem:[%s1 + $0x110] sm:$0xf]
  %v90 = vld [vmem:[%s1 + $0x114] sm:$0xf]
  %v91 = vld [vmem:[%s1 + $0x118] sm:$0xf]
  %v92 = vld [vmem:[%s1 + $0x11c] sm:$0xf]
  %v93 = vld [vmem:[%s1 + $0x120] sm:$0xf]
  %v94 = vld [vmem:[%s1 + $0x124] sm:$0xf]
  %v95 = vld [vmem:[%s1 + $0x128] sm:$0xf]
  %v96 = vld [vmem:[%s1 + $0x12c] sm:$0xf]
  %v97 = vld [vmem:[%s1 + $0x130] sm:$0xf]
  %v98 = vld [vmem:[%s1 + $0x134] sm:$0xf]
  %v99 = vld [vmem:[%s1 + $0x138] sm:$0xf]
  %v100 = vld [vmem:[%s1 + $0x13c] sm:$0xf]
  %v101 = vld [vmem:[%s2] sm:$0x1]
  %v103 = vlaneseq
  %v104 = vshrl.u32 %v103, 7
  %v105 = vsub.s32 0, %v104
  %v106 = vrot.slane %v101, %v105
  %v114 = vunpack.c.l.b16 %v15
  %v115 = vunpack.c.h.b16 %v15
  %v116 = vunpack.c.l.b16 %v16
  %v117 = vunpack.c.h.b16 %v16
  %v118 = vunpack.c.l.b16 %v17
  %v119 = vunpack.c.l.b16 %v18
  %v120 = vunpack.c.h.b16 %v18
  %v121 = vunpack.c.l.b16 %v19
  %v122 = vunpack.c.h.b16 %v19
  %v123 = vunpack.c.l.b16 %v20
  %v124 = vpack.c.b16 %v119, %v114
  %v125 = vpack.c.b16 %v120, %v115
  %v126 = vpack.c.b16 %v121, %v116
  %v127 = vpack.c.b16 %v122, %v117
  %v128 = vpack.c.b16 %v123, %v118
  %v214 = vunpack.c.l.b16 %v21
  %v215 = vunpack.c.l.b16 %v22
  %v216 = vunpack.c.l.b16 %v23
  %v217 = vunpack.c.l.b16 %v24
  %v218 = vunpack.c.l.b16 %v25
  %v219 = vunpack.c.l.b16 %v26
  %v220 = vunpack.c.l.b16 %v27
  %v221 = vunpack.c.l.b16 %v28
  %v222 = vunpack.c.l.b16 %v29
  %v223 = vunpack.c.l.b16 %v30
  %v224 = vunpack.c.l.b16 %v31
  %v225 = vunpack.c.l.b16 %v32
  %v226 = vunpack.c.l.b16 %v33
  %v227 = vunpack.c.l.b16 %v34
  %v228 = vunpack.c.l.b16 %v35
  %v229 = vunpack.c.l.b16 %v36
  %v230 = vunpack.c.l.b16 %v37
  %v231 = vunpack.c.l.b16 %v38
  %v232 = vunpack.c.l.b16 %v39
  %v233 = vunpack.c.l.b16 %v40
  %v234 = vunpack.c.l.b16 %v41
  %v235 = vunpack.c.l.b16 %v42
  %v236 = vunpack.c.l.b16 %v43
  %v237 = vunpack.c.l.b16 %v44
  %v238 = vunpack.c.l.b16 %v45
  %v239 = vunpack.c.l.b16 %v46
  %v240 = vunpack.c.l.b16 %v47
  %v241 = vunpack.c.l.b16 %v48
  %v242 = vunpack.c.l.b16 %v49
  %v243 = vunpack.c.l.b16 %v50
  %v244 = vunpack.c.l.b16 %v51
  %v245 = vunpack.c.l.b16 %v52
  %v246 = vunpack.c.l.b16 %v53
  %v247 = vunpack.c.l.b16 %v54
  %v248 = vunpack.c.l.b16 %v55
  %v249 = vunpack.c.l.b16 %v56
  %v250 = vunpack.c.l.b16 %v57
  %v251 = vunpack.c.l.b16 %v58
  %v252 = vunpack.c.l.b16 %v59
  %v253 = vunpack.c.l.b16 %v60
  %v254 = vunpack.c.l.b16 %v61
  %v255 = vunpack.c.l.b16 %v62
  %v256 = vunpack.c.l.b16 %v63
  %v257 = vunpack.c.l.b16 %v64
  %v258 = vunpack.c.l.b16 %v65
  %v259 = vunpack.c.l.b16 %v66
  %v260 = vunpack.c.l.b16 %v67
  %v261 = vunpack.c.l.b16 %v68
  %v262 = vunpack.c.l.b16 %v69
  %v263 = vunpack.c.l.b16 %v70
  %v264 = vunpack.c.l.b16 %v71
  %v265 = vunpack.c.l.b16 %v72
  %v266 = vunpack.c.l.b16 %v73
  %v267 = vunpack.c.l.b16 %v74
  %v268 = vunpack.c.l.b16 %v75
  %v269 = vunpack.c.l.b16 %v76
  %v270 = vunpack.c.l.b16 %v77
  %v271 = vunpack.c.l.b16 %v78
  %v272 = vunpack.c.l.b16 %v79
  %v273 = vunpack.c.l.b16 %v80
  %v274 = vunpack.c.l.b16 %v81
  %v275 = vunpack.c.l.b16 %v82
  %v276 = vunpack.c.l.b16 %v83
  %v277 = vunpack.c.l.b16 %v84
  %v278 = vunpack.c.l.b16 %v85
  %v279 = vunpack.c.l.b16 %v86
  %v280 = vunpack.c.l.b16 %v87
  %v281 = vunpack.c.l.b16 %v88
  %v282 = vunpack.c.l.b16 %v89
  %v283 = vunpack.c.l.b16 %v90
  %v284 = vunpack.c.l.b16 %v91
  %v285 = vunpack.c.l.b16 %v92
  %v286 = vunpack.c.l.b16 %v93
  %v287 = vunpack.c.l.b16 %v94
  %v288 = vunpack.c.l.b16 %v95
  %v289 = vunpack.c.l.b16 %v96
  %v290 = vunpack.c.l.b16 %v97
  %v291 = vunpack.c.l.b16 %v98
  %v292 = vunpack.c.l.b16 %v99
  %v293 = vunpack.c.l.b16 %v100
  %v294 = vpack.c.b16 %v215, %v214
  %v295 = vpack.c.b16 %v217, %v216
  %v296 = vpack.c.b16 %v219, %v218
  %v297 = vpack.c.b16 %v221, %v220
  %v298 = vpack.c.b16 %v223, %v222
  %v299 = vpack.c.b16 %v225, %v224
  %v300 = vpack.c.b16 %v227, %v226
  %v301 = vpack.c.b16 %v229, %v228
  %v302 = vpack.c.b16 %v231, %v230
  %v303 = vpack.c.b16 %v233, %v232
  %v304 = vpack.c.b16 %v235, %v234
  %v305 = vpack.c.b16 %v237, %v236
  %v306 = vpack.c.b16 %v239, %v238
  %v307 = vpack.c.b16 %v241, %v240
  %v308 = vpack.c.b16 %v243, %v242
  %v309 = vpack.c.b16 %v245, %v244
  %v310 = vpack.c.b16 %v247, %v246
  %v311 = vpack.c.b16 %v249, %v248
  %v312 = vpack.c.b16 %v251, %v250
  %v313 = vpack.c.b16 %v253, %v252
  %v314 = vpack.c.b16 %v255, %v254
  %v315 = vpack.c.b16 %v257, %v256
  %v316 = vpack.c.b16 %v259, %v258
  %v317 = vpack.c.b16 %v261, %v260
  %v318 = vpack.c.b16 %v263, %v262
  %v319 = vpack.c.b16 %v265, %v264
  %v320 = vpack.c.b16 %v267, %v266
  %v321 = vpack.c.b16 %v269, %v268
  %v322 = vpack.c.b16 %v271, %v270
  %v323 = vpack.c.b16 %v273, %v272
  %v324 = vpack.c.b16 %v275, %v274
  %v325 = vpack.c.b16 %v277, %v276
  %v326 = vpack.c.b16 %v279, %v278
  %v327 = vpack.c.b16 %v281, %v280
  %v328 = vpack.c.b16 %v283, %v282
  %v329 = vpack.c.b16 %v285, %v284
  %v330 = vpack.c.b16 %v287, %v286
  %v331 = vpack.c.b16 %v289, %v288
  %v332 = vpack.c.b16 %v291, %v290
  %v333 = vpack.c.b16 %v293, %v292
  %374 = vmatprep.subr.bf16.mxu0 0
  %375 = vmatpush1.bf16.msra.mxu0 %v301
  %376 = vmatprep.subr.bf16.mxu0 0
  %377 = vmatpush1.bf16.msra.mxu0 %v300
  %378 = vmatprep.subr.bf16.mxu0 0
  %379 = vmatpush1.bf16.msra.mxu0 %v299
  %380 = vmatprep.subr.bf16.mxu0 0
  %381 = vmatpush1.bf16.msra.mxu0 %v298
  %382 = vmatprep.subr.bf16.mxu0 0
  %383 = vmatpush1.bf16.msra.mxu0 %v297
  %384 = vmatprep.subr.bf16.mxu0 0
  %385 = vmatpush1.bf16.msra.mxu0 %v296
  %386 = vmatprep.subr.bf16.mxu0 0
  %387 = vmatpush1.bf16.msra.mxu0 %v295
  %388 = vmatprep.subr.bf16.mxu0 0
  %389 = vmatpush1.bf16.msra.mxu0 %v294
  %390 = vmatprep.subr.bf16.mxu0 0
  %391 = vmatpush2.bf16.msra.mxu0 %v309
  %392 = vmatprep.subr.bf16.mxu0 0
  %393 = vmatpush2.bf16.msra.mxu0 %v308
  %394 = vmatprep.subr.bf16.mxu0 0
  %395 = vmatpush2.bf16.msra.mxu0 %v307
  %396 = vmatprep.subr.bf16.mxu0 0
  %397 = vmatpush2.bf16.msra.mxu0 %v306
  %398 = vmatprep.subr.bf16.mxu0 0
  %399 = vmatpush2.bf16.msra.mxu0 %v305
  %400 = vmatprep.subr.bf16.mxu0 0
  %401 = vmatpush2.bf16.msra.mxu0 %v304
  %402 = vmatprep.subr.bf16.mxu0 0
  %403 = vmatpush2.bf16.msra.mxu0 %v303
  %404 = vmatprep.subr.bf16.mxu0 0
  %405 = vmatpush2.bf16.msra.mxu0 %v302
  %406 = vmatprep.mubr.bf16.mxu0 %v125
  %407 = vmatmul.mubr.bf16.gmra.mxu0 %v124
  %v408 = vpop.f32.mrf.mxu0
  %v409 = vadd.f32 %v106, %v408
  %v410 = vpop.f32.mrf.mxu0
  %v411 = vpop.f32.mrf.mxu0
  %v412 = vadd.f32 %v106, %v411
  %v413 = vpop.f32.mrf.mxu0
  %414 = vdwg.mxu0
  %415 = vmatprep.subr.bf16.mxu0 0
  %416 = vmatpush1.bf16.msra.mxu0 %v317
  %417 = vmatprep.subr.bf16.mxu0 0
  %418 = vmatpush1.bf16.msra.mxu0 %v316
  %419 = vmatprep.subr.bf16.mxu0 0
  %420 = vmatpush1.bf16.msra.mxu0 %v315
  %421 = vmatprep.subr.bf16.mxu0 0
  %422 = vmatpush1.bf16.msra.mxu0 %v314
  %423 = vmatprep.subr.bf16.mxu0 0
  %424 = vmatpush1.bf16.msra.mxu0 %v313
  %425 = vmatprep.subr.bf16.mxu0 0
  %426 = vmatpush1.bf16.msra.mxu0 %v312
  %427 = vmatprep.subr.bf16.mxu0 0
  %428 = vmatpush1.bf16.msra.mxu0 %v311
  %429 = vmatprep.subr.bf16.mxu0 0
  %430 = vmatpush1.bf16.msra.mxu0 %v310
  %431 = vmatprep.subr.bf16.mxu0 0
  %432 = vmatpush2.bf16.msra.mxu0 %v325
  %433 = vmatprep.subr.bf16.mxu0 0
  %434 = vmatpush2.bf16.msra.mxu0 %v324
  %435 = vmatprep.subr.bf16.mxu0 0
  %436 = vmatpush2.bf16.msra.mxu0 %v323
  %437 = vmatprep.subr.bf16.mxu0 0
  %438 = vmatpush2.bf16.msra.mxu0 %v322
  %439 = vmatprep.subr.bf16.mxu0 0
  %440 = vmatpush2.bf16.msra.mxu0 %v321
  %441 = vmatprep.subr.bf16.mxu0 0
  %442 = vmatpush2.bf16.msra.mxu0 %v320
  %443 = vmatprep.subr.bf16.mxu0 0
  %444 = vmatpush2.bf16.msra.mxu0 %v319
  %445 = vmatprep.subr.bf16.mxu0 0
  %446 = vmatpush2.bf16.msra.mxu0 %v318
  %447 = vmatprep.mubr.bf16.mxu0 %v127
  %448 = vmatmul.mubr.bf16.gmra.mxu0 %v126
  %v449 = vpop.f32.mrf.mxu0
  %v450 = vadd.f32 %v409, %v449
  %v451 = vpop.f32.mrf.mxu0
  %v452 = vpop.f32.mrf.mxu0
  %v453 = vadd.f32 %v412, %v452
  %v454 = vpop.f32.mrf.mxu0
  %455 = vdwg.mxu0
  %456 = vmatprep.subr.bf16.mxu0 0
  %457 = vmatpush1.bf16.msra.mxu0 %v333
  %458 = vmatprep.subr.bf16.mxu0 0
  %459 = vmatpush1.bf16.msra.mxu0 %v332
  %460 = vmatprep.subr.bf16.mxu0 0
  %461 = vmatpush1.bf16.msra.mxu0 %v331
  %462 = vmatprep.subr.bf16.mxu0 0
  %463 = vmatpush1.bf16.msra.mxu0 %v330
  %464 = vmatprep.subr.bf16.mxu0 0
  %465 = vmatpush1.bf16.msra.mxu0 %v329
  %466 = vmatprep.subr.bf16.mxu0 0
  %467 = vmatpush1.bf16.msra.mxu0 %v328
  %468 = vmatprep.subr.bf16.mxu0 0
  %469 = vmatpush1.bf16.msra.mxu0 %v327
  %470 = vmatprep.subr.bf16.mxu0 0
  %471 = vmatpush1.bf16.msra.mxu0 %v326
  %472 = vmatprep.subr.bf16.mxu0 0
  %473 = vmatpush2.bf16.msra.mxu0 0
  %474 = vmatprep.subr.bf16.mxu0 0
  %475 = vmatpush2.bf16.msra.mxu0 0
  %476 = vmatprep.subr.bf16.mxu0 0
  %477 = vmatpush2.bf16.msra.mxu0 0
  %478 = vmatprep.subr.bf16.mxu0 0
  %479 = vmatpush2.bf16.msra.mxu0 0
  %480 = vmatprep.subr.bf16.mxu0 0
  %481 = vmatpush2.bf16.msra.mxu0 0
  %482 = vmatprep.subr.bf16.mxu0 0
  %483 = vmatpush2.bf16.msra.mxu0 0
  %484 = vmatprep.subr.bf16.mxu0 0
  %485 = vmatpush2.bf16.msra.mxu0 0
  %486 = vmatprep.subr.bf16.mxu0 0
  %487 = vmatpush2.bf16.msra.mxu0 0
  %488 = vmatprep.mubr.bf16.mxu0 0
  %489 = vmatmul.mubr.bf16.gmra.mxu0 %v128
  %v490 = vpop.f32.mrf.mxu0
  %v491 = vadd.f32 %v450, %v490
  %v492 = vpop.f32.mrf.mxu0
  %v493 = vpop.f32.mrf.mxu0
  %v494 = vadd.f32 %v453, %v493
  %v495 = vpop.f32.mrf.mxu0
  %496 = vdwg.mxu0
  %v497 = vmax.f32 %v491, 0.0
  %v498 = vmax.f32 %v494, 0.0
  %v499 = vpack.c.bf16 %v498, %v497
  %v501 = vunpack.c.l.b16 %v499
  %v502 = vunpack.c.h.b16 %v499
  %v503 = vpack.c.b16 %v501, %v501
  %v504 = vpack.c.b16 %v502, %v502
  %507 = vst [vmem:[%s3] sm:$0xf] %v503
  %508 = vst [vmem:[%s3 + $0x4] sm:$0xf] %v504
  // Predicated region
  $region14: #{cnn_classifier_forward.16} parent=0 // pred_check
    _
  $region15: #{cnn_classifier_forward.16} parent=0 // pred_check_branch
    %510 = sbr.rel (0) target = $region17
  $region16: #{cnn_classifier_forward.16} parent=0 // pred_region
    _
  $region17: #{cnn_classifier_forward.16} parent=0 // pred_fallthru
    _
  // Predicated region
  $region18: #{cnn_classifier_forward.16} parent=0 // pred_check
    _
  $region19: #{cnn_classifier_forward.16} parent=0 // pred_check_branch
    %512 = sbr.rel (0) target = $region21
  $region20: #{cnn_classifier_forward.16} parent=0 // pred_region
    _
  $region21: #{cnn_classifier_forward.16} parent=0 // pred_fallthru
    _

// kernel: cnn_classifier_forward.17
$region0: #{cnn_classifier_forward.17}
  #allocation0 [shape = 'u32[]', space=smem, size = 0x4, offset = 0x4, fixed_abs, tag = 'smem constant byte address 0x4 - core index']
  #allocation1 [shape = 'u32[144,128]{1,0:T(1,128)}', space=vmem, size = 0x12000, scoped, tag = 'internal scratch']
  %s0 = inlined_call_operand.vmem [shape: bf16[16,1152], index: 0, kind: input, shape index: {}]
  %s1 = inlined_call_operand.vmem [shape: bf16[1152,128], index: 1, kind: input, shape index: {}]
  %s2 = inlined_call_operand.vmem [shape: f32[1,128], index: 2, kind: input, shape index: {}]
  %s3 = inlined_call_operand.vmem [shape: bf16[16,128], index: 3, kind: output, shape index: {}]
  %s4 = sld [smem:[#allocation0]]
  $region22: #{cnn_classifier_forward.17} parent=0
    _
  %s6 = ssub.s32 1, %s4
  %s7 = scalar_select 0, %s6, %s4
  // Predicated region
  $region2: #{cnn_classifier_forward.17} parent=0 // pred_check
    _
  $region3: #{cnn_classifier_forward.17} parent=0 // pred_check_branch
    %9 = sbr.rel (0) target = $region5
  $region4: #{cnn_classifier_forward.17} parent=0 // pred_region
    _
  $region5: #{cnn_classifier_forward.17} parent=0 // pred_fallthru
    _
  // Predicated region
  $region6: #{cnn_classifier_forward.17} parent=0 // pred_check
    _
  $region7: #{cnn_classifier_forward.17} parent=0 // pred_check_branch
    %11 = sbr.rel (0) target = $region9
  $region8: #{cnn_classifier_forward.17} parent=0 // pred_region
    _
  $region9: #{cnn_classifier_forward.17} parent=0 // pred_fallthru
    _
  // Predicated region
  $region10: #{cnn_classifier_forward.17} parent=0 // pred_check
    _
  $region11: #{cnn_classifier_forward.17} parent=0 // pred_check_branch
    %13 = sbr.rel (0) target = $region13
  $region12: #{cnn_classifier_forward.17} parent=0 // pred_region
    _
  $region13: #{cnn_classifier_forward.17} parent=0 // pred_fallthru
    _
  %v15 = vld [vmem:[%s0] sm:$0xff]
  %v16 = vld [vmem:[%s0 + $0x8] sm:$0xff]
  %v17 = vld [vmem:[%s0 + $0x10] sm:$0xff]
  %v18 = vld [vmem:[%s0 + $0x18] sm:$0xff]
  %v19 = vld [vmem:[%s0 + $0x20] sm:$0xf]
  %v20 = vld [vmem:[%s0 + $0x24] sm:$0xff]
  %v21 = vld [vmem:[%s0 + $0x2c] sm:$0xff]
  %v22 = vld [vmem:[%s0 + $0x34] sm:$0xff]
  %v23 = vld [vmem:[%s0 + $0x3c] sm:$0xff]
  %v24 = vld [vmem:[%s0 + $0x44] sm:$0xf]
  %v25 = vld [vmem:[%s1] sm:$0xf]
  %v26 = vld [vmem:[%s1 + $0x4] sm:$0xf]
  %v27 = vld [vmem:[%s1 + $0x8] sm:$0xf]
  %v28 = vld [vmem:[%s1 + $0xc] sm:$0xf]
  %v29 = vld [vmem:[%s1 + $0x10] sm:$0xf]
  %v30 = vld [vmem:[%s1 + $0x14] sm:$0xf]
  %v31 = vld [vmem:[%s1 + $0x18] sm:$0xf]
  %v32 = vld [vmem:[%s1 + $0x1c] sm:$0xf]
  %v33 = vld [vmem:[%s1 + $0x20] sm:$0xf]
  %v34 = vld [vmem:[%s1 + $0x24] sm:$0xf]
  %v35 = vld [vmem:[%s1 + $0x28] sm:$0xf]
  %v36 = vld [vmem:[%s1 + $0x2c] sm:$0xf]
  %v37 = vld [vmem:[%s1 + $0x30] sm:$0xf]
  %v38 = vld [vmem:[%s1 + $0x34] sm:$0xf]
  %v39 = vld [vmem:[%s1 + $0x38] sm:$0xf]
  %v40 = vld [vmem:[%s1 + $0x3c] sm:$0xf]
  %v41 = vld [vmem:[%s1 + $0x40] sm:$0xf]
  %v42 = vld [vmem:[%s1 + $0x44] sm:$0xf]
  %v43 = vld [vmem:[%s1 + $0x48] sm:$0xf]
  %v44 = vld [vmem:[%s1 + $0x4c] sm:$0xf]
  %v45 = vld [vmem:[%s1 + $0x50] sm:$0xf]
  %v46 = vld [vmem:[%s1 + $0x54] sm:$0xf]
  %v47 = vld [vmem:[%s1 + $0x58] sm:$0xf]
  %v48 = vld [vmem:[%s1 + $0x5c] sm:$0xf]
  %v49 = vld [vmem:[%s1 + $0x60] sm:$0xf]
  %v50 = vld [vmem:[%s1 + $0x64] sm:$0xf]
  %v51 = vld [vmem:[%s1 + $0x68] sm:$0xf]
  %v52 = vld [vmem:[%s1 + $0x6c] sm:$0xf]
  %v53 = vld [vmem:[%s1 + $0x70] sm:$0xf]
  %v54 = vld [vmem:[%s1 + $0x74] sm:$0xf]
  %v55 = vld [vmem:[%s1 + $0x78] sm:$0xf]
  %v56 = vld [vmem:[%s1 + $0x7c] sm:$0xf]
  %v57 = vld [vmem:[%s1 + $0x80] sm:$0xf]
  %v58 = vld [vmem:[%s1 + $0x84] sm:$0xf]
  %v59 = vld [vmem:[%s1 + $0x88] sm:$0xf]
  %v60 = vld [vmem:[%s1 + $0x8c] sm:$0xf]
  %v61 = vld [vmem:[%s1 + $0x90] sm:$0xf]
  %v62 = vld [vmem:[%s1 + $0x94] sm:$0xf]
  %v63 = vld [vmem:[%s1 + $0x98] sm:$0xf]
  %v64 = vld [vmem:[%s1 + $0x9c] sm:$0xf]
  %v65 = vld [vmem:[%s1 + $0xa0] sm:$0xf]
  %v66 = vld [vmem:[%s1 + $0xa4] sm:$0xf]
  %v67 = vld [vmem:[%s1 + $0xa8] sm:$0xf]
  %v68 = vld [vmem:[%s1 + $0xac] sm:$0xf]
  %v69 = vld [vmem:[%s1 + $0xb0] sm:$0xf]
  %v70 = vld [vmem:[%s1 + $0xb4] sm:$0xf]
  %v71 = vld [vmem:[%s1 + $0xb8] sm:$0xf]
  %v72 = vld [vmem:[%s1 + $0xbc] sm:$0xf]
  %v73 = vld [vmem:[%s1 + $0xc0] sm:$0xf]
  %v74 = vld [vmem:[%s1 + $0xc4] sm:$0xf]
  %v75 = vld [vmem:[%s1 + $0xc8] sm:$0xf]
  %v76 = vld [vmem:[%s1 + $0xcc] sm:$0xf]
  %v77 = vld [vmem:[%s1 + $0xd0] sm:$0xf]
  %v78 = vld [vmem:[%s1 + $0xd4] sm:$0xf]
  %v79 = vld [vmem:[%s1 + $0xd8] sm:$0xf]
  %v80 = vld [vmem:[%s1 + $0xdc] sm:$0xf]
  %v81 = vld [vmem:[%s1 + $0xe0] sm:$0xf]
  %v82 = vld [vmem:[%s1 + $0xe4] sm:$0xf]
  %v83 = vld [vmem:[%s1 + $0xe8] sm:$0xf]
  %v84 = vld [vmem:[%s1 + $0xec] sm:$0xf]
  %v85 = vld [vmem:[%s1 + $0xf0] sm:$0xf]
  %v86 = vld [vmem:[%s1 + $0xf4] sm:$0xf]
  %v87 = vld [vmem:[%s1 + $0xf8] sm:$0xf]
  %v88 = vld [vmem:[%s1 + $0xfc] sm:$0xf]
  %v89 = vld [vmem:[%s1 + $0x100] sm:$0xf]
  %v90 = vld [vmem:[%s1 + $0x104] sm:$0xf]
  %v91 = vld [vmem:[%s1 + $0x108] sm:$0xf]
  %v92 = vld [vmem:[%s1 + $0x10c] sm:$0xf]
  %v93 = vld [vmem:[%s1 + $0x110] sm:$0xf]
  %v94 = vld [vmem:[%s1 + $0x114] sm:$0xf]
  %v95 = vld [vmem:[%s1 + $0x118] sm:$0xf]
  %v96 = vld [vmem:[%s1 + $0x11c] sm:$0xf]
  %v97 = vld [vmem:[%s1 + $0x120] sm:$0xf]
  %v98 = vld [vmem:[%s1 + $0x124] sm:$0xf]
  %v99 = vld [vmem:[%s1 + $0x128] sm:$0xf]
  %v100 = vld [vmem:[%s1 + $0x12c] sm:$0xf]
  %v101 = vld [vmem:[%s1 + $0x130] sm:$0xf]
  %v102 = vld [vmem:[%s1 + $0x134] sm:$0xf]
  %v103 = vld [vmem:[%s1 + $0x138] sm:$0xf]
  %v104 = vld [vmem:[%s1 + $0x13c] sm:$0xf]
  %v105 = vld [vmem:[%s1 + $0x140] sm:$0xf]
  %v106 = vld [vmem:[%s1 + $0x144] sm:$0xf]
  %v107 = vld [vmem:[%s1 + $0x148] sm:$0xf]
  %v108 = vld [vmem:[%s1 + $0x14c] sm:$0xf]
  %v109 = vld [vmem:[%s1 + $0x150] sm:$0xf]
  %v110 = vld [vmem:[%s1 + $0x154] sm:$0xf]
  %v111 = vld [vmem:[%s1 + $0x158] sm:$0xf]
  %v112 = vld [vmem:[%s1 + $0x15c] sm:$0xf]
  %v113 = vld [vmem:[%s1 + $0x160] sm:$0xf]
  %v114 = vld [vmem:[%s1 + $0x164] sm:$0xf]
  %v115 = vld [vmem:[%s1 + $0x168] sm:$0xf]
  %v116 = vld [vmem:[%s1 + $0x16c] sm:$0xf]
  %v117 = vld [vmem:[%s1 + $0x170] sm:$0xf]
  %v118 = vld [vmem:[%s1 + $0x174] sm:$0xf]
  %v119 = vld [vmem:[%s1 + $0x178] sm:$0xf]
  %v120 = vld [vmem:[%s1 + $0x17c] sm:$0xf]
  %v121 = vld [vmem:[%s1 + $0x180] sm:$0xf]
  %v122 = vld [vmem:[%s1 + $0x184] sm:$0xf]
  %v123 = vld [vmem:[%s1 + $0x188] sm:$0xf]
  %v124 = vld [vmem:[%s1 + $0x18c] sm:$0xf]
  %v125 = vld [vmem:[%s1 + $0x190] sm:$0xf]
  %v126 = vld [vmem:[%s1 + $0x194] sm:$0xf]
  %v127 = vld [vmem:[%s1 + $0x198] sm:$0xf]
  %v128 = vld [vmem:[%s1 + $0x19c] sm:$0xf]
  %v129 = vld [vmem:[%s1 + $0x1a0] sm:$0xf]
  %v130 = vld [vmem:[%s1 + $0x1a4] sm:$0xf]
  %v131 = vld [vmem:[%s1 + $0x1a8] sm:$0xf]
  %v132 = vld [vmem:[%s1 + $0x1ac] sm:$0xf]
  %v133 = vld [vmem:[%s1 + $0x1b0] sm:$0xf]
  %v134 = vld [vmem:[%s1 + $0x1b4] sm:$0xf]
  %v135 = vld [vmem:[%s1 + $0x1b8] sm:$0xf]
  %v136 = vld [vmem:[%s1 + $0x1bc] sm:$0xf]
  %v137 = vld [vmem:[%s1 + $0x1c0] sm:$0xf]
  %v138 = vld [vmem:[%s1 + $0x1c4] sm:$0xf]
  %v139 = vld [vmem:[%s1 + $0x1c8] sm:$0xf]
  %v140 = vld [vmem:[%s1 + $0x1cc] sm:$0xf]
  %v141 = vld [vmem:[%s1 + $0x1d0] sm:$0xf]
  %v142 = vld [vmem:[%s1 + $0x1d4] sm:$0xf]
  %v143 = vld [vmem:[%s1 + $0x1d8] sm:$0xf]
  %v144 = vld [vmem:[%s1 + $0x1dc] sm:$0xf]
  %v145 = vld [vmem:[%s1 + $0x1e0] sm:$0xf]
  %v146 = vld [vmem:[%s1 + $0x1e4] sm:$0xf]
  %v147 = vld [vmem:[%s1 + $0x1e8] sm:$0xf]
  %v148 = vld [vmem:[%s1 + $0x1ec] sm:$0xf]
  %v149 = vld [vmem:[%s1 + $0x1f0] sm:$0xf]
  %v150 = vld [vmem:[%s1 + $0x1f4] sm:$0xf]
  %v151 = vld [vmem:[%s1 + $0x1f8] sm:$0xf]
  %v152 = vld [vmem:[%s1 + $0x1fc] sm:$0xf]
  %v153 = vld [vmem:[%s1 + $0x200] sm:$0xf]
  %v154 = vld [vmem:[%s1 + $0x204] sm:$0xf]
  %v155 = vld [vmem:[%s1 + $0x208] sm:$0xf]
  %v156 = vld [vmem:[%s1 + $0x20c] sm:$0xf]
  %v157 = vld [vmem:[%s1 + $0x210] sm:$0xf]
  %v158 = vld [vmem:[%s1 + $0x214] sm:$0xf]
  %v159 = vld [vmem:[%s1 + $0x218] sm:$0xf]
  %v160 = vld [vmem:[%s1 + $0x21c] sm:$0xf]
  %v161 = vld [vmem:[%s1 + $0x220] sm:$0xf]
  %v162 = vld [vmem:[%s1 + $0x224] sm:$0xf]
  %v163 = vld [vmem:[%s1 + $0x228] sm:$0xf]
  %v164 = vld [vmem:[%s1 + $0x22c] sm:$0xf]
  %v165 = vld [vmem:[%s1 + $0x230] sm:$0xf]
  %v166 = vld [vmem:[%s1 + $0x234] sm:$0xf]
  %v167 = vld [vmem:[%s1 + $0x238] sm:$0xf]
  %v168 = vld [vmem:[%s1 + $0x23c] sm:$0xf]
  %v169 = vld [vmem:[%s2] sm:$0x1]
  %v171 = vlaneseq
  %v172 = vshrl.u32 %v171, 7
  %v173 = vsub.s32 0, %v172
  %v174 = vrot.slane %v169, %v173
  %v186 = vunpack.c.l.b16 %v15
  %v187 = vunpack.c.h.b16 %v15
  %v188 = vunpack.c.l.b16 %v16
  %v189 = vunpack.c.h.b16 %v16
  %v190 = vunpack.c.l.b16 %v17
  %v191 = vunpack.c.h.b16 %v17
  %v192 = vunpack.c.l.b16 %v18
  %v193 = vunpack.c.h.b16 %v18
  %v194 = vunpack.c.l.b16 %v19
  %v195 = vunpack.c.l.b16 %v20
  %v196 = vunpack.c.h.b16 %v20
  %v197 = vunpack.c.l.b16 %v21
  %v198 = vunpack.c.h.b16 %v21
  %v199 = vunpack.c.l.b16 %v22
  %v200 = vunpack.c.h.b16 %v22
  %v201 = vunpack.c.l.b16 %v23
  %v202 = vunpack.c.h.b16 %v23
  %v203 = vunpack.c.l.b16 %v24
  %v204 = vpack.c.b16 %v195, %v186
  %v205 = vpack.c.b16 %v196, %v187
  %v206 = vpack.c.b16 %v197, %v188
  %v207 = vpack.c.b16 %v198, %v189
  %v208 = vpack.c.b16 %v199, %v190
  %v209 = vpack.c.b16 %v200, %v191
  %v210 = vpack.c.b16 %v201, %v192
  %v211 = vpack.c.b16 %v202, %v193
  %v212 = vpack.c.b16 %v203, %v194
  %v366 = vunpack.c.l.b16 %v25
  %v367 = vunpack.c.l.b16 %v26
  %v368 = vunpack.c.l.b16 %v27
  %v369 = vunpack.c.l.b16 %v28
  %v370 = vunpack.c.l.b16 %v29
  %v371 = vunpack.c.l.b16 %v30
  %v372 = vunpack.c.l.b16 %v31
  %v373 = vunpack.c.l.b16 %v32
  %v374 = vunpack.c.l.b16 %v33
  %v375 = vunpack.c.l.b16 %v34
  %v376 = vunpack.c.l.b16 %v35
  %v377 = vunpack.c.l.b16 %v36
  %v378 = vunpack.c.l.b16 %v37
  %v379 = vunpack.c.l.b16 %v38
  %v380 = vunpack.c.l.b16 %v39
  %v381 = vunpack.c.l.b16 %v40
  %v382 = vunpack.c.l.b16 %v41
  %v383 = vunpack.c.l.b16 %v42
  %v384 = vunpack.c.l.b16 %v43
  %v385 = vunpack.c.l.b16 %v44
  %v386 = vunpack.c.l.b16 %v45
  %v387 = vunpack.c.l.b16 %v46
  %v388 = vunpack.c.l.b16 %v47
  %v389 = vunpack.c.l.b16 %v48
  %v390 = vunpack.c.l.b16 %v49
  %v391 = vunpack.c.l.b16 %v50
  %v392 = vunpack.c.l.b16 %v51
  %v393 = vunpack.c.l.b16 %v52
  %v394 = vunpack.c.l.b16 %v53
  %v395 = vunpack.c.l.b16 %v54
  %v396 = vunpack.c.l.b16 %v55
  %v397 = vunpack.c.l.b16 %v56
  %v398 = vunpack.c.l.b16 %v57
  %v399 = vunpack.c.l.b16 %v58
  %v400 = vunpack.c.l.b16 %v59
  %v401 = vunpack.c.l.b16 %v60
  %v402 = vunpack.c.l.b16 %v61
  %v403 = vunpack.c.l.b16 %v62
  %v404 = vunpack.c.l.b16 %v63
  %v405 = vunpack.c.l.b16 %v64
  %v406 = vunpack.c.l.b16 %v65
  %v407 = vunpack.c.l.b16 %v66
  %v408 = vunpack.c.l.b16 %v67
  %v409 = vunpack.c.l.b16 %v68
  %v410 = vunpack.c.l.b16 %v69
  %v411 = vunpack.c.l.b16 %v70
  %v412 = vunpack.c.l.b16 %v71
  %v413 = vunpack.c.l.b16 %v72
  %v414 = vunpack.c.l.b16 %v73
  %v415 = vunpack.c.l.b16 %v74
  %v416 = vunpack.c.l.b16 %v75
  %v417 = vunpack.c.l.b16 %v76
  %v418 = vunpack.c.l.b16 %v77
  %v419 = vunpack.c.l.b16 %v78
  %v420 = vunpack.c.l.b16 %v79
  %v421 = vunpack.c.l.b16 %v80
  %v422 = vunpack.c.l.b16 %v81
  %v423 = vunpack.c.l.b16 %v82
  %v424 = vunpack.c.l.b16 %v83
  %v425 = vunpack.c.l.b16 %v84
  %v426 = vunpack.c.l.b16 %v85
  %v427 = vunpack.c.l.b16 %v86
  %v428 = vunpack.c.l.b16 %v87
  %v429 = vunpack.c.l.b16 %v88
  %v430 = vunpack.c.l.b16 %v89
  %v431 = vunpack.c.l.b16 %v90
  %v432 = vunpack.c.l.b16 %v91
  %v433 = vunpack.c.l.b16 %v92
  %v434 = vunpack.c.l.b16 %v93
  %v435 = vunpack.c.l.b16 %v94
  %v436 = vunpack.c.l.b16 %v95
  %v437 = vunpack.c.l.b16 %v96
  %v438 = vunpack.c.l.b16 %v97
  %v439 = vunpack.c.l.b16 %v98
  %v440 = vunpack.c.l.b16 %v99
  %v441 = vunpack.c.l.b16 %v100
  %v442 = vunpack.c.l.b16 %v101
  %v443 = vunpack.c.l.b16 %v102
  %v444 = vunpack.c.l.b16 %v103
  %v445 = vunpack.c.l.b16 %v104
  %v446 = vunpack.c.l.b16 %v105
  %v447 = vunpack.c.l.b16 %v106
  %v448 = vunpack.c.l.b16 %v107
  %v449 = vunpack.c.l.b16 %v108
  %v450 = vunpack.c.l.b16 %v109
  %v451 = vunpack.c.l.b16 %v110
  %v452 = vunpack.c.l.b16 %v111
  %v453 = vunpack.c.l.b16 %v112
  %v454 = vunpack.c.l.b16 %v113
  %v455 = vunpack.c.l.b16 %v114
  %v456 = vunpack.c.l.b16 %v115
  %v457 = vunpack.c.l.b16 %v116
  %v458 = vunpack.c.l.b16 %v117
  %v459 = vunpack.c.l.b16 %v118
  %v460 = vunpack.c.l.b16 %v119
  %v461 = vunpack.c.l.b16 %v120
  %v462 = vunpack.c.l.b16 %v121
  %v463 = vunpack.c.l.b16 %v122
  %v464 = vunpack.c.l.b16 %v123
  %v465 = vunpack.c.l.b16 %v124
  %v466 = vunpack.c.l.b16 %v125
  %v467 = vunpack.c.l.b16 %v126
  %v468 = vunpack.c.l.b16 %v127
  %v469 = vunpack.c.l.b16 %v128
  %v470 = vunpack.c.l.b16 %v129
  %v471 = vunpack.c.l.b16 %v130
  %v472 = vunpack.c.l.b16 %v131
  %v473 = vunpack.c.l.b16 %v132
  %v474 = vunpack.c.l.b16 %v133
  %v475 = vunpack.c.l.b16 %v134
  %v476 = vunpack.c.l.b16 %v135
  %v477 = vunpack.c.l.b16 %v136
  %v478 = vunpack.c.l.b16 %v137
  %v479 = vunpack.c.l.b16 %v138
  %v480 = vunpack.c.l.b16 %v139
  %v481 = vunpack.c.l.b16 %v140
  %v482 = vunpack.c.l.b16 %v141
  %v483 = vunpack.c.l.b16 %v142
  %v484 = vunpack.c.l.b16 %v143
  %v485 = vunpack.c.l.b16 %v144
  %v486 = vunpack.c.l.b16 %v145
  %v487 = vunpack.c.l.b16 %v146
  %v488 = vunpack.c.l.b16 %v147
  %v489 = vunpack.c.l.b16 %v148
  %v490 = vunpack.c.l.b16 %v149
  %v491 = vunpack.c.l.b16 %v150
  %v492 = vunpack.c.l.b16 %v151
  %v493 = vunpack.c.l.b16 %v152
  %v494 = vunpack.c.l.b16 %v153
  %v495 = vunpack.c.l.b16 %v154
  %v496 = vunpack.c.l.b16 %v155
  %v497 = vunpack.c.l.b16 %v156
  %v498 = vunpack.c.l.b16 %v157
  %v499 = vunpack.c.l.b16 %v158
  %v500 = vunpack.c.l.b16 %v159
  %v501 = vunpack.c.l.b16 %v160
  %v502 = vunpack.c.l.b16 %v161
  %v503 = vunpack.c.l.b16 %v162
  %v504 = vunpack.c.l.b16 %v163
  %v505 = vunpack.c.l.b16 %v164
  %v506 = vunpack.c.l.b16 %v165
  %v507 = vunpack.c.l.b16 %v166
  %v508 = vunpack.c.l.b16 %v167
  %v509 = vunpack.c.l.b16 %v168
  %v510 = vpack.c.b16 %v367, %v366
  %v511 = vpack.c.b16 %v369, %v368
  %v512 = vpack.c.b16 %v371, %v370
  %v513 = vpack.c.b16 %v373, %v372
  %v514 = vpack.c.b16 %v375, %v374
  %v515 = vpack.c.b16 %v377, %v376
  %v516 = vpack.c.b16 %v379, %v378
  %v517 = vpack.c.b16 %v381, %v380
  %v518 = vpack.c.b16 %v383, %v382
  %v519 = vpack.c.b16 %v385, %v384
  %v520 = vpack.c.b16 %v387, %v386
  %v521 = vpack.c.b16 %v389, %v388
  %v522 = vpack.c.b16 %v391, %v390
  %v523 = vpack.c.b16 %v393, %v392
  %v524 = vpack.c.b16 %v395, %v394
  %v525 = vpack.c.b16 %v397, %v396
  %v526 = vpack.c.b16 %v399, %v398
  %v527 = vpack.c.b16 %v401, %v400
  %v528 = vpack.c.b16 %v403, %v402
  %v529 = vpack.c.b16 %v405, %v404
  %v530 = vpack.c.b16 %v407, %v406
  %v531 = vpack.c.b16 %v409, %v408
  %v532 = vpack.c.b16 %v411, %v410
  %v533 = vpack.c.b16 %v413, %v412
  %v534 = vpack.c.b16 %v415, %v414
  %v535 = vpack.c.b16 %v417, %v416
  %v536 = vpack.c.b16 %v419, %v418
  %v537 = vpack.c.b16 %v421, %v420
  %v538 = vpack.c.b16 %v423, %v422
  %v539 = vpack.c.b16 %v425, %v424
  %v540 = vpack.c.b16 %v427, %v426
  %v541 = vpack.c.b16 %v429, %v428
  %v542 = vpack.c.b16 %v431, %v430
  %v543 = vpack.c.b16 %v433, %v432
  %v544 = vpack.c.b16 %v435, %v434
  %v545 = vpack.c.b16 %v437, %v436
  %v546 = vpack.c.b16 %v439, %v438
  %v547 = vpack.c.b16 %v441, %v440
  %v548 = vpack.c.b16 %v443, %v442
  %v549 = vpack.c.b16 %v445, %v444
  %v550 = vpack.c.b16 %v447, %v446
  %v551 = vpack.c.b16 %v449, %v448
  %v552 = vpack.c.b16 %v451, %v450
  %v553 = vpack.c.b16 %v453, %v452
  %v554 = vpack.c.b16 %v455, %v454
  %v555 = vpack.c.b16 %v457, %v456
  %v556 = vpack.c.b16 %v459, %v458
  %v557 = vpack.c.b16 %v461, %v460
  %v558 = vpack.c.b16 %v463, %v462
  %v559 = vpack.c.b16 %v465, %v464
  %v560 = vpack.c.b16 %v467, %v466
  %v561 = vpack.c.b16 %v469, %v468
  %v562 = vpack.c.b16 %v471, %v470
  %v563 = vpack.c.b16 %v473, %v472
  %v564 = vpack.c.b16 %v475, %v474
  %v565 = vpack.c.b16 %v477, %v476
  %v566 = vpack.c.b16 %v479, %v478
  %v567 = vpack.c.b16 %v481, %v480
  %v568 = vpack.c.b16 %v483, %v482
  %v569 = vpack.c.b16 %v485, %v484
  %v570 = vpack.c.b16 %v487, %v486
  %v571 = vpack.c.b16 %v489, %v488
  %v572 = vpack.c.b16 %v491, %v490
  %v573 = vpack.c.b16 %v493, %v492
  %v574 = vpack.c.b16 %v495, %v494
  %v575 = vpack.c.b16 %v497, %v496
  %v576 = vpack.c.b16 %v499, %v498
  %v577 = vpack.c.b16 %v501, %v500
  %v578 = vpack.c.b16 %v503, %v502
  %v579 = vpack.c.b16 %v505, %v504
  %v580 = vpack.c.b16 %v507, %v506
  %v581 = vpack.c.b16 %v509, %v508
  %654 = vmatprep.subr.bf16.mxu0 0
  %655 = vmatpush1.bf16.msra.mxu0 %v517
  %656 = vmatprep.subr.bf16.mxu0 0
  %657 = vmatpush1.bf16.msra.mxu0 %v516
  %658 = vmatprep.subr.bf16.mxu0 0
  %659 = vmatpush1.bf16.msra.mxu0 %v515
  %660 = vmatprep.subr.bf16.mxu0 0
  %661 = vmatpush1.bf16.msra.mxu0 %v514
  %662 = vmatprep.subr.bf16.mxu0 0
  %663 = vmatpush1.bf16.msra.mxu0 %v513
  %664 = vmatprep.subr.bf16.mxu0 0
  %665 = vmatpush1.bf16.msra.mxu0 %v512
  %666 = vmatprep.subr.bf16.mxu0 0
  %667 = vmatpush1.bf16.msra.mxu0 %v511
  %668 = vmatprep.subr.bf16.mxu0 0
  %669 = vmatpush1.bf16.msra.mxu0 %v510
  %670 = vmatprep.subr.bf16.mxu0 0
  %671 = vmatpush2.bf16.msra.mxu0 %v525
  %672 = vmatprep.subr.bf16.mxu0 0
  %673 = vmatpush2.bf16.msra.mxu0 %v524
  %674 = vmatprep.subr.bf16.mxu0 0
  %675 = vmatpush2.bf16.msra.mxu0 %v523
  %676 = vmatprep.subr.bf16.mxu0 0
  %677 = vmatpush2.bf16.msra.mxu0 %v522
  %678 = vmatprep.subr.bf16.mxu0 0
  %679 = vmatpush2.bf16.msra.mxu0 %v521
  %680 = vmatprep.subr.bf16.mxu0 0
  %681 = vmatpush2.bf16.msra.mxu0 %v520
  %682 = vmatprep.subr.bf16.mxu0 0
  %683 = vmatpush2.bf16.msra.mxu0 %v519
  %684 = vmatprep.subr.bf16.mxu0 0
  %685 = vmatpush2.bf16.msra.mxu0 %v518
  %686 = vmatprep.mubr.bf16.mxu0 %v205
  %687 = vmatmul.mubr.bf16.gmra.mxu0 %v204
  %v688 = vpop.f32.mrf.mxu0
  %v689 = vadd.f32 %v174, %v688
  %v690 = vpop.f32.mrf.mxu0
  %v691 = vpop.f32.mrf.mxu0
  %v692 = vadd.f32 %v174, %v691
  %v693 = vpop.f32.mrf.mxu0
  %694 = vdwg.mxu0
  %695 = vmatprep.subr.bf16.mxu0 0
  %696 = vmatpush1.bf16.msra.mxu0 %v533
  %697 = vmatprep.subr.bf16.mxu0 0
  %698 = vmatpush1.bf16.msra.mxu0 %v532
  %699 = vmatprep.subr.bf16.mxu0 0
  %700 = vmatpush1.bf16.msra.mxu0 %v531
  %701 = vmatprep.subr.bf16.mxu0 0
  %702 = vmatpush1.bf16.msra.mxu0 %v530
  %703 = vmatprep.subr.bf16.mxu0 0
  %704 = vmatpush1.bf16.msra.mxu0 %v529
  %705 = vmatprep.subr.bf16.mxu0 0
  %706 = vmatpush1.bf16.msra.mxu0 %v528
  %707 = vmatprep.subr.bf16.mxu0 0
  %708 = vmatpush1.bf16.msra.mxu0 %v527
  %709 = vmatprep.subr.bf16.mxu0 0
  %710 = vmatpush1.bf16.msra.mxu0 %v526
  %711 = vmatprep.subr.bf16.mxu0 0
  %712 = vmatpush2.bf16.msra.mxu0 %v541
  %713 = vmatprep.subr.bf16.mxu0 0
  %714 = vmatpush2.bf16.msra.mxu0 %v540
  %715 = vmatprep.subr.bf16.mxu0 0
  %716 = vmatpush2.bf16.msra.mxu0 %v539
  %717 = vmatprep.subr.bf16.mxu0 0
  %718 = vmatpush2.bf16.msra.mxu0 %v538
  %719 = vmatprep.subr.bf16.mxu0 0
  %720 = vmatpush2.bf16.msra.mxu0 %v537
  %721 = vmatprep.subr.bf16.mxu0 0
  %722 = vmatpush2.bf16.msra.mxu0 %v536
  %723 = vmatprep.subr.bf16.mxu0 0
  %724 = vmatpush2.bf16.msra.mxu0 %v535
  %725 = vmatprep.subr.bf16.mxu0 0
  %726 = vmatpush2.bf16.msra.mxu0 %v534
  %727 = vmatprep.mubr.bf16.mxu0 %v207
  %728 = vmatmul.mubr.bf16.gmra.mxu0 %v206
  %v729 = vpop.f32.mrf.mxu0
  %v730 = vadd.f32 %v689, %v729
  %v731 = vpop.f32.mrf.mxu0
  %v732 = vpop.f32.mrf.mxu0
  %v733 = vadd.f32 %v692, %v732
  %v734 = vpop.f32.mrf.mxu0
  %735 = vdwg.mxu0
  %736 = vmatprep.subr.bf16.mxu0 0
  %737 = vmatpush1.bf16.msra.mxu0 %v549
  %738 = vmatprep.subr.bf16.mxu0 0
  %739 = vmatpush1.bf16.msra.mxu0 %v548
  %740 = vmatprep.subr.bf16.mxu0 0
  %741 = vmatpush1.bf16.msra.mxu0 %v547
  %742 = vmatprep.subr.bf16.mxu0 0
  %743 = vmatpush1.bf16.msra.mxu0 %v546
  %744 = vmatprep.subr.bf16.mxu0 0
  %745 = vmatpush1.bf16.msra.mxu0 %v545
  %746 = vmatprep.subr.bf16.mxu0 0
  %747 = vmatpush1.bf16.msra.mxu0 %v544
  %748 = vmatprep.subr.bf16.mxu0 0
  %749 = vmatpush1.bf16.msra.mxu0 %v543
  %750 = vmatprep.subr.bf16.mxu0 0
  %751 = vmatpush1.bf16.msra.mxu0 %v542
  %752 = vmatprep.subr.bf16.mxu0 0
  %753 = vmatpush2.bf16.msra.mxu0 %v557
  %754 = vmatprep.subr.bf16.mxu0 0
  %755 = vmatpush2.bf16.msra.mxu0 %v556
  %756 = vmatprep.subr.bf16.mxu0 0
  %757 = vmatpush2.bf16.msra.mxu0 %v555
  %758 = vmatprep.subr.bf16.mxu0 0
  %759 = vmatpush2.bf16.msra.mxu0 %v554
  %760 = vmatprep.subr.bf16.mxu0 0
  %761 = vmatpush2.bf16.msra.mxu0 %v553
  %762 = vmatprep.subr.bf16.mxu0 0
  %763 = vmatpush2.bf16.msra.mxu0 %v552
  %764 = vmatprep.subr.bf16.mxu0 0
  %765 = vmatpush2.bf16.msra.mxu0 %v551
  %766 = vmatprep.subr.bf16.mxu0 0
  %767 = vmatpush2.bf16.msra.mxu0 %v550
  %768 = vmatprep.mubr.bf16.mxu0 %v209
  %769 = vmatmul.mubr.bf16.gmra.mxu0 %v208
  %v770 = vpop.f32.mrf.mxu0
  %v771 = vadd.f32 %v730, %v770
  %v772 = vpop.f32.mrf.mxu0
  %v773 = vpop.f32.mrf.mxu0
  %v774 = vadd.f32 %v733, %v773
  %v775 = vpop.f32.mrf.mxu0
  %776 = vdwg.mxu0
  %777 = vmatprep.subr.bf16.mxu0 0
  %778 = vmatpush1.bf16.msra.mxu0 %v565
  %779 = vmatprep.subr.bf16.mxu0 0
  %780 = vmatpush1.bf16.msra.mxu0 %v564
  %781 = vmatprep.subr.bf16.mxu0 0
  %782 = vmatpush1.bf16.msra.mxu0 %v563
  %783 = vmatprep.subr.bf16.mxu0 0
  %784 = vmatpush1.bf16.msra.mxu0 %v562
  %785 = vmatprep.subr.bf16.mxu0 0
  %786 = vmatpush1.bf16.msra.mxu0 %v561
  %787 = vmatprep.subr.bf16.mxu0 0
  %788 = vmatpush1.bf16.msra.mxu0 %v560
  %789 = vmatprep.subr.bf16.mxu0 0
  %790 = vmatpush1.bf16.msra.mxu0 %v559
  %791 = vmatprep.subr.bf16.mxu0 0
  %792 = vmatpush1.bf16.msra.mxu0 %v558
  %793 = vmatprep.subr.bf16.mxu0 0
  %794 = vmatpush2.bf16.msra.mxu0 %v573
  %795 = vmatprep.subr.bf16.mxu0 0
  %796 = vmatpush2.bf16.msra.mxu0 %v572
  %797 = vmatprep.subr.bf16.mxu0 0
  %798 = vmatpush2.bf16.msra.mxu0 %v571
  %799 = vmatprep.subr.bf16.mxu0 0
  %800 = vmatpush2.bf16.msra.mxu0 %v570
  %801 = vmatprep.subr.bf16.mxu0 0
  %802 = vmatpush2.bf16.msra.mxu0 %v569
  %803 = vmatprep.subr.bf16.mxu0 0
  %804 = vmatpush2.bf16.msra.mxu0 %v568
  %805 = vmatprep.subr.bf16.mxu0 0
  %806 = vmatpush2.bf16.msra.mxu0 %v567
  %807 = vmatprep.subr.bf16.mxu0 0
  %808 = vmatpush2.bf16.msra.mxu0 %v566
  %809 = vmatprep.mubr.bf16.mxu0 %v211
  %810 = vmatmul.mubr.bf16.gmra.mxu0 %v210
  %v811 = vpop.f32.mrf.mxu0
  %v812 = vadd.f32 %v771, %v811
  %v813 = vpop.f32.mrf.mxu0
  %v814 = vpop.f32.mrf.mxu0
  %v815 = vadd.f32 %v774, %v814
  %v816 = vpop.f32.mrf.mxu0
  %817 = vdwg.mxu0
  %818 = vmatprep.subr.bf16.mxu0 0
  %819 = vmatpush1.bf16.msra.mxu0 %v581
  %820 = vmatprep.subr.bf16.mxu0 0
  %821 = vmatpush1.bf16.msra.mxu0 %v580
  %822 = vmatprep.subr.bf16.mxu0 0
  %823 = vmatpush1.bf16.msra.mxu0 %v579
  %824 = vmatprep.subr.bf16.mxu0 0
  %825 = vmatpush1.bf16.msra.mxu0 %v578
  %826 = vmatprep.subr.bf16.mxu0 0
  %827 = vmatpush1.bf16.msra.mxu0 %v577
  %828 = vmatprep.subr.bf16.mxu0 0
  %829 = vmatpush1.bf16.msra.mxu0 %v576
  %830 = vmatprep.subr.bf16.mxu0 0
  %831 = vmatpush1.bf16.msra.mxu0 %v575
  %832 = vmatprep.subr.bf16.mxu0 0
  %833 = vmatpush1.bf16.msra.mxu0 %v574
  %834 = vmatprep.subr.bf16.mxu0 0
  %835 = vmatpush2.bf16.msra.mxu0 0
  %836 = vmatprep.subr.bf16.mxu0 0
  %837 = vmatpush2.bf16.msra.mxu0 0
  %838 = vmatprep.subr.bf16.mxu0 0
  %839 = vmatpush2.bf16.msra.mxu0 0
  %840 = vmatprep.subr.bf16.mxu0 0
  %841 = vmatpush2.bf16.msra.mxu0 0
  %842 = vmatprep.subr.bf16.mxu0 0
  %843 = vmatpush2.bf16.msra.mxu0 0
  %844 = vmatprep.subr.bf16.mxu0 0
  %845 = vmatpush2.bf16.msra.mxu0 0
  %846 = vmatprep.subr.bf16.mxu0 0
  %847 = vmatpush2.bf16.msra.mxu0 0
  %848 = vmatprep.subr.bf16.mxu0 0
  %849 = vmatpush2.bf16.msra.mxu0 0
  %850 = vmatprep.mubr.bf16.mxu0 0
  %851 = vmatmul.mubr.bf16.gmra.mxu0 %v212
  %v852 = vpop.f32.mrf.mxu0
  %v853 = vadd.f32 %v812, %v852
  %v854 = vpop.f32.mrf.mxu0
  %v855 = vpop.f32.mrf.mxu0
  %v856 = vadd.f32 %v815, %v855
  %v857 = vpop.f32.mrf.mxu0
  %858 = vdwg.mxu0
  %v859 = vmax.f32 %v853, 0.0
  %v860 = vmax.f32 %v856, 0.0
  %v861 = vpack.c.bf16 %v860, %v859
  %v863 = vunpack.c.l.b16 %v861
  %v864 = vunpack.c.h.b16 %v861
  %v865 = vpack.c.b16 %v863, %v863
  %v866 = vpack.c.b16 %v864, %v864
  %869 = vst [vmem:[%s3] sm:$0xf] %v865
  %870 = vst [vmem:[%s3 + $0x4] sm:$0xf] %v866
  // Predicated region
  $region14: #{cnn_classifier_forward.17} parent=0 // pred_check
    _
  $region15: #{cnn_classifier_forward.17} parent=0 // pred_check_branch
    %872 = sbr.rel (0) target = $region17
  $region16: #{cnn_classifier_forward.17} parent=0 // pred_region
    _
  $region17: #{cnn_classifier_forward.17} parent=0 // pred_fallthru
    _
  // Predicated region
  $region18: #{cnn_classifier_forward.17} parent=0 // pred_check
    _
  $region19: #{cnn_classifier_forward.17} parent=0 // pred_check_branch
    %874 = sbr.rel (0) target = $region21
  $region20: #{cnn_classifier_forward.17} parent=0 // pred_region
    _
  $region21: #{cnn_classifier_forward.17} parent=0 // pred_fallthru
    _

// kernel: cnn_classifier_forward.18
$region0: #{cnn_classifier_forward.18}
  #allocation0 [shape = 'u32[]', space=smem, size = 0x4, offset = 0x4, fixed_abs, tag = 'smem constant byte address 0x4 - core index']
  #allocation1 [shape = 'u32[144,128]{1,0:T(1,128)}', space=vmem, size = 0x12000, scoped, tag = 'internal scratch']
  %s0 = inlined_call_operand.vmem [shape: bf16[8,16,128], index: 0, kind: input, shape index: {}]
  %s1 = inlined_call_operand.vmem [shape: f32[8,128], index: 1, kind: output, shape index: {}]
  %s2 = sld [smem:[#allocation0]]
  $region22: #{cnn_classifier_forward.18} parent=0
    _
  %s4 = ssub.s32 1, %s2
  %s5 = scalar_select 0, %s4, %s2
  // Predicated region
  $region2: #{cnn_classifier_forward.18} parent=0 // pred_check
    _
  $region3: #{cnn_classifier_forward.18} parent=0 // pred_check_branch
    %7 = sbr.rel (0) target = $region5
  $region4: #{cnn_classifier_forward.18} parent=0 // pred_region
    _
  $region5: #{cnn_classifier_forward.18} parent=0 // pred_fallthru
    _
  %p8 = scmp.eq.s32.totalorder 0, 0
  // Predicated region
  $region6: #{cnn_classifier_forward.18} parent=0 // pred_check
    %p9 = pneg %p8
  $region7: #{cnn_classifier_forward.18} parent=0 // pred_check_branch
    %11 = sbr.rel (%p9) target = $region9
  $region8: #{cnn_classifier_forward.18} parent=0 // pred_region
    %12 = vst [vmem:[%s1] sm:$0xff] 0.0
  $region9: #{cnn_classifier_forward.18} parent=0 // pred_fallthru
    _
  %v13 = vld [vmem:[%s1] sm:$0xff]
  %v14 = vld [vmem:[%s0] sm:$0xf]
  %v15 = vld [vmem:[%s0 + $0x4] sm:$0xf]
  %v16 = vld [vmem:[%s0 + $0x8] sm:$0xf]
  %v17 = vld [vmem:[%s0 + $0xc] sm:$0xf]
  %v18 = vld [vmem:[%s0 + $0x10] sm:$0xf]
  %v19 = vld [vmem:[%s0 + $0x14] sm:$0xf]
  %v20 = vld [vmem:[%s0 + $0x18] sm:$0xf]
  %v21 = vld [vmem:[%s0 + $0x1c] sm:$0xf]
  %v22 = vld [vmem:[%s0 + $0x20] sm:$0xf]
  %v23 = vld [vmem:[%s0 + $0x24] sm:$0xf]
  %v24 = vld [vmem:[%s0 + $0x28] sm:$0xf]
  %v25 = vld [vmem:[%s0 + $0x2c] sm:$0xf]
  %v26 = vld [vmem:[%s0 + $0x30] sm:$0xf]
  %v27 = vld [vmem:[%s0 + $0x34] sm:$0xf]
  %v28 = vld [vmem:[%s0 + $0x38] sm:$0xf]
  %v29 = vld [vmem:[%s0 + $0x3c] sm:$0xf]
  %v30 = vunpack.c.l.bf16 %v14
  %v31 = vunpack.c.l.bf16 %v15
  %v32 = vunpack.c.l.bf16 %v16
  %v33 = vunpack.c.l.bf16 %v17
  %v34 = vunpack.c.l.bf16 %v18
  %v35 = vunpack.c.l.bf16 %v19
  %v36 = vunpack.c.l.bf16 %v20
  %v37 = vunpack.c.l.bf16 %v21
  %v38 = vunpack.c.l.bf16 %v22
  %v39 = vunpack.c.l.bf16 %v23
  %v40 = vunpack.c.l.bf16 %v24
  %v41 = vunpack.c.l.bf16 %v25
  %v42 = vunpack.c.l.bf16 %v26
  %v43 = vunpack.c.l.bf16 %v27
  %v44 = vunpack.c.l.bf16 %v28
  %v45 = vunpack.c.l.bf16 %v29
  %v46 = vadd.f32 %v30, %v31
  %v47 = vrot.slane %v46, 4
  %v48 = vadd.f32 %v46, %v47
  %v49 = vrot.slane %v48, 2
  %v50 = vadd.f32 %v48, %v49
  %v51 = vrot.slane %v50, 1
  %v52 = vadd.f32 %v50, %v51
  %v53 = vadd.f32 %v32, %v33
  %v54 = vrot.slane %v53, 4
  %v55 = vadd.f32 %v53, %v54
  %v56 = vrot.slane %v55, 2
  %v57 = vadd.f32 %v55, %v56
  %v58 = vrot.slane %v57, 1
  %v59 = vadd.f32 %v57, %v58
  %v60 = vadd.f32 %v34, %v35
  %v61 = vrot.slane %v60, 4
  %v62 = vadd.f32 %v60, %v61
  %v63 = vrot.slane %v62, 2
  %v64 = vadd.f32 %v62, %v63
  %v65 = vrot.slane %v64, 1
  %v66 = vadd.f32 %v64, %v65
  %v67 = vadd.f32 %v36, %v37
  %v68 = vrot.slane %v67, 4
  %v69 = vadd.f32 %v67, %v68
  %v70 = vrot.slane %v69, 2
  %v71 = vadd.f32 %v69, %v70
  %v72 = vrot.slane %v71, 1
  %v73 = vadd.f32 %v71, %v72
  %v74 = vadd.f32 %v38, %v39
  %v75 = vrot.slane %v74, 4
  %v76 = vadd.f32 %v74, %v75
  %v77 = vrot.slane %v76, 2
  %v78 = vadd.f32 %v76, %v77
  %v79 = vrot.slane %v78, 1
  %v80 = vadd.f32 %v78, %v79
  %v81 = vadd.f32 %v40, %v41
  %v82 = vrot.slane %v81, 4
  %v83 = vadd.f32 %v81, %v82
  %v84 = vrot.slane %v83, 2
  %v85 = vadd.f32 %v83, %v84
  %v86 = vrot.slane %v85, 1
  %v87 = vadd.f32 %v85, %v86
  %v88 = vadd.f32 %v42, %v43
  %v89 = vrot.slane %v88, 4
  %v90 = vadd.f32 %v88, %v89
  %v91 = vrot.slane %v90, 2
  %v92 = vadd.f32 %v90, %v91
  %v93 = vrot.slane %v92, 1
  %v94 = vadd.f32 %v92, %v93
  %v95 = vadd.f32 %v44, %v45
  %v96 = vrot.slane %v95, 4
  %v97 = vadd.f32 %v95, %v96
  %v98 = vrot.slane %v97, 2
  %v99 = vadd.f32 %v97, %v98
  %v100 = vrot.slane %v99, 1
  %v101 = vadd.f32 %v99, %v100
  %vm110 = vcmask 1041409
  %v111 = vsel %vm110, %v59, %v52
  %vm112 = vcmask 1042434
  %v113 = vsel %vm112, %v66, %v111
  %vm114 = vcmask 1043459
  %v115 = vsel %vm114, %v73, %v113
  %vm116 = vcmask 1044484
  %v117 = vsel %vm116, %v80, %v115
  %vm118 = vcmask 1045509
  %v119 = vsel %vm118, %v87, %v117
  %vm120 = vcmask 1046534
  %v121 = vsel %vm120, %v94, %v119
  %vm122 = vcmask 1047559
  %v123 = vsel %vm122, %v101, %v121
  %v125 = vadd.f32 %v13, %v123
  %126 = vst [vmem:[%s1] sm:$0xff] %v125
  // Predicated region
  $region10: #{cnn_classifier_forward.18} parent=0 // pred_check
    %p127 = pneg %p8
  $region11: #{cnn_classifier_forward.18} parent=0 // pred_check_branch
    %129 = sbr.rel (%p127) target = $region13
  $region12: #{cnn_classifier_forward.18} parent=0 // pred_region
    %v130 = vld [vmem:[%s1] sm:$0xff]
    %v131 = vmul.f32 %v130, 0.25
    %132 = vst [vmem:[%s1] sm:$0xff] %v131
  $region13: #{cnn_classifier_forward.18} parent=0 // pred_fallthru
    _
  // Predicated region
  $region14: #{cnn_classifier_forward.18} parent=0 // pred_check
    _
  $region15: #{cnn_classifier_forward.18} parent=0 // pred_check_branch
    %134 = sbr.rel (0) target = $region17
  $region16: #{cnn_classifier_forward.18} parent=0 // pred_region
    _
  $region17: #{cnn_classifier_forward.18} parent=0 // pred_fallthru
    _
  // Predicated region
  $region18: #{cnn_classifier_forward.18} parent=0 // pred_check
    _
  $region19: #{cnn_classifier_forward.18} parent=0 // pred_check_branch
    %136 = sbr.rel (0) target = $region21
  $region20: #{cnn_classifier_forward.18} parent=0 // pred_region
    _
  $region21: #{cnn_classifier_forward.18} parent=0 // pred_fallthru
    _

// kernel: cnn_classifier_forward.19
$region0: #{cnn_classifier_forward.19}
  #allocation0 [shape = 'u32[]', space=smem, size = 0x4, offset = 0x4, fixed_abs, tag = 'smem constant byte address 0x4 - core index']
  #allocation1 [shape = 'u32[144,128]{1,0:T(1,128)}', space=vmem, size = 0x12000, scoped, tag = 'internal scratch']
  %s0 = inlined_call_operand.vmem [shape: bf16[16,128], index: 0, kind: input, shape index: {}]
  %s1 = inlined_call_operand.vmem [shape: bf16[128,128], index: 1, kind: input, shape index: {}]
  %s2 = inlined_call_operand.vmem [shape: f32[1,128], index: 2, kind: input, shape index: {}]
  %s3 = inlined_call_operand.vmem [shape: f32[16,128], index: 3, kind: output, shape index: {}]
  %s4 = sld [smem:[#allocation0]]
  $region22: #{cnn_classifier_forward.19} parent=0
    _
  %s6 = ssub.s32 1, %s4
  %s7 = scalar_select 0, %s6, %s4
  // Predicated region
  $region2: #{cnn_classifier_forward.19} parent=0 // pred_check
    _
  $region3: #{cnn_classifier_forward.19} parent=0 // pred_check_branch
    %9 = sbr.rel (0) target = $region5
  $region4: #{cnn_classifier_forward.19} parent=0 // pred_region
    _
  $region5: #{cnn_classifier_forward.19} parent=0 // pred_fallthru
    _
  // Predicated region
  $region6: #{cnn_classifier_forward.19} parent=0 // pred_check
    _
  $region7: #{cnn_classifier_forward.19} parent=0 // pred_check_branch
    %11 = sbr.rel (0) target = $region9
  $region8: #{cnn_classifier_forward.19} parent=0 // pred_region
    _
  $region9: #{cnn_classifier_forward.19} parent=0 // pred_fallthru
    _
  // Predicated region
  $region10: #{cnn_classifier_forward.19} parent=0 // pred_check
    _
  $region11: #{cnn_classifier_forward.19} parent=0 // pred_check_branch
    %13 = sbr.rel (0) target = $region13
  $region12: #{cnn_classifier_forward.19} parent=0 // pred_region
    _
  $region13: #{cnn_classifier_forward.19} parent=0 // pred_fallthru
    _
  %v15 = vld [vmem:[%s0] sm:$0xf]
  %v16 = vld [vmem:[%s0 + $0x4] sm:$0xf]
  %v17 = vld [vmem:[%s1] sm:$0xf]
  %v18 = vld [vmem:[%s1 + $0x4] sm:$0xf]
  %v19 = vld [vmem:[%s1 + $0x8] sm:$0xf]
  %v20 = vld [vmem:[%s1 + $0xc] sm:$0xf]
  %v21 = vld [vmem:[%s1 + $0x10] sm:$0xf]
  %v22 = vld [vmem:[%s1 + $0x14] sm:$0xf]
  %v23 = vld [vmem:[%s1 + $0x18] sm:$0xf]
  %v24 = vld [vmem:[%s1 + $0x1c] sm:$0xf]
  %v25 = vld [vmem:[%s1 + $0x20] sm:$0xf]
  %v26 = vld [vmem:[%s1 + $0x24] sm:$0xf]
  %v27 = vld [vmem:[%s1 + $0x28] sm:$0xf]
  %v28 = vld [vmem:[%s1 + $0x2c] sm:$0xf]
  %v29 = vld [vmem:[%s1 + $0x30] sm:$0xf]
  %v30 = vld [vmem:[%s1 + $0x34] sm:$0xf]
  %v31 = vld [vmem:[%s1 + $0x38] sm:$0xf]
  %v32 = vld [vmem:[%s1 + $0x3c] sm:$0xf]
  %v33 = vld [vmem:[%s2] sm:$0x1]
  %v35 = vlaneseq
  %v36 = vshrl.u32 %v35, 7
  %v37 = vsub.s32 0, %v36
  %v38 = vrot.slane %v33, %v37
  %v42 = vunpack.c.l.b16 %v15
  %v43 = vunpack.c.l.b16 %v16
  %v44 = vpack.c.b16 %v43, %v42
  %v62 = vunpack.c.l.b16 %v17
  %v63 = vunpack.c.l.b16 %v18
  %v64 = vunpack.c.l.b16 %v19
  %v65 = vunpack.c.l.b16 %v20
  %v66 = vunpack.c.l.b16 %v21
  %v67 = vunpack.c.l.b16 %v22
  %v68 = vunpack.c.l.b16 %v23
  %v69 = vunpack.c.l.b16 %v24
  %v70 = vunpack.c.l.b16 %v25
  %v71 = vunpack.c.l.b16 %v26
  %v72 = vunpack.c.l.b16 %v27
  %v73 = vunpack.c.l.b16 %v28
  %v74 = vunpack.c.l.b16 %v29
  %v75 = vunpack.c.l.b16 %v30
  %v76 = vunpack.c.l.b16 %v31
  %v77 = vunpack.c.l.b16 %v32
  %v78 = vpack.c.b16 %v63, %v62
  %v79 = vpack.c.b16 %v65, %v64
  %v80 = vpack.c.b16 %v67, %v66
  %v81 = vpack.c.b16 %v69, %v68
  %v82 = vpack.c.b16 %v71, %v70
  %v83 = vpack.c.b16 %v73, %v72
  %v84 = vpack.c.b16 %v75, %v74
  %v85 = vpack.c.b16 %v77, %v76
  %94 = vmatprep.subr.bf16.mxu0 0
  %95 = vmatpush1.bf16.msra.mxu0 %v85
  %96 = vmatprep.subr.bf16.mxu0 0
  %97 = vmatpush1.bf16.msra.mxu0 %v84
  %98 = vmatprep.subr.bf16.mxu0 0
  %99 = vmatpush1.bf16.msra.mxu0 %v83
  %100 = vmatprep.subr.bf16.mxu0 0
  %101 = vmatpush1.bf16.msra.mxu0 %v82
  %102 = vmatprep.subr.bf16.mxu0 0
  %103 = vmatpush1.bf16.msra.mxu0 %v81
  %104 = vmatprep.subr.bf16.mxu0 0
  %105 = vmatpush1.bf16.msra.mxu0 %v80
  %106 = vmatprep.subr.bf16.mxu0 0
  %107 = vmatpush1.bf16.msra.mxu0 %v79
  %108 = vmatprep.subr.bf16.mxu0 0
  %109 = vmatpush1.bf16.msra.mxu0 %v78
  %110 = vmatprep.subr.bf16.mxu0 0
  %111 = vmatpush2.bf16.msra.mxu0 0
  %112 = vmatprep.subr.bf16.mxu0 0
  %113 = vmatpush2.bf16.msra.mxu0 0
  %114 = vmatprep.subr.bf16.mxu0 0
  %115 = vmatpush2.bf16.msra.mxu0 0
  %116 = vmatprep.subr.bf16.mxu0 0
  %117 = vmatpush2.bf16.msra.mxu0 0
  %118 = vmatprep.subr.bf16.mxu0 0
  %119 = vmatpush2.bf16.msra.mxu0 0
  %120 = vmatprep.subr.bf16.mxu0 0
  %121 = vmatpush2.bf16.msra.mxu0 0
  %122 = vmatprep.subr.bf16.mxu0 0
  %123 = vmatpush2.bf16.msra.mxu0 0
  %124 = vmatprep.subr.bf16.mxu0 0
  %125 = vmatpush2.bf16.msra.mxu0 0
  %126 = vmatprep.mubr.bf16.mxu0 0
  %127 = vmatmul.mubr.bf16.gmra.mxu0 %v44
  %v128 = vpop.f32.mrf.mxu0
  %v129 = vadd.f32 %v38, %v128
  %v130 = vpop.f32.mrf.mxu0
  %v131 = vpop.f32.mrf.mxu0
  %v132 = vadd.f32 %v38, %v131
  %v133 = vpop.f32.mrf.mxu0
  %134 = vdwg.mxu0
  %135 = vst [vmem:[%s3] sm:$0xff] %v129
  %136 = vst [vmem:[%s3 + $0x8] sm:$0xff] %v132
  // Predicated region
  $region14: #{cnn_classifier_forward.19} parent=0 // pred_check
    _
  $region15: #{cnn_classifier_forward.19} parent=0 // pred_check_branch
    %138 = sbr.rel (0) target = $region17
  $region16: #{cnn_classifier_forward.19} parent=0 // pred_region
    _
  $region17: #{cnn_classifier_forward.19} parent=0 // pred_fallthru
    _
  // Predicated region
  $region18: #{cnn_classifier_forward.19} parent=0 // pred_check
    _
  $region19: #{cnn_classifier_forward.19} parent=0 // pred_check_branch
    %140 = sbr.rel (0) target = $region21
  $region20: #{cnn_classifier_forward.19} parent=0 // pred_region
    _
  $region21: #{cnn_classifier_forward.19} parent=0 // pred_fallthru
    _

</llo_original>
